<compile_context>
chip_gen: v6e
topology: v6e:2x2x1
jax: 0.10.0
libtpu: 0.0.40
codegen_flags: <defaults>
</compile_context>

<pallas_src>
import jax
import jax.numpy as jnp
from jax.experimental import pallas as pl
from jax.experimental.pallas import tpu as pltpu

# MXU operand / inter-kernel activation dtypes.  bf16 runs the MXU at full rate
# on every generation and halves HBM traffic for y1/y2; all accumulation and BN
# statistic math stays in f32.  (Set both to jnp.float32 for bit-tight checks.)
MXU_DTYPE = jnp.bfloat16
INTER_DTYPE = jnp.bfloat16


# ----------------------------------------------------------------------------
# helpers
# ----------------------------------------------------------------------------
def _round_up(x, m):
    return (x + m - 1) // m * m


def _vmem_limit_bytes():
    # Raise the scoped-VMEM limit above the 16/32 MiB default but stay well
    # inside physical VMEM (v5e/v6e: 128 MiB -> 96 MiB, v7x: 64 MiB -> 48 MiB).
    try:
        cap = pltpu.get_tpu_info().vmem_capacity_bytes
    except Exception:
        cap = 64 << 20
    return int(min(cap * 3 // 4, 96 << 20))


def _pick_tile_h(h, w, slab_cin):
    """Largest divisor of H such that M = tile_h*W reaches ~512 rows (fills the
    MXU M dim, amortizes ~0.35us/grid-step) while the per-step im2col slab stays
    a small fraction of scoped VMEM."""
    target_m = 512
    slab_bytes_per_row = w * 9 * slab_cin * jnp.dtype(MXU_DTYPE).itemsize
    budget = 8 << 20
    best = 1
    for t in range(1, h + 1):
        if h % t:
            continue
        if t * slab_bytes_per_row > budget:
            break
        best = t
        if t * w >= target_m:
            break
    return best


def _pick_epilogue_tile_h(h, row_bytes, max_bytes=4 << 20):
    best = 1
    for t in range(1, h + 1):
        if h % t == 0 and t * row_bytes <= max_bytes:
            best = t
    return best


def _pack_weight(w_oihw, cin_pad, cout_pad):
    """(Cout, Cin, 3, 3) -> im2col-packed (9*cin_pad, cout_pad) in MXU dtype."""
    cout, cin, kh, kw = w_oihw.shape
    w = jnp.transpose(w_oihw, (2, 3, 1, 0))                       # (3,3,Cin,Cout)
    w = jnp.pad(w, ((0, 0), (0, 0), (0, cin_pad - cin), (0, cout_pad - cout)))
    return w.reshape(kh * kw * cin_pad, cout_pad).astype(MXU_DTYPE)


# ----------------------------------------------------------------------------
# Pallas kernels
# ----------------------------------------------------------------------------
def _make_conv_kernel(tile_h, fuse_input_bn_relu):
    """3x3 stride-1 pad-1 conv on one (sample, row-tile) block.

    Refs: x, w_packed[, bn_scale, bn_bias], y, psum, psumsq
      x      : (1, H, W, Cin)          full sample (resident across row tiles)
      w      : (9*Cin, Cmid)           im2col-packed weights (bf16)
      scale/bias : (1, Cin)            folded BN of the previous conv (kernel B)
      y      : (1, tile_h, W, Cmid)    pre-BN conv output (bf16)
      psum   : (1, 1, 1, Cmid)         per-block channel sum       (f32)
      psumsq : (1, 1, 1, Cmid)         per-block channel sum^2     (f32)
    """

    def kernel(*refs):
        if fuse_input_bn_relu:
            x_ref, w_ref, scale_ref, bias_ref, y_ref, psum_ref, psq_ref = refs
        else:
            x_ref, w_ref, y_ref, psum_ref, psq_ref = refs
            scale_ref = bias_ref = None

        height = x_ref.shape[1]
        width = x_ref.shape[2]
        cin = x_ref.shape[3]
        cout = y_ref.shape[3]

        i = pl.program_id(1)
        nt = pl.num_programs(1)
        r0 = pl.multiple_of(i * tile_h, tile_h)

        # Hoisted: BN scale/bias of the previous conv are read ONCE per step.
        if fuse_input_bn_relu:
            s = scale_ref[0]
            b = bias_ref[0]

        def act(v):
            # BN-affine + ReLU of the previous conv, applied on load (kernel B).
            # Affine in f32 for accuracy, then cast down once for the MXU.
            if fuse_input_bn_relu:
                v = jnp.maximum(v.astype(jnp.float32) * s + b, 0.0)
            return v.astype(MXU_DTYPE)

        # (tile_h+2, W, Cin) row-extended block.  Out-of-image halo rows are
        # read clamped and zeroed with a scalar-predicate select (conv zero
        # padding) -- no scratch window, no per-step memset, no misaligned
        # scratch stores.
        mid = act(x_ref[0, pl.ds(r0, tile_h), :, :])
        top = act(x_ref[0, pl.ds(jnp.maximum(r0 - 1, 0), 1), :, :])
        bot = act(x_ref[0, pl.ds(jnp.minimum(r0 + tile_h, height - 1), 1), :, :])
        top = jnp.where(i > 0, top, jnp.zeros_like(top))
        bot = jnp.where(i + 1 < nt, bot, jnp.zeros_like(bot))
        ext = jnp.concatenate([top, mid, bot], axis=0)

        # dw = +/-1 taps: column shift with zero edge columns (pure value ops).
        # TODO(synk): move the column shift onto the XLU with pltpu.roll + an
        # iota edge mask once 3-D sublane-axis roll is validated on all gens.
        zcol = jnp.zeros((tile_h + 2, 1, cin), MXU_DTYPE)
        left = jnp.concatenate([zcol, ext[:, :width - 1, :]], axis=1)   # x[:, j-1]
        right = jnp.concatenate([ext[:, 1:, :], zcol], axis=1)          # x[:, j+1]
        cols = (left, ext, right)

        # K-fused im2col: one (tile_h*W, 9*Cin) x (9*Cin, Cmid) MXU matmul
        # instead of 9 separate K=Cin dots.  (W multiple of the sublane quantum
        # keeps the reshape layout-preserving; otherwise it's a small copy.)
        slab = jnp.concatenate(
            [cols[dw][dh:dh + tile_h] for dh in range(3) for dw in range(3)],
            axis=-1).reshape(tile_h * width, 9 * cin)
        acc = jnp.dot(slab, w_ref[...], preferred_element_type=jnp.float32)

        y_ref[...] = acc.reshape(1, tile_h, width, cout).astype(y_ref.dtype)
        # Per-block BN partial statistics taken from the f32 accumulator
        # (activation already in vregs -> free-ish).
        psum_ref[...] = jnp.sum(acc, axis=0).reshape(1, 1, 1, cout)
        psq_ref[...] = jnp.sum(acc * acc, axis=0).reshape(1, 1, 1, cout)

    return kernel


def _bn_relu_kernel(x_ref, scale_ref, bias_ref, o_ref):
    """Final folded-BN affine + ReLU epilogue; slices channel padding in-kernel."""
    cout = o_ref.shape[-1]
    s = scale_ref[0, :]
    b = bias_ref[0, :]
    x = x_ref[..., :cout].astype(jnp.float32)
    o_ref[...] = jnp.maximum(x * s[:cout] + b[:cout], 0.0).astype(o_ref.dtype)


# ----------------------------------------------------------------------------
# pallas_call wrappers
# ----------------------------------------------------------------------------
def _conv3x3_bn_stats(x_nhwc, w_packed, scale_in, bias_in, *, cout, tile_h):
    n, h, w, cin = x_nhwc.shape
    n_tiles = h // tile_h
    fuse = scale_in is not None
    kernel = _make_conv_kernel(tile_h, fuse)

    in_specs = [
        # Full sample resident across the row-tile axis (re-DMA'd only when the
        # N index changes).
        # TODO(synk): for large H*W*C (v7x: 48 MiB scoped of 64 MiB VMEM)
        # replace with a bounded (tile_h+2)-row window via manual double-
        # buffered DMA from an HBM-resident input (memory_space=pl.ANY).
        pl.BlockSpec((1, h, w, cin), lambda ni, ti: (ni, 0, 0, 0)),
        pl.BlockSpec(w_packed.shape, lambda ni, ti: (0, 0)),
    ]
    args = [x_nhwc, w_packed]
    if fuse:
        in_specs += [pl.BlockSpec(scale_in.shape, lambda ni, ti: (0, 0)),
                     pl.BlockSpec(bias_in.shape, lambda ni, ti: (0, 0))]
        args += [scale_in, bias_in]

    out_shape = (
        jax.ShapeDtypeStruct((n, h, w, cout), INTER_DTYPE),
        jax.ShapeDtypeStruct((n, n_tiles, 1, cout), jnp.float32),
        jax.ShapeDtypeStruct((n, n_tiles, 1, cout), jnp.float32),
    )
    out_specs = (
        pl.BlockSpec((1, tile_h, w, cout), lambda ni, ti: (ni, ti, 0, 0)),
        pl.BlockSpec((1, 1, 1, cout), lambda ni, ti: (ni, ti, 0, 0)),
        pl.BlockSpec((1, 1, 1, cout), lambda ni, ti: (ni, ti, 0, 0)),
    )
    return pl.pallas_call(
        kernel,
        out_shape=out_shape,
        grid=(n, n_tiles),
        in_specs=in_specs,
        out_specs=out_specs,
        compiler_params=pltpu.CompilerParams(
            # N "parallel", row-tile "arbitrary": the megacore split (v7x: 2 TCs)
            # lands on whole samples, preserving resident-input reuse per core
            # instead of re-DMA-ing the same sample on both cores.
            dimension_semantics=("parallel", "arbitrary"),
            vmem_limit_bytes=_vmem_limit_bytes()),
    )(*args)


def _bn_relu(y, scale, bias, *, cout):
    n, h, w, c = y.shape
    # Pure-bandwidth epilogue: use multi-MiB blocks to approach HBM roofline.
    row_bytes = w * (c * jnp.dtype(y.dtype).itemsize + cout * 4)
    tile_h = _pick_epilogue_tile_h(h, row_bytes)
    return pl.pallas_call(
        _bn_relu_kernel,
        out_shape=jax.ShapeDtypeStruct((n, h, w, cout), jnp.float32),
        grid=(n, h // tile_h),
        in_specs=[pl.BlockSpec((1, tile_h, w, c), lambda ni, ti: (ni, ti, 0, 0)),
                  pl.BlockSpec(scale.shape, lambda ni, ti: (0, 0)),
                  pl.BlockSpec(bias.shape, lambda ni, ti: (0, 0))],
        out_specs=pl.BlockSpec((1, tile_h, w, cout), lambda ni, ti: (ni, ti, 0, 0)),
        compiler_params=pltpu.CompilerParams(
            dimension_semantics=("parallel", "parallel"),
            vmem_limit_bytes=_vmem_limit_bytes()),
    )(y, scale, bias)


def _bn_scale_bias(psum, psumsq, gamma, beta, count, c_mid, eps):
    # Tiny (N, n_tiles, 1, Cmid) reduction in plain JAX; the activation is never
    # re-read from HBM for BN statistics.  One-pass E[x^2]-mean^2 in f32.
    s = jnp.sum(psum, axis=(0, 1, 2))
    q = jnp.sum(psumsq, axis=(0, 1, 2))
    mean = s / count
    var = jnp.maximum(q / count - mean * mean, 0.0)   # biased var (PyTorch fwd)
    g = jnp.zeros((c_mid,), jnp.float32).at[:gamma.shape[0]].set(gamma)
    b = jnp.zeros((c_mid,), jnp.float32).at[:beta.shape[0]].set(beta)
    scale = g * jax.lax.rsqrt(var + eps)              # padded channels -> 0
    bias = b - mean * scale                           # padded channels -> 0
    return scale.reshape(1, c_mid), bias.reshape(1, c_mid)


def double_conv_nhwc(x_nhwc, w1, g1, b1, w2, g2, b2, eps=1e-5):
    """DoubleConv forward in NHWC.  Use this entry point inside an NHWC network
    to avoid per-layer NCHW<->NHWC transposes."""
    n, h, w, cin = x_nhwc.shape
    cout = w1.shape[0]
    # Keep the intermediate channel count tight (sublane quantum only) instead
    # of a 128-lane pad: avoids Cpad/Cout inflation of conv2's K and of all
    # inter-kernel HBM traffic.
    c_mid = _round_up(cout, 8)
    count = n * h * w

    tile_h1 = _pick_tile_h(h, w, cin)
    tile_h2 = _pick_tile_h(h, w, c_mid)

    # TODO(synk): for very small Cin (1-4), a VPU direct-conv / lane-dense
    # wrapper-side im2col layout for conv1 would avoid the lane-sparse relayout.
    w1p = _pack_weight(w1, cin, c_mid)     # (9*cin,   c_mid) bf16
    w2p = _pack_weight(w2, c_mid, c_mid)   # (9*c_mid, c_mid) bf16

    x_lp = x_nhwc.astype(MXU_DTYPE)

    # conv1 + BN1 partial stats
    y1, s1, q1 = _conv3x3_bn_stats(x_lp, w1p, None, None,
                                   cout=c_mid, tile_h=tile_h1)
    scale1, bias1 = _bn_scale_bias(s1, q1, g1, b1, count, c_mid, eps)

    # BN1+ReLU fused into conv2's input path; conv2 + BN2 partial stats
    y2, s2, q2 = _conv3x3_bn_stats(y1, w2p, scale1, bias1,
                                   cout=c_mid, tile_h=tile_h2)
    scale2, bias2 = _bn_scale_bias(s2, q2, g2, b2, count, c_mid, eps)

    # BN2 + ReLU epilogue writes the final (N, H, W, cout) directly.
    return _bn_relu(y2, scale2, bias2, cout=cout)


@jax.jit
def double_conv(x_nchw, w1, g1, b1, w2, g2, b2):
    """DoubleConv.forward with PyTorch NCHW layout at the model boundary."""
    x = jnp.transpose(x_nchw, (0, 2, 3, 1))     # NCHW -> NHWC (boundary only)
    y = double_conv_nhwc(x, w1, g1, b1, w2, g2, b2)
    return jnp.transpose(y, (0, 3, 1, 2))       # NHWC -> NCHW


# ----------------------------------------------------------------------------
# Pure-JAX reference (correctness check)
# ----------------------------------------------------------------------------
def _ref_double_conv(x_nchw, w1, g1, b1, w2, g2, b2, eps=1e-5):
    def conv(x, w):
        return jax.lax.conv_general_dilated(
            x, w, (1, 1), ((1, 1), (1, 1)),
            dimension_numbers=("NCHW", "OIHW", "NCHW"))

    def bn_relu(x, g, b):
        m = jnp.mean(x, axis=(0, 2, 3), keepdims=True)
        v = jnp.mean((x - m) ** 2, axis=(0, 2, 3), keepdims=True)
        y = (x - m) * jax.lax.rsqrt(v + eps) * g[None, :, None, None] \
            + b[None, :, None, None]
        return jnp.maximum(y, 0.0)

    y = bn_relu(conv(x_nchw, w1), g1, b1)
    return bn_relu(conv(y, w2), g2, b2)


# ----------------------------------------------------------------------------
# Main
# ----------------------------------------------------------------------------
if __name__ == "__main__":
    in_channels, out_channels = 4, 8
    N, H, W = 2, 16, 16

    key = jax.random.PRNGKey(0)
    kx, kw1, kw2 = jax.random.split(key, 3)

    x = jax.random.normal(kx, (N, in_channels, H, W), jnp.float32)

    # nn.Conv2d default init bounds, deterministic.
    bound1 = 1.0 / (in_channels * 9) ** 0.5
    w1 = jax.random.uniform(kw1, (out_channels, in_channels, 3, 3),
                            jnp.float32, -bound1, bound1)
    bound2 = 1.0 / (out_channels * 9) ** 0.5
    w2 = jax.random.uniform(kw2, (out_channels, out_channels, 3, 3),
                            jnp.float32, -bound2, bound2)
    # nn.BatchNorm2d default init: gamma = 1, beta = 0.
    g1 = jnp.ones((out_channels,), jnp.float32)
    b1 = jnp.zeros((out_channels,), jnp.float32)
    g2 = jnp.ones((out_channels,), jnp.float32)
    b2 = jnp.zeros((out_channels,), jnp.float32)

    out = jax.block_until_ready(double_conv(x, w1, g1, b1, w2, g2, b2))

    ref = _ref_double_conv(x, w1, g1, b1, w2, g2, b2)
    assert out.shape == (N, out_channels, H, W)
    # Tolerance loosened for bf16 MXU operands and bf16 inter-kernel activations
    # (BN normalization keeps everything O(1), so 5e-2 abs/rel is comfortable).
    assert jnp.allclose(out, ref, atol=5e-2, rtol=5e-2), "mismatch vs reference"

    print("KERNEL_OK")
</pallas_src>

<mosaic_0001>
module attributes {stable_mosaic.version = 11 : i64} {
  func.func @_bn_relu_kernel(%arg0: i32, %arg1: i32, %arg2: memref<1x16x16x8xbf16, #tpu.memory_space<vmem>>, %arg3: memref<1x8xf32, #tpu.memory_space<vmem>>, %arg4: memref<1x8xf32, #tpu.memory_space<vmem>>, %arg5: memref<1x16x16x8xf32, #tpu.memory_space<vmem>>) attributes {dimension_semantics = [#tpu.dimension_semantics<parallel>, #tpu.dimension_semantics<parallel>], iteration_bounds = array<i64: 2, 1>, scalar_prefetch = 0 : i64, scratch_operands = 0 : i64, tpu.core_type = #tpu.core_type<tc>, window_params = [{transform_indices = @transform_0, window_bounds = array<i64: 1, 16, 16, 8>}, {pipeline_mode = #tpu.pipeline_mode<synchronous>, transform_indices = @transform_1, window_bounds = array<i64: 1, 8>}, {pipeline_mode = #tpu.pipeline_mode<synchronous>, transform_indices = @transform_2, window_bounds = array<i64: 1, 8>}, {transform_indices = @transform_3, window_bounds = array<i64: 1, 16, 16, 8>}]} {
    %c0 = arith.constant 0 : index
    %c0_0 = arith.constant 0 : index
    %0 = vector.load %arg3[%c0, %c0_0] : memref<1x8xf32, #tpu.memory_space<vmem>>, vector<1x8xf32>
    %1 = vector.shape_cast %0 : vector<1x8xf32> to vector<8xf32>
    %c0_1 = arith.constant 0 : index
    %c0_2 = arith.constant 0 : index
    %2 = vector.load %arg4[%c0_1, %c0_2] : memref<1x8xf32, #tpu.memory_space<vmem>>, vector<1x8xf32>
    %3 = vector.shape_cast %2 : vector<1x8xf32> to vector<8xf32>
    %c0_3 = arith.constant 0 : index
    %c0_4 = arith.constant 0 : index
    %c0_5 = arith.constant 0 : index
    %c0_6 = arith.constant 0 : index
    %4 = vector.load %arg2[%c0_3, %c0_4, %c0_5, %c0_6] : memref<1x16x16x8xbf16, #tpu.memory_space<vmem>>, vector<1x16x16x8xbf16>
    %5 = arith.extf %4 : vector<1x16x16x8xbf16> to vector<1x16x16x8xf32>
    %6 = vector.shape_cast %1 : vector<8xf32> to vector<1x1x1x8xf32>
    %7 = vector.broadcast %6 : vector<1x1x1x8xf32> to vector<1x16x16x8xf32>
    %8 = arith.mulf %5, %7 : vector<1x16x16x8xf32>
    %9 = vector.shape_cast %3 : vector<8xf32> to vector<1x1x1x8xf32>
    %10 = vector.broadcast %9 : vector<1x1x1x8xf32> to vector<1x16x16x8xf32>
    %11 = arith.addf %8, %10 : vector<1x16x16x8xf32>
    %cst = arith.constant 0.000000e+00 : f32
    %12 = vector.broadcast %cst : f32 to vector<1x16x16x8xf32>
    %13 = arith.maximumf %11, %12 : vector<1x16x16x8xf32>
    %c0_7 = arith.constant 0 : index
    %c0_8 = arith.constant 0 : index
    %c0_9 = arith.constant 0 : index
    %c0_10 = arith.constant 0 : index
    %14 = vector.load %arg5[%c0_7, %c0_8, %c0_9, %c0_10] : memref<1x16x16x8xf32, #tpu.memory_space<vmem>>, vector<1x16x16x8xf32>
    tpu.vector_store %arg5[%c0_7, %c0_8, %c0_9, %c0_10], %13 {strides = array<i32>} : memref<1x16x16x8xf32, #tpu.memory_space<vmem>>, vector<1x16x16x8xf32>,
    return
  }
  func.func @transform_0(%arg0: i32, %arg1: i32) -> (i32, i32, i32, i32) {
    %c0_i32 = arith.constant 0 : i32
    %c0_i32_0 = arith.constant 0 : i32
    %c0_i32_1 = arith.constant 0 : i32
    return %arg0, %arg1, %c0_i32, %c0_i32_0 : i32, i32, i32, i32
  }
  func.func @transform_1(%arg0: i32, %arg1: i32) -> (i32, i32) {
    %c0_i32 = arith.constant 0 : i32
    %c0_i32_0 = arith.constant 0 : i32
    %c0_i32_1 = arith.constant 0 : i32
    return %c0_i32, %c0_i32_0 : i32, i32
  }
  func.func @transform_2(%arg0: i32, %arg1: i32) -> (i32, i32) {
    %c0_i32 = arith.constant 0 : i32
    %c0_i32_0 = arith.constant 0 : i32
    %c0_i32_1 = arith.constant 0 : i32
    return %c0_i32, %c0_i32_0 : i32, i32
  }
  func.func @transform_3(%arg0: i32, %arg1: i32) -> (i32, i32, i32, i32) {
    %c0_i32 = arith.constant 0 : i32
    %c0_i32_0 = arith.constant 0 : i32
    %c0_i32_1 = arith.constant 0 : i32
    return %arg0, %arg1, %c0_i32, %c0_i32_0 : i32, i32, i32, i32
  }
}

module attributes {stable_mosaic.version = 11 : i64} {
  func.func @kernel(%arg0: i32, %arg1: i32, %arg2: memref<1x16x16x8xbf16, #tpu.memory_space<vmem>>, %arg3: memref<72x8xbf16, #tpu.memory_space<vmem>>, %arg4: memref<1x8xf32, #tpu.memory_space<vmem>>, %arg5: memref<1x8xf32, #tpu.memory_space<vmem>>, %arg6: memref<1x16x16x8xbf16, #tpu.memory_space<vmem>>, %arg7: memref<1x1x1x8xf32, #tpu.memory_space<vmem>>, %arg8: memref<1x1x1x8xf32, #tpu.memory_space<vmem>>) attributes {dimension_semantics = [#tpu.dimension_semantics<parallel>, #tpu.dimension_semantics<arbitrary>], iteration_bounds = array<i64: 2, 1>, scalar_prefetch = 0 : i64, scratch_operands = 0 : i64, tpu.core_type = #tpu.core_type<tc>, window_params = [{transform_indices = @transform_0, window_bounds = array<i64: 1, 16, 16, 8>}, {pipeline_mode = #tpu.pipeline_mode<synchronous>, transform_indices = @transform_1, window_bounds = array<i64: 72, 8>}, {pipeline_mode = #tpu.pipeline_mode<synchronous>, transform_indices = @transform_2, window_bounds = array<i64: 1, 8>}, {pipeline_mode = #tpu.pipeline_mode<synchronous>, transform_indices = @transform_3, window_bounds = array<i64: 1, 8>}, {transform_indices = @transform_4, window_bounds = array<i64: 1, 16, 16, 8>}, {transform_indices = @transform_5, window_bounds = array<i64: 1, 1, 1, 8>}, {transform_indices = @transform_6, window_bounds = array<i64: 1, 1, 1, 8>}]} {
    %c16_i32 = arith.constant 16 : i32
    %0 = arith.muli %arg1, %c16_i32 : i32
    %1 = tpu.assume_multiple %0, 16 : i32
    %c0 = arith.constant 0 : index
    %c0_0 = arith.constant 0 : index
    %2 = vector.load %arg4[%c0, %c0_0] : memref<1x8xf32, #tpu.memory_space<vmem>>, vector<1x8xf32>
    %3 = vector.shape_cast %2 : vector<1x8xf32> to vector<8xf32>
    %c0_1 = arith.constant 0 : index
    %c0_2 = arith.constant 0 : index
    %4 = vector.load %arg5[%c0_1, %c0_2] : memref<1x8xf32, #tpu.memory_space<vmem>>, vector<1x8xf32>
    %5 = vector.shape_cast %4 : vector<1x8xf32> to vector<8xf32>
    %c0_3 = arith.constant 0 : index
    %6 = arith.index_cast %1 : i32 to index
    %c0_4 = arith.constant 0 : index
    %c0_5 = arith.constant 0 : index
    %7 = vector.load %arg2[%c0_3, %6, %c0_4, %c0_5] : memref<1x16x16x8xbf16, #tpu.memory_space<vmem>>, vector<1x16x16x8xbf16>
    %8 = vector.shape_cast %7 : vector<1x16x16x8xbf16> to vector<16x16x8xbf16>
    %9 = arith.extf %8 : vector<16x16x8xbf16> to vector<16x16x8xf32>
    %10 = vector.shape_cast %3 : vector<8xf32> to vector<1x1x8xf32>
    %11 = vector.broadcast %10 : vector<1x1x8xf32> to vector<16x16x8xf32>
    %12 = arith.mulf %9, %11 : vector<16x16x8xf32>
    %13 = vector.shape_cast %5 : vector<8xf32> to vector<1x1x8xf32>
    %14 = vector.broadcast %13 : vector<1x1x8xf32> to vector<16x16x8xf32>
    %15 = arith.addf %12, %14 : vector<16x16x8xf32>
    %cst = arith.constant 0.000000e+00 : f32
    %16 = vector.broadcast %cst : f32 to vector<16x16x8xf32>
    %17 = arith.maximumf %15, %16 : vector<16x16x8xf32>
    %18 = arith.truncf %17 : vector<16x16x8xf32> to vector<16x16x8xbf16>
    %c1_i32 = arith.constant 1 : i32
    %19 = arith.subi %1, %c1_i32 : i32
    %c0_i32 = arith.constant 0 : i32
    %20 = arith.maxsi %19, %c0_i32 : i32
    %c0_6 = arith.constant 0 : index
    %21 = arith.index_cast %20 : i32 to index
    %c0_7 = arith.constant 0 : index
    %c0_8 = arith.constant 0 : index
    %22 = vector.load %arg2[%c0_6, %21, %c0_7, %c0_8] : memref<1x16x16x8xbf16, #tpu.memory_space<vmem>>, vector<1x1x16x8xbf16>
    %23 = vector.shape_cast %22 : vector<1x1x16x8xbf16> to vector<1x16x8xbf16>
    %24 = arith.extf %23 : vector<1x16x8xbf16> to vector<1x16x8xf32>
    %25 = vector.shape_cast %3 : vector<8xf32> to vector<1x1x8xf32>
    %26 = vector.broadcast %25 : vector<1x1x8xf32> to vector<1x16x8xf32>
    %27 = arith.mulf %24, %26 : vector<1x16x8xf32>
    %28 = vector.shape_cast %5 : vector<8xf32> to vector<1x1x8xf32>
    %29 = vector.broadcast %28 : vector<1x1x8xf32> to vector<1x16x8xf32>
    %30 = arith.addf %27, %29 : vector<1x16x8xf32>
    %cst_9 = arith.constant 0.000000e+00 : f32
    %31 = vector.broadcast %cst_9 : f32 to vector<1x16x8xf32>
    %32 = arith.maximumf %30, %31 : vector<1x16x8xf32>
    %33 = arith.truncf %32 : vector<1x16x8xf32> to vector<1x16x8xbf16>
    %c16_i32_10 = arith.constant 16 : i32
    %34 = arith.addi %1, %c16_i32_10 : i32
    %c15_i32 = arith.constant 15 : i32
    %35 = arith.minsi %34, %c15_i32 : i32
    %c0_11 = arith.constant 0 : index
    %36 = arith.index_cast %35 : i32 to index
    %c0_12 = arith.constant 0 : index
    %c0_13 = arith.constant 0 : index
    %37 = vector.load %arg2[%c0_11, %36, %c0_12, %c0_13] : memref<1x16x16x8xbf16, #tpu.memory_space<vmem>>, vector<1x1x16x8xbf16>
    %38 = vector.shape_cast %37 : vector<1x1x16x8xbf16> to vector<1x16x8xbf16>
    %39 = arith.extf %38 : vector<1x16x8xbf16> to vector<1x16x8xf32>
    %40 = vector.shape_cast %3 : vector<8xf32> to vector<1x1x8xf32>
    %41 = vector.broadcast %40 : vector<1x1x8xf32> to vector<1x16x8xf32>
    %42 = arith.mulf %39, %41 : vector<1x16x8xf32>
    %43 = vector.shape_cast %5 : vector<8xf32> to vector<1x1x8xf32>
    %44 = vector.broadcast %43 : vector<1x1x8xf32> to vector<1x16x8xf32>
    %45 = arith.addf %42, %44 : vector<1x16x8xf32>
    %cst_14 = arith.constant 0.000000e+00 : f32
    %46 = vector.broadcast %cst_14 : f32 to vector<1x16x8xf32>
    %47 = arith.maximumf %45, %46 : vector<1x16x8xf32>
    %48 = arith.truncf %47 : vector<1x16x8xf32> to vector<1x16x8xbf16>
    %c0_i32_15 = arith.constant 0 : i32
    %49 = arith.cmpi sgt, %arg1, %c0_i32_15 : i32
    %cst_16 = arith.constant 0.000000e+00 : bf16
    %50 = vector.broadcast %cst_16 : bf16 to vector<1x16x8xbf16>
    %51 = arith.select %49, %33, %50 : vector<1x16x8xbf16>
    %c1_i32_17 = arith.constant 1 : i32
    %52 = arith.addi %arg1, %c1_i32_17 : i32
    %c1_i32_18 = arith.constant 1 : i32
    %53 = arith.cmpi slt, %52, %c1_i32_18 : i32
    %cst_19 = arith.constant 0.000000e+00 : bf16
    %54 = vector.broadcast %cst_19 : bf16 to vector<1x16x8xbf16>
    %55 = arith.select %53, %48, %54 : vector<1x16x8xbf16>
    %56 = tpu.concatenate %51, %18, %55 in 0 : vector<1x16x8xbf16>, vector<16x16x8xbf16>, vector<1x16x8xbf16> -> vector<18x16x8xbf16>
    %cst_20 = arith.constant 0.000000e+00 : bf16
    %57 = vector.broadcast %cst_20 : bf16 to vector<18x1x8xbf16>
    %58 = vector.extract_strided_slice %56 {offsets = [0, 0, 0], sizes = [18, 15, 8], strides = [1, 1, 1]} : vector<18x16x8xbf16> to vector<18x15x8xbf16>
    %59 = tpu.concatenate %57, %58 in 1 : vector<18x1x8xbf16>, vector<18x15x8xbf16> -> vector<18x16x8xbf16>
    %60 = vector.extract_strided_slice %56 {offsets = [0, 1, 0], sizes = [18, 15, 8], strides = [1, 1, 1]} : vector<18x16x8xbf16> to vector<18x15x8xbf16>
    %61 = tpu.concatenate %60, %57 in 1 : vector<18x15x8xbf16>, vector<18x1x8xbf16> -> vector<18x16x8xbf16>
    %62 = vector.extract_strided_slice %59 {offsets = [0, 0, 0], sizes = [16, 16, 8], strides = [1, 1, 1]} : vector<18x16x8xbf16> to vector<16x16x8xbf16>
    %63 = vector.extract_strided_slice %56 {offsets = [0, 0, 0], sizes = [16, 16, 8], strides = [1, 1, 1]} : vector<18x16x8xbf16> to vector<16x16x8xbf16>
    %64 = vector.extract_strided_slice %61 {offsets = [0, 0, 0], sizes = [16, 16, 8], strides = [1, 1, 1]} : vector<18x16x8xbf16> to vector<16x16x8xbf16>
    %65 = vector.extract_strided_slice %59 {offsets = [1, 0, 0], sizes = [16, 16, 8], strides = [1, 1, 1]} : vector<18x16x8xbf16> to vector<16x16x8xbf16>
    %66 = vector.extract_strided_slice %56 {offsets = [1, 0, 0], sizes = [16, 16, 8], strides = [1, 1, 1]} : vector<18x16x8xbf16> to vector<16x16x8xbf16>
    %67 = vector.extract_strided_slice %61 {offsets = [1, 0, 0], sizes = [16, 16, 8], strides = [1, 1, 1]} : vector<18x16x8xbf16> to vector<16x16x8xbf16>
    %68 = vector.extract_strided_slice %59 {offsets = [2, 0, 0], sizes = [16, 16, 8], strides = [1, 1, 1]} : vector<18x16x8xbf16> to vector<16x16x8xbf16>
    %69 = vector.extract_strided_slice %56 {offsets = [2, 0, 0], sizes = [16, 16, 8], strides = [1, 1, 1]} : vector<18x16x8xbf16> to vector<16x16x8xbf16>
    %70 = vector.extract_strided_slice %61 {offsets = [2, 0, 0], sizes = [16, 16, 8], strides = [1, 1, 1]} : vector<18x16x8xbf16> to vector<16x16x8xbf16>
    %71 = tpu.concatenate %62, %63, %64, %65, %66, %67, %68, %69, %70 in 2 : vector<16x16x8xbf16>, vector<16x16x8xbf16>, vector<16x16x8xbf16>, vector<16x16x8xbf16>, vector<16x16x8xbf16>, vector<16x16x8xbf16>, vector<16x16x8xbf16>, vector<16x16x8xbf16>, vector<16x16x8xbf16> -> vector<16x16x72xbf16>
    %72 = vector.shape_cast %71 : vector<16x16x72xbf16> to vector<256x72xbf16>
    %c0_21 = arith.constant 0 : index
    %c0_22 = arith.constant 0 : index
    %73 = vector.load %arg3[%c0_21, %c0_22] : memref<72x8xbf16, #tpu.memory_space<vmem>>, vector<72x8xbf16>
    %cst_23 = arith.constant dense<0.000000e+00> : vector<256x8xf32>
    %74 = tpu.matmul %72, %73, %cst_23 {dimension_numbers = #tpu.dot_dimension_numbers<[1], [0], [0], [1], [0, 0, 1, 1], [], []>} : vector<256x72xbf16>, vector<72x8xbf16>, vector<256x8xf32> -> vector<256x8xf32>
    %75 = vector.shape_cast %74 : vector<256x8xf32> to vector<1x16x16x8xf32>
    %76 = arith.truncf %75 : vector<1x16x16x8xf32> to vector<1x16x16x8xbf16>
    %c0_24 = arith.constant 0 : index
    %c0_25 = arith.constant 0 : index
    %c0_26 = arith.constant 0 : index
    %c0_27 = arith.constant 0 : index
    %77 = vector.load %arg6[%c0_24, %c0_25, %c0_26, %c0_27] : memref<1x16x16x8xbf16, #tpu.memory_space<vmem>>, vector<1x16x16x8xbf16>
    tpu.vector_store %arg6[%c0_24, %c0_25, %c0_26, %c0_27], %76 {strides = array<i32>} : memref<1x16x16x8xbf16, #tpu.memory_space<vmem>>, vector<1x16x16x8xbf16>,
    %cst_28 = arith.constant dense<0.000000e+00> : vector<8xf32>
    %78 = vector.multi_reduction <add>, %74, %cst_28 [0] : vector<256x8xf32> to vector<8xf32>
    %79 = vector.shape_cast %78 : vector<8xf32> to vector<1x1x1x8xf32>
    %c0_29 = arith.constant 0 : index
    %c0_30 = arith.constant 0 : index
    %c0_31 = arith.constant 0 : index
    %c0_32 = arith.constant 0 : index
    %80 = vector.load %arg7[%c0_29, %c0_30, %c0_31, %c0_32] : memref<1x1x1x8xf32, #tpu.memory_space<vmem>>, vector<1x1x1x8xf32>
    tpu.vector_store %arg7[%c0_29, %c0_30, %c0_31, %c0_32], %79 {strides = array<i32>} : memref<1x1x1x8xf32, #tpu.memory_space<vmem>>, vector<1x1x1x8xf32>,
    %81 = arith.mulf %74, %74 : vector<256x8xf32>
    %cst_33 = arith.constant dense<0.000000e+00> : vector<8xf32>
    %82 = vector.multi_reduction <add>, %81, %cst_33 [0] : vector<256x8xf32> to vector<8xf32>
    %83 = vector.shape_cast %82 : vector<8xf32> to vector<1x1x1x8xf32>
    %c0_34 = arith.constant 0 : index
    %c0_35 = arith.constant 0 : index
    %c0_36 = arith.constant 0 : index
    %c0_37 = arith.constant 0 : index
    %84 = vector.load %arg8[%c0_34, %c0_35, %c0_36, %c0_37] : memref<1x1x1x8xf32, #tpu.memory_space<vmem>>, vector<1x1x1x8xf32>
    tpu.vector_store %arg8[%c0_34, %c0_35, %c0_36, %c0_37], %83 {strides = array<i32>} : memref<1x1x1x8xf32, #tpu.memory_space<vmem>>, vector<1x1x1x8xf32>,
    return
  }
  func.func @transform_0(%arg0: i32, %arg1: i32) -> (i32, i32, i32, i32) {
    %c0_i32 = arith.constant 0 : i32
    %c0_i32_0 = arith.constant 0 : i32
    %c0_i32_1 = arith.constant 0 : i32
    %c0_i32_2 = arith.constant 0 : i32
    return %arg0, %c0_i32, %c0_i32_0, %c0_i32_1 : i32, i32, i32, i32
  }
  func.func @transform_1(%arg0: i32, %arg1: i32) -> (i32, i32) {
    %c0_i32 = arith.constant 0 : i32
    %c0_i32_0 = arith.constant 0 : i32
    %c0_i32_1 = arith.constant 0 : i32
    return %c0_i32, %c0_i32_0 : i32, i32
  }
  func.func @transform_2(%arg0: i32, %arg1: i32) -> (i32, i32) {
    %c0_i32 = arith.constant 0 : i32
    %c0_i32_0 = arith.constant 0 : i32
    %c0_i32_1 = arith.constant 0 : i32
    return %c0_i32, %c0_i32_0 : i32, i32
  }
  func.func @transform_3(%arg0: i32, %arg1: i32) -> (i32, i32) {
    %c0_i32 = arith.constant 0 : i32
    %c0_i32_0 = arith.constant 0 : i32
    %c0_i32_1 = arith.constant 0 : i32
    return %c0_i32, %c0_i32_0 : i32, i32
  }
  func.func @transform_4(%arg0: i32, %arg1: i32) -> (i32, i32, i32, i32) {
    %c0_i32 = arith.constant 0 : i32
    %c0_i32_0 = arith.constant 0 : i32
    %c0_i32_1 = arith.constant 0 : i32
    return %arg0, %arg1, %c0_i32, %c0_i32_0 : i32, i32, i32, i32
  }
  func.func @transform_5(%arg0: i32, %arg1: i32) -> (i32, i32, i32, i32) {
    %c0_i32 = arith.constant 0 : i32
    %c0_i32_0 = arith.constant 0 : i32
    %c0_i32_1 = arith.constant 0 : i32
    return %arg0, %arg1, %c0_i32, %c0_i32_0 : i32, i32, i32, i32
  }
  func.func @transform_6(%arg0: i32, %arg1: i32) -> (i32, i32, i32, i32) {
    %c0_i32 = arith.constant 0 : i32
    %c0_i32_0 = arith.constant 0 : i32
    %c0_i32_1 = arith.constant 0 : i32
    return %arg0, %arg1, %c0_i32, %c0_i32_0 : i32, i32, i32, i32
  }
}

module attributes {stable_mosaic.version = 11 : i64} {
  func.func @kernel(%arg0: i32, %arg1: i32, %arg2: memref<1x16x16x4xbf16, #tpu.memory_space<vmem>>, %arg3: memref<36x8xbf16, #tpu.memory_space<vmem>>, %arg4: memref<1x16x16x8xbf16, #tpu.memory_space<vmem>>, %arg5: memref<1x1x1x8xf32, #tpu.memory_space<vmem>>, %arg6: memref<1x1x1x8xf32, #tpu.memory_space<vmem>>) attributes {dimension_semantics = [#tpu.dimension_semantics<parallel>, #tpu.dimension_semantics<arbitrary>], iteration_bounds = array<i64: 2, 1>, scalar_prefetch = 0 : i64, scratch_operands = 0 : i64, tpu.core_type = #tpu.core_type<tc>, window_params = [{transform_indices = @transform_0, window_bounds = array<i64: 1, 16, 16, 4>}, {pipeline_mode = #tpu.pipeline_mode<synchronous>, transform_indices = @transform_1, window_bounds = array<i64: 36, 8>}, {transform_indices = @transform_2, window_bounds = array<i64: 1, 16, 16, 8>}, {transform_indices = @transform_3, window_bounds = array<i64: 1, 1, 1, 8>}, {transform_indices = @transform_4, window_bounds = array<i64: 1, 1, 1, 8>}]} {
    %c16_i32 = arith.constant 16 : i32
    %0 = arith.muli %arg1, %c16_i32 : i32
    %1 = tpu.assume_multiple %0, 16 : i32
    %c0 = arith.constant 0 : index
    %2 = arith.index_cast %1 : i32 to index
    %c0_0 = arith.constant 0 : index
    %c0_1 = arith.constant 0 : index
    %3 = vector.load %arg2[%c0, %2, %c0_0, %c0_1] : memref<1x16x16x4xbf16, #tpu.memory_space<vmem>>, vector<1x16x16x4xbf16>
    %4 = vector.shape_cast %3 : vector<1x16x16x4xbf16> to vector<16x16x4xbf16>
    %c1_i32 = arith.constant 1 : i32
    %5 = arith.subi %1, %c1_i32 : i32
    %c0_i32 = arith.constant 0 : i32
    %6 = arith.maxsi %5, %c0_i32 : i32
    %c0_2 = arith.constant 0 : index
    %7 = arith.index_cast %6 : i32 to index
    %c0_3 = arith.constant 0 : index
    %c0_4 = arith.constant 0 : index
    %8 = vector.load %arg2[%c0_2, %7, %c0_3, %c0_4] : memref<1x16x16x4xbf16, #tpu.memory_space<vmem>>, vector<1x1x16x4xbf16>
    %9 = vector.shape_cast %8 : vector<1x1x16x4xbf16> to vector<1x16x4xbf16>
    %c16_i32_5 = arith.constant 16 : i32
    %10 = arith.addi %1, %c16_i32_5 : i32
    %c15_i32 = arith.constant 15 : i32
    %11 = arith.minsi %10, %c15_i32 : i32
    %c0_6 = arith.constant 0 : index
    %12 = arith.index_cast %11 : i32 to index
    %c0_7 = arith.constant 0 : index
    %c0_8 = arith.constant 0 : index
    %13 = vector.load %arg2[%c0_6, %12, %c0_7, %c0_8] : memref<1x16x16x4xbf16, #tpu.memory_space<vmem>>, vector<1x1x16x4xbf16>
    %14 = vector.shape_cast %13 : vector<1x1x16x4xbf16> to vector<1x16x4xbf16>
    %c0_i32_9 = arith.constant 0 : i32
    %15 = arith.cmpi sgt, %arg1, %c0_i32_9 : i32
    %cst = arith.constant 0.000000e+00 : bf16
    %16 = vector.broadcast %cst : bf16 to vector<1x16x4xbf16>
    %17 = arith.select %15, %9, %16 : vector<1x16x4xbf16>
    %c1_i32_10 = arith.constant 1 : i32
    %18 = arith.addi %arg1, %c1_i32_10 : i32
    %c1_i32_11 = arith.constant 1 : i32
    %19 = arith.cmpi slt, %18, %c1_i32_11 : i32
    %cst_12 = arith.constant 0.000000e+00 : bf16
    %20 = vector.broadcast %cst_12 : bf16 to vector<1x16x4xbf16>
    %21 = arith.select %19, %14, %20 : vector<1x16x4xbf16>
    %22 = tpu.concatenate %17, %4, %21 in 0 : vector<1x16x4xbf16>, vector<16x16x4xbf16>, vector<1x16x4xbf16> -> vector<18x16x4xbf16>
    %cst_13 = arith.constant 0.000000e+00 : bf16
    %23 = vector.broadcast %cst_13 : bf16 to vector<18x1x4xbf16>
    %24 = vector.extract_strided_slice %22 {offsets = [0, 0, 0], sizes = [18, 15, 4], strides = [1, 1, 1]} : vector<18x16x4xbf16> to vector<18x15x4xbf16>
    %25 = tpu.concatenate %23, %24 in 1 : vector<18x1x4xbf16>, vector<18x15x4xbf16> -> vector<18x16x4xbf16>
    %26 = vector.extract_strided_slice %22 {offsets = [0, 1, 0], sizes = [18, 15, 4], strides = [1, 1, 1]} : vector<18x16x4xbf16> to vector<18x15x4xbf16>
    %27 = tpu.concatenate %26, %23 in 1 : vector<18x15x4xbf16>, vector<18x1x4xbf16> -> vector<18x16x4xbf16>
    %28 = vector.extract_strided_slice %25 {offsets = [0, 0, 0], sizes = [16, 16, 4], strides = [1, 1, 1]} : vector<18x16x4xbf16> to vector<16x16x4xbf16>
    %29 = vector.extract_strided_slice %22 {offsets = [0, 0, 0], sizes = [16, 16, 4], strides = [1, 1, 1]} : vector<18x16x4xbf16> to vector<16x16x4xbf16>
    %30 = vector.extract_strided_slice %27 {offsets = [0, 0, 0], sizes = [16, 16, 4], strides = [1, 1, 1]} : vector<18x16x4xbf16> to vector<16x16x4xbf16>
    %31 = vector.extract_strided_slice %25 {offsets = [1, 0, 0], sizes = [16, 16, 4], strides = [1, 1, 1]} : vector<18x16x4xbf16> to vector<16x16x4xbf16>
    %32 = vector.extract_strided_slice %22 {offsets = [1, 0, 0], sizes = [16, 16, 4], strides = [1, 1, 1]} : vector<18x16x4xbf16> to vector<16x16x4xbf16>
    %33 = vector.extract_strided_slice %27 {offsets = [1, 0, 0], sizes = [16, 16, 4], strides = [1, 1, 1]} : vector<18x16x4xbf16> to vector<16x16x4xbf16>
    %34 = vector.extract_strided_slice %25 {offsets = [2, 0, 0], sizes = [16, 16, 4], strides = [1, 1, 1]} : vector<18x16x4xbf16> to vector<16x16x4xbf16>
    %35 = vector.extract_strided_slice %22 {offsets = [2, 0, 0], sizes = [16, 16, 4], strides = [1, 1, 1]} : vector<18x16x4xbf16> to vector<16x16x4xbf16>
    %36 = vector.extract_strided_slice %27 {offsets = [2, 0, 0], sizes = [16, 16, 4], strides = [1, 1, 1]} : vector<18x16x4xbf16> to vector<16x16x4xbf16>
    %37 = tpu.concatenate %28, %29, %30, %31, %32, %33, %34, %35, %36 in 2 : vector<16x16x4xbf16>, vector<16x16x4xbf16>, vector<16x16x4xbf16>, vector<16x16x4xbf16>, vector<16x16x4xbf16>, vector<16x16x4xbf16>, vector<16x16x4xbf16>, vector<16x16x4xbf16>, vector<16x16x4xbf16> -> vector<16x16x36xbf16>
    %38 = vector.shape_cast %37 : vector<16x16x36xbf16> to vector<256x36xbf16>
    %c0_14 = arith.constant 0 : index
    %c0_15 = arith.constant 0 : index
    %39 = vector.load %arg3[%c0_14, %c0_15] : memref<36x8xbf16, #tpu.memory_space<vmem>>, vector<36x8xbf16>
    %cst_16 = arith.constant dense<0.000000e+00> : vector<256x8xf32>
    %40 = tpu.matmul %38, %39, %cst_16 {dimension_numbers = #tpu.dot_dimension_numbers<[1], [0], [0], [1], [0, 0, 1, 1], [], []>} : vector<256x36xbf16>, vector<36x8xbf16>, vector<256x8xf32> -> vector<256x8xf32>
    %41 = vector.shape_cast %40 : vector<256x8xf32> to vector<1x16x16x8xf32>
    %42 = arith.truncf %41 : vector<1x16x16x8xf32> to vector<1x16x16x8xbf16>
    %c0_17 = arith.constant 0 : index
    %c0_18 = arith.constant 0 : index
    %c0_19 = arith.constant 0 : index
    %c0_20 = arith.constant 0 : index
    %43 = vector.load %arg4[%c0_17, %c0_18, %c0_19, %c0_20] : memref<1x16x16x8xbf16, #tpu.memory_space<vmem>>, vector<1x16x16x8xbf16>
    tpu.vector_store %arg4[%c0_17, %c0_18, %c0_19, %c0_20], %42 {strides = array<i32>} : memref<1x16x16x8xbf16, #tpu.memory_space<vmem>>, vector<1x16x16x8xbf16>,
    %cst_21 = arith.constant dense<0.000000e+00> : vector<8xf32>
    %44 = vector.multi_reduction <add>, %40, %cst_21 [0] : vector<256x8xf32> to vector<8xf32>
    %45 = vector.shape_cast %44 : vector<8xf32> to vector<1x1x1x8xf32>
    %c0_22 = arith.constant 0 : index
    %c0_23 = arith.constant 0 : index
    %c0_24 = arith.constant 0 : index
    %c0_25 = arith.constant 0 : index
    %46 = vector.load %arg5[%c0_22, %c0_23, %c0_24, %c0_25] : memref<1x1x1x8xf32, #tpu.memory_space<vmem>>, vector<1x1x1x8xf32>
    tpu.vector_store %arg5[%c0_22, %c0_23, %c0_24, %c0_25], %45 {strides = array<i32>} : memref<1x1x1x8xf32, #tpu.memory_space<vmem>>, vector<1x1x1x8xf32>,
    %47 = arith.mulf %40, %40 : vector<256x8xf32>
    %cst_26 = arith.constant dense<0.000000e+00> : vector<8xf32>
    %48 = vector.multi_reduction <add>, %47, %cst_26 [0] : vector<256x8xf32> to vector<8xf32>
    %49 = vector.shape_cast %48 : vector<8xf32> to vector<1x1x1x8xf32>
    %c0_27 = arith.constant 0 : index
    %c0_28 = arith.constant 0 : index
    %c0_29 = arith.constant 0 : index
    %c0_30 = arith.constant 0 : index
    %50 = vector.load %arg6[%c0_27, %c0_28, %c0_29, %c0_30] : memref<1x1x1x8xf32, #tpu.memory_space<vmem>>, vector<1x1x1x8xf32>
    tpu.vector_store %arg6[%c0_27, %c0_28, %c0_29, %c0_30], %49 {strides = array<i32>} : memref<1x1x1x8xf32, #tpu.memory_space<vmem>>, vector<1x1x1x8xf32>,
    return
  }
  func.func @transform_0(%arg0: i32, %arg1: i32) -> (i32, i32, i32, i32) {
    %c0_i32 = arith.constant 0 : i32
    %c0_i32_0 = arith.constant 0 : i32
    %c0_i32_1 = arith.constant 0 : i32
    %c0_i32_2 = arith.constant 0 : i32
    return %arg0, %c0_i32, %c0_i32_0, %c0_i32_1 : i32, i32, i32, i32
  }
  func.func @transform_1(%arg0: i32, %arg1: i32) -> (i32, i32) {
    %c0_i32 = arith.constant 0 : i32
    %c0_i32_0 = arith.constant 0 : i32
    %c0_i32_1 = arith.constant 0 : i32
    return %c0_i32, %c0_i32_0 : i32, i32
  }
  func.func @transform_2(%arg0: i32, %arg1: i32) -> (i32, i32, i32, i32) {
    %c0_i32 = arith.constant 0 : i32
    %c0_i32_0 = arith.constant 0 : i32
    %c0_i32_1 = arith.constant 0 : i32
    return %arg0, %arg1, %c0_i32, %c0_i32_0 : i32, i32, i32, i32
  }
  func.func @transform_3(%arg0: i32, %arg1: i32) -> (i32, i32, i32, i32) {
    %c0_i32 = arith.constant 0 : i32
    %c0_i32_0 = arith.constant 0 : i32
    %c0_i32_1 = arith.constant 0 : i32
    return %arg0, %arg1, %c0_i32, %c0_i32_0 : i32, i32, i32, i32
  }
  func.func @transform_4(%arg0: i32, %arg1: i32) -> (i32, i32, i32, i32) {
    %c0_i32 = arith.constant 0 : i32
    %c0_i32_0 = arith.constant 0 : i32
    %c0_i32_1 = arith.constant 0 : i32
    return %arg0, %arg1, %c0_i32, %c0_i32_0 : i32, i32, i32, i32
  }
}

</mosaic_0001>

<llo_original>
// kernel: double_conv.5
$region0: #{double_conv.5}
  #allocation0 [shape = 'u32[]', space=smem, size = 0x4, offset = 0x4, fixed_abs, tag = 'smem constant byte address 0x4 - core index']
  #allocation1 [shape = 'u32[144,128]{1,0:T(1,128)}', space=vmem, size = 0x12000, scoped, tag = 'internal scratch']
  %s0 = inlined_call_operand.vmem [shape: bf16[2,16,16,8], index: 0, kind: input, shape index: {}]
  %s1 = inlined_call_operand.vmem [shape: f32[1,8], index: 1, kind: input, shape index: {}]
  %s2 = inlined_call_operand.vmem [shape: f32[1,8], index: 2, kind: input, shape index: {}]
  %s3 = inlined_call_operand.vmem [shape: f32[2,16,16,8], index: 3, kind: output, shape index: {}]
  %s4 = sld [smem:[#allocation0]]
  $region45: #{double_conv.5} parent=0
    _
  %s6 = ssub.s32 1, %s4
  %s7 = scalar_select 0, %s6, %s4
  loop: start=0, step=1, limit=4
  $region2: #{double_conv.5} parent=0 // loop_pre_header
    _
  $region3: #{double_conv.5} parent=0 // loop_header
    %s9 = sphi 0, %s13
    %p10 = scmp.ge.s32.totalorder %s9, 4
    %s16 = sphi 0, %s28
    %s17 = sphi 0, %s24
    %s18 = sphi 0, %s16
    %s19 = sphi 0, %s17
    %s20 = sphi 0, %s18
    %s21 = sphi 0, %s19
    %s33 = sphi 0, %s35
    %s36 = sphi 0, %s33
    %s37 = sphi 0, %s36
    %s53 = sphi 0, %s37
    %s57 = sphi 0, %s57
    %s59 = sphi 0, %s57
    %s60 = sphi 0, %s59
    %s74 = sphi 0, %s60
    %s78 = sphi 0, %s78
    %s80 = sphi 0, %s78
    %s81 = sphi 0, %s80
    %s95 = sphi 0, %s81
    %s103 = sphi 0, %s105
    %s106 = sphi 0, %s103
    %s107 = sphi 0, %s106
    %s123 = sphi 0, %s107
  $region4: #{double_conv.5} parent=0 // loop_header_branch
    %12 = sbr.rel (%p10) target = $region8
  $region5: #{double_conv.5} parent=0 // loop_body
    %s14 = ssub.s32 %s9, 1
    %s15 = ssub.s32 %s9, 2
    %s22 = sadd.s32 1, %s17
    %p23 = scmp.ge.s32.totalorder %s22, 1
    %s24 = scalar_select %p23, 0, %s22
    %s25 = sadd.s32 1, %s16
    %s26 = scalar_select %p23, %s25, %s16
    %p27 = scmp.ge.s32.totalorder %s26, 2
    %s28 = scalar_select %p27, 0, %s26
    %s29 = ssub.s32 %s16, %s28
    %s30 = ssub.s32 %s17, %s24
    %s31 = sor.u32 %s29, %s30
    %p32 = scmp.eq.s32.totalorder %s31, 0
    %s34 = sadd.s32 %s33, 1
    %s35 = scalar_select %p32, %s33, %s34
    %p38 = pneg %p32
    %p39 = scmp.eq.s32.totalorder %s9, 1
    %p40 = por %p38, %p39
    %p41 = scmp.ne.s32.totalorder %s33, %s36
    %p42 = scmp.eq.s32.totalorder %s9, 0
    %p43 = por %p41, %p42
    %p44 = scmp.ne.s32.totalorder %s33, %s36
    %p45 = scmp.eq.s32.totalorder %s14, 1
    %p46 = por %p44, %p45
    %p47 = scmp.ne.s32.totalorder %s36, %s37
    %p48 = scmp.eq.s32.totalorder %s14, 0
    %p49 = por %p47, %p48
    %p50 = scmp.ne.s32.totalorder %s36, %s37
    %p51 = scmp.eq.s32.totalorder %s15, 1
    %p52 = por %p50, %p51
    %p54 = scmp.ne.s32.totalorder %s37, %s53
    %p55 = scmp.eq.s32.totalorder %s15, 0
    %p56 = por %p54, %p55
    %s58 = sadd.s32 %s57, 1
    %p61 = scmp.eq.s32.totalorder %s9, 1
    %p62 = scmp.ne.s32.totalorder %s57, %s59
    %p63 = scmp.eq.s32.totalorder %s9, 0
    %p64 = por %p62, %p63
    %p65 = scmp.ne.s32.totalorder %s57, %s59
    %p66 = scmp.eq.s32.totalorder %s14, 1
    %p67 = por %p65, %p66
    %p68 = scmp.ne.s32.totalorder %s59, %s60
    %p69 = scmp.eq.s32.totalorder %s14, 0
    %p70 = por %p68, %p69
    %p71 = scmp.ne.s32.totalorder %s59, %s60
    %p72 = scmp.eq.s32.totalorder %s15, 1
    %p73 = por %p71, %p72
    %p75 = scmp.ne.s32.totalorder %s60, %s74
    %p76 = scmp.eq.s32.totalorder %s15, 0
    %p77 = por %p75, %p76
    %s79 = sadd.s32 %s78, 1
    %p82 = scmp.eq.s32.totalorder %s9, 1
    %p83 = scmp.ne.s32.totalorder %s78, %s80
    %p84 = scmp.eq.s32.totalorder %s9, 0
    %p85 = por %p83, %p84
    %p86 = scmp.ne.s32.totalorder %s78, %s80
    %p87 = scmp.eq.s32.totalorder %s14, 1
    %p88 = por %p86, %p87
    %p89 = scmp.ne.s32.totalorder %s80, %s81
    %p90 = scmp.eq.s32.totalorder %s14, 0
    %p91 = por %p89, %p90
    %p92 = scmp.ne.s32.totalorder %s80, %s81
    %p93 = scmp.eq.s32.totalorder %s15, 1
    %p94 = por %p92, %p93
    %p96 = scmp.ne.s32.totalorder %s81, %s95
    %p97 = scmp.eq.s32.totalorder %s15, 0
    %p98 = por %p96, %p97
    %s99 = ssub.s32 %s16, %s28
    %s100 = ssub.s32 %s17, %s24
    %s101 = sor.u32 %s99, %s100
    %p102 = scmp.eq.s32.totalorder %s101, 0
    %s104 = sadd.s32 %s103, 1
    %s105 = scalar_select %p102, %s103, %s104
    %p108 = pneg %p102
    %p109 = scmp.eq.s32.totalorder %s9, 1
    %p110 = por %p108, %p109
    %p111 = scmp.ne.s32.totalorder %s103, %s106
    %p112 = scmp.eq.s32.totalorder %s9, 0
    %p113 = por %p111, %p112
    %p114 = scmp.ne.s32.totalorder %s103, %s106
    %p115 = scmp.eq.s32.totalorder %s14, 1
    %p116 = por %p114, %p115
    %p117 = scmp.ne.s32.totalorder %s106, %s107
    %p118 = scmp.eq.s32.totalorder %s14, 0
    %p119 = por %p117, %p118
    %p120 = scmp.ne.s32.totalorder %s106, %s107
    %p121 = scmp.eq.s32.totalorder %s15, 1
    %p122 = por %p120, %p121
    %p124 = scmp.ne.s32.totalorder %s107, %s123
    %p125 = scmp.eq.s32.totalorder %s15, 0
    %p126 = por %p124, %p125
    %p127 = scmp.le.s32.totalorder 1, %s9
    %p128 = scmp.lt.s32.totalorder %s9, 3
    %p129 = pnand %p127, %p128
    %p130 = pneg %p129
    // Predicated region
    $region9: #{double_conv.5} parent=5 // pred_check
      _
    $region10: #{double_conv.5} parent=5 // pred_check_branch
      %132 = sbr.rel (%p129) target = $region12
    $region11: #{double_conv.5} parent=5 // pred_region
      %s133 = ssub.s32 %s9, 1
      // Predicated region
      $region13: #{double_conv.5} parent=11 // pred_check
        %p134 = pneg %p70
      $region14: #{double_conv.5} parent=11 // pred_check_branch
        %136 = sbr.rel (%p134) target = $region16
      $region15: #{double_conv.5} parent=11 // pred_region
        _
      $region16: #{double_conv.5} parent=11 // pred_fallthru
        _
      // Predicated region
      $region17: #{double_conv.5} parent=11 // pred_check
        %p137 = pneg %p91
      $region18: #{double_conv.5} parent=11 // pred_check_branch
        %139 = sbr.rel (%p137) target = $region20
      $region19: #{double_conv.5} parent=11 // pred_region
        _
      $region20: #{double_conv.5} parent=11 // pred_fallthru
        _
    $region12: #{double_conv.5} parent=5 // pred_fallthru
      _
    %p140 = scmp.lt.s32.totalorder %s9, 2
    // Predicated region
    $region21: #{double_conv.5} parent=5 // pred_check
      %p141 = pneg %p140
    $region22: #{double_conv.5} parent=5 // pred_check_branch
      %143 = sbr.rel (%p141) target = $region24
    $region23: #{double_conv.5} parent=5 // pred_region
      // Predicated region
      $region25: #{double_conv.5} parent=23 // pred_check
        %p144 = pneg %p43
      $region26: #{double_conv.5} parent=23 // pred_check_branch
        %146 = sbr.rel (%p144) target = $region28
      $region27: #{double_conv.5} parent=23 // pred_region
        %s147 = smul.u32 16, %s17
        %p148 = scmp.lt.s32.totalorder %s16, 1
        %s149 = scalar_select %p148, %s16, 1
        %p150 = scmp.lt.s32.totalorder %s147, 15
        %s151 = scalar_select %p150, %s147, 15
        %s152 = smul.addr %s151, 2
        %s153 = smul.addr %s149, 32
        %s154 = sadd.s32 %s152, %s153
        %s155 = smul.addr %s154, 4
        %s156 = scalar_lea.vmem %s0, %s155
        %s157 = smul.u32 16, %s17
      $region28: #{double_conv.5} parent=23 // pred_fallthru
        _
    $region24: #{double_conv.5} parent=5 // pred_fallthru
      _
    %p158 = scmp.le.s32.totalorder 1, %s9
    %p159 = scmp.lt.s32.totalorder %s9, 3
    %p160 = pnand %p158, %p159
    %p161 = pneg %p160
    // Predicated region
    $region29: #{double_conv.5} parent=5 // pred_check
      _
    $region30: #{double_conv.5} parent=5 // pred_check_branch
      %163 = sbr.rel (%p160) target = $region32
    $region31: #{double_conv.5} parent=5 // pred_region
      %s164 = ssub.s32 %s9, 1
      %s165 = smul.u32 16, %s19
      %p166 = scmp.lt.s32.totalorder %s18, 1
      %s167 = scalar_select %p166, %s18, 1
      %p168 = scmp.lt.s32.totalorder %s165, 15
      %s169 = scalar_select %p168, %s165, 15
      %s170 = smul.addr %s169, 2
      %s171 = smul.addr %s167, 32
      %s172 = sadd.s32 %s170, %s171
      %s173 = smul.addr %s172, 4
      %s174 = scalar_lea.vmem %s0, %s173
      %p175 = pneg %p49
      %p176 = pneg %p46
      %p177 = pneg %p70
      %p178 = pneg %p67
      %p179 = pneg %p91
      %p180 = pneg %p88
      %p181 = pneg %p119
      %p182 = pneg %p116
      %s183 = smul.u32 16, %s19
      %p184 = scmp.lt.s32.totalorder %s18, 1
      %s185 = scalar_select %p184, %s18, 1
      %p186 = scmp.lt.s32.totalorder %s183, 15
      %s187 = scalar_select %p186, %s183, 15
      %s188 = smul.addr %s187, 2
      %s189 = smul.addr %s185, 32
      %s190 = sadd.s32 %s188, %s189
      %s191 = smul.addr %s190, 8
      %s192 = scalar_lea.vmem %s3, %s191
      %s193 = smul.u32 16, %s19
      %p194 = scmp.lt.s32.totalorder %s18, 1
      %s195 = scalar_select %p194, %s18, 1
      %p196 = scmp.lt.s32.totalorder %s193, 15
      %s197 = scalar_select %p196, %s193, 15
      %s198 = smul.addr %s197, 2
      %s199 = smul.addr %s195, 32
      %s200 = sadd.s32 %s198, %s199
      %s201 = smul.addr %s200, 4
      %s202 = scalar_lea.vmem %s0, %s201
      %s203 = smul.u32 16, %s19
      %s204 = smul.u32 16, %s19
      %p205 = scmp.lt.s32.totalorder %s18, 1
      %s206 = scalar_select %p205, %s18, 1
      %p207 = scmp.lt.s32.totalorder %s204, 15
      %s208 = scalar_select %p207, %s204, 15
      %s209 = smul.addr %s208, 2
      %s210 = smul.addr %s206, 32
      %s211 = sadd.s32 %s209, %s210
      %s212 = smul.addr %s211, 8
      %s213 = scalar_lea.vmem %s3, %s212
      %s214 = smul.u32 16, %s19
      %v215 = vld [vmem:[%s1] sm:$0x1]
      %v216 = vld [vmem:[%s2] sm:$0x1]
      %v217 = vld [vmem:[%s202] sm:$0xf]
      %v218 = vld [vmem:[%s202 + $0x4] sm:$0xf]
      %v219 = vld [vmem:[%s202 + $0x8] sm:$0xf]
      %v220 = vld [vmem:[%s202 + $0xc] sm:$0xf]
      %v221 = vld [vmem:[%s202 + $0x10] sm:$0xf]
      %v222 = vld [vmem:[%s202 + $0x14] sm:$0xf]
      %v223 = vld [vmem:[%s202 + $0x18] sm:$0xf]
      %v224 = vld [vmem:[%s202 + $0x1c] sm:$0xf]
      %v225 = vld [vmem:[%s202 + $0x20] sm:$0xf]
      %v226 = vld [vmem:[%s202 + $0x24] sm:$0xf]
      %v227 = vld [vmem:[%s202 + $0x28] sm:$0xf]
      %v228 = vld [vmem:[%s202 + $0x2c] sm:$0xf]
      %v229 = vld [vmem:[%s202 + $0x30] sm:$0xf]
      %v230 = vld [vmem:[%s202 + $0x34] sm:$0xf]
      %v231 = vld [vmem:[%s202 + $0x38] sm:$0xf]
      %v232 = vld [vmem:[%s202 + $0x3c] sm:$0xf]
      %v233 = vld [vmem:[%s202 + $0x40] sm:$0xf]
      %v234 = vld [vmem:[%s202 + $0x44] sm:$0xf]
      %v235 = vld [vmem:[%s202 + $0x48] sm:$0xf]
      %v236 = vld [vmem:[%s202 + $0x4c] sm:$0xf]
      %v237 = vld [vmem:[%s202 + $0x50] sm:$0xf]
      %v238 = vld [vmem:[%s202 + $0x54] sm:$0xf]
      %v239 = vld [vmem:[%s202 + $0x58] sm:$0xf]
      %v240 = vld [vmem:[%s202 + $0x5c] sm:$0xf]
      %v241 = vld [vmem:[%s202 + $0x60] sm:$0xf]
      %v242 = vld [vmem:[%s202 + $0x64] sm:$0xf]
      %v243 = vld [vmem:[%s202 + $0x68] sm:$0xf]
      %v244 = vld [vmem:[%s202 + $0x6c] sm:$0xf]
      %v245 = vld [vmem:[%s202 + $0x70] sm:$0xf]
      %v246 = vld [vmem:[%s202 + $0x74] sm:$0xf]
      %v247 = vld [vmem:[%s202 + $0x78] sm:$0xf]
      %v248 = vld [vmem:[%s202 + $0x7c] sm:$0xf]
      %v249 = vunpack.c.l.bf16 %v217
      %v250 = vunpack.c.l.bf16 %v218
      %v251 = vunpack.c.l.bf16 %v219
      %v252 = vunpack.c.l.bf16 %v220
      %v253 = vunpack.c.l.bf16 %v221
      %v254 = vunpack.c.l.bf16 %v222
      %v255 = vunpack.c.l.bf16 %v223
      %v256 = vunpack.c.l.bf16 %v224
      %v257 = vunpack.c.l.bf16 %v225
      %v258 = vunpack.c.l.bf16 %v226
      %v259 = vunpack.c.l.bf16 %v227
      %v260 = vunpack.c.l.bf16 %v228
      %v261 = vunpack.c.l.bf16 %v229
      %v262 = vunpack.c.l.bf16 %v230
      %v263 = vunpack.c.l.bf16 %v231
      %v264 = vunpack.c.l.bf16 %v232
      %v265 = vunpack.c.l.bf16 %v233
      %v266 = vunpack.c.l.bf16 %v234
      %v267 = vunpack.c.l.bf16 %v235
      %v268 = vunpack.c.l.bf16 %v236
      %v269 = vunpack.c.l.bf16 %v237
      %v270 = vunpack.c.l.bf16 %v238
      %v271 = vunpack.c.l.bf16 %v239
      %v272 = vunpack.c.l.bf16 %v240
      %v273 = vunpack.c.l.bf16 %v241
      %v274 = vunpack.c.l.bf16 %v242
      %v275 = vunpack.c.l.bf16 %v243
      %v276 = vunpack.c.l.bf16 %v244
      %v277 = vunpack.c.l.bf16 %v245
      %v278 = vunpack.c.l.bf16 %v246
      %v279 = vunpack.c.l.bf16 %v247
      %v280 = vunpack.c.l.bf16 %v248
      %v282 = vlaneseq
      %v283 = vshrl.u32 %v282, 7
      %v284 = vsub.s32 0, %v283
      %v285 = vrot.slane %v215, %v284
      %v287 = vmul.f32 %v249, %v285
      %v288 = vmul.f32 %v250, %v285
      %v289 = vmul.f32 %v251, %v285
      %v290 = vmul.f32 %v252, %v285
      %v291 = vmul.f32 %v253, %v285
      %v292 = vmul.f32 %v254, %v285
      %v293 = vmul.f32 %v255, %v285
      %v294 = vmul.f32 %v256, %v285
      %v295 = vmul.f32 %v257, %v285
      %v296 = vmul.f32 %v258, %v285
      %v297 = vmul.f32 %v259, %v285
      %v298 = vmul.f32 %v260, %v285
      %v299 = vmul.f32 %v261, %v285
      %v300 = vmul.f32 %v262, %v285
      %v301 = vmul.f32 %v263, %v285
      %v302 = vmul.f32 %v264, %v285
      %v303 = vmul.f32 %v265, %v285
      %v304 = vmul.f32 %v266, %v285
      %v305 = vmul.f32 %v267, %v285
      %v306 = vmul.f32 %v268, %v285
      %v307 = vmul.f32 %v269, %v285
      %v308 = vmul.f32 %v270, %v285
      %v309 = vmul.f32 %v271, %v285
      %v310 = vmul.f32 %v272, %v285
      %v311 = vmul.f32 %v273, %v285
      %v312 = vmul.f32 %v274, %v285
      %v313 = vmul.f32 %v275, %v285
      %v314 = vmul.f32 %v276, %v285
      %v315 = vmul.f32 %v277, %v285
      %v316 = vmul.f32 %v278, %v285
      %v317 = vmul.f32 %v279, %v285
      %v318 = vmul.f32 %v280, %v285
      %v320 = vlaneseq
      %v321 = vshrl.u32 %v320, 7
      %v322 = vsub.s32 0, %v321
      %v323 = vrot.slane %v216, %v322
      %v325 = vadd.f32 %v287, %v323
      %v326 = vadd.f32 %v288, %v323
      %v327 = vadd.f32 %v289, %v323
      %v328 = vadd.f32 %v290, %v323
      %v329 = vadd.f32 %v291, %v323
      %v330 = vadd.f32 %v292, %v323
      %v331 = vadd.f32 %v293, %v323
      %v332 = vadd.f32 %v294, %v323
      %v333 = vadd.f32 %v295, %v323
      %v334 = vadd.f32 %v296, %v323
      %v335 = vadd.f32 %v297, %v323
      %v336 = vadd.f32 %v298, %v323
      %v337 = vadd.f32 %v299, %v323
      %v338 = vadd.f32 %v300, %v323
      %v339 = vadd.f32 %v301, %v323
      %v340 = vadd.f32 %v302, %v323
      %v341 = vadd.f32 %v303, %v323
      %v342 = vadd.f32 %v304, %v323
      %v343 = vadd.f32 %v305, %v323
      %v344 = vadd.f32 %v306, %v323
      %v345 = vadd.f32 %v307, %v323
      %v346 = vadd.f32 %v308, %v323
      %v347 = vadd.f32 %v309, %v323
      %v348 = vadd.f32 %v310, %v323
      %v349 = vadd.f32 %v311, %v323
      %v350 = vadd.f32 %v312, %v323
      %v351 = vadd.f32 %v313, %v323
      %v352 = vadd.f32 %v314, %v323
      %v353 = vadd.f32 %v315, %v323
      %v354 = vadd.f32 %v316, %v323
      %v355 = vadd.f32 %v317, %v323
      %v356 = vadd.f32 %v318, %v323
      %v357 = vmax.f32 %v325, 0.0
      %v358 = vmax.f32 %v326, 0.0
      %v359 = vmax.f32 %v327, 0.0
      %v360 = vmax.f32 %v328, 0.0
      %v361 = vmax.f32 %v329, 0.0
      %v362 = vmax.f32 %v330, 0.0
      %v363 = vmax.f32 %v331, 0.0
      %v364 = vmax.f32 %v332, 0.0
      %v365 = vmax.f32 %v333, 0.0
      %v366 = vmax.f32 %v334, 0.0
      %v367 = vmax.f32 %v335, 0.0
      %v368 = vmax.f32 %v336, 0.0
      %v369 = vmax.f32 %v337, 0.0
      %v370 = vmax.f32 %v338, 0.0
      %v371 = vmax.f32 %v339, 0.0
      %v372 = vmax.f32 %v340, 0.0
      %v373 = vmax.f32 %v341, 0.0
      %v374 = vmax.f32 %v342, 0.0
      %v375 = vmax.f32 %v343, 0.0
      %v376 = vmax.f32 %v344, 0.0
      %v377 = vmax.f32 %v345, 0.0
      %v378 = vmax.f32 %v346, 0.0
      %v379 = vmax.f32 %v347, 0.0
      %v380 = vmax.f32 %v348, 0.0
      %v381 = vmax.f32 %v349, 0.0
      %v382 = vmax.f32 %v350, 0.0
      %v383 = vmax.f32 %v351, 0.0
      %v384 = vmax.f32 %v352, 0.0
      %v385 = vmax.f32 %v353, 0.0
      %v386 = vmax.f32 %v354, 0.0
      %v387 = vmax.f32 %v355, 0.0
      %v388 = vmax.f32 %v356, 0.0
      %vm389 = vcmask 64512
      %390 = vst.msk [vmem:[%s213] sm:$0xff] %vm389, %v357
      %391 = vst.msk [vmem:[%s213 + $0x8] sm:$0xff] %vm389, %v358
      %392 = vst.msk [vmem:[%s213 + $0x10] sm:$0xff] %vm389, %v359
      %393 = vst.msk [vmem:[%s213 + $0x18] sm:$0xff] %vm389, %v360
      %394 = vst.msk [vmem:[%s213 + $0x20] sm:$0xff] %vm389, %v361
      %395 = vst.msk [vmem:[%s213 + $0x28] sm:$0xff] %vm389, %v362
      %396 = vst.msk [vmem:[%s213 + $0x30] sm:$0xff] %vm389, %v363
      %397 = vst.msk [vmem:[%s213 + $0x38] sm:$0xff] %vm389, %v364
      %398 = vst.msk [vmem:[%s213 + $0x40] sm:$0xff] %vm389, %v365
      %399 = vst.msk [vmem:[%s213 + $0x48] sm:$0xff] %vm389, %v366
      %400 = vst.msk [vmem:[%s213 + $0x50] sm:$0xff] %vm389, %v367
      %401 = vst.msk [vmem:[%s213 + $0x58] sm:$0xff] %vm389, %v368
      %402 = vst.msk [vmem:[%s213 + $0x60] sm:$0xff] %vm389, %v369
      %403 = vst.msk [vmem:[%s213 + $0x68] sm:$0xff] %vm389, %v370
      %404 = vst.msk [vmem:[%s213 + $0x70] sm:$0xff] %vm389, %v371
      %405 = vst.msk [vmem:[%s213 + $0x78] sm:$0xff] %vm389, %v372
      %406 = vst.msk [vmem:[%s213 + $0x80] sm:$0xff] %vm389, %v373
      %407 = vst.msk [vmem:[%s213 + $0x88] sm:$0xff] %vm389, %v374
      %408 = vst.msk [vmem:[%s213 + $0x90] sm:$0xff] %vm389, %v375
      %409 = vst.msk [vmem:[%s213 + $0x98] sm:$0xff] %vm389, %v376
      %410 = vst.msk [vmem:[%s213 + $0xa0] sm:$0xff] %vm389, %v377
      %411 = vst.msk [vmem:[%s213 + $0xa8] sm:$0xff] %vm389, %v378
      %412 = vst.msk [vmem:[%s213 + $0xb0] sm:$0xff] %vm389, %v379
      %413 = vst.msk [vmem:[%s213 + $0xb8] sm:$0xff] %vm389, %v380
      %414 = vst.msk [vmem:[%s213 + $0xc0] sm:$0xff] %vm389, %v381
      %415 = vst.msk [vmem:[%s213 + $0xc8] sm:$0xff] %vm389, %v382
      %416 = vst.msk [vmem:[%s213 + $0xd0] sm:$0xff] %vm389, %v383
      %417 = vst.msk [vmem:[%s213 + $0xd8] sm:$0xff] %vm389, %v384
      %418 = vst.msk [vmem:[%s213 + $0xe0] sm:$0xff] %vm389, %v385
      %419 = vst.msk [vmem:[%s213 + $0xe8] sm:$0xff] %vm389, %v386
      %420 = vst.msk [vmem:[%s213 + $0xf0] sm:$0xff] %vm389, %v387
      %421 = vst.msk [vmem:[%s213 + $0xf8] sm:$0xff] %vm389, %v388
      %s422 = smul.u32 16, %s19
      %p423 = scmp.lt.s32.totalorder %s18, 1
      %s424 = scalar_select %p423, %s18, 1
      %p425 = scmp.lt.s32.totalorder %s422, 15
      %s426 = scalar_select %p425, %s422, 15
      %s427 = smul.addr %s426, 2
      %s428 = smul.addr %s424, 32
      %s429 = sadd.s32 %s427, %s428
      %s430 = smul.addr %s429, 8
      %s431 = scalar_lea.vmem %s3, %s430
      // Predicated region
      $region33: #{double_conv.5} parent=31 // pred_check
        %p432 = pneg %p116
      $region34: #{double_conv.5} parent=31 // pred_check_branch
        %434 = sbr.rel (%p432) target = $region36
      $region35: #{double_conv.5} parent=31 // pred_region
        %s435 = smul.u32 16, %s19
      $region36: #{double_conv.5} parent=31 // pred_fallthru
        _
    $region32: #{double_conv.5} parent=5 // pred_fallthru
      _
    %p436 = scmp.le.s32.totalorder 2, %s9
    // Predicated region
    $region37: #{double_conv.5} parent=5 // pred_check
      %p437 = pneg %p436
    $region38: #{double_conv.5} parent=5 // pred_check_branch
      %439 = sbr.rel (%p437) target = $region40
    $region39: #{double_conv.5} parent=5 // pred_region
      %s440 = ssub.s32 %s9, 2
      // Predicated region
      $region41: #{double_conv.5} parent=39 // pred_check
        %p441 = pneg %p122
      $region42: #{double_conv.5} parent=39 // pred_check_branch
        %443 = sbr.rel (%p441) target = $region44
      $region43: #{double_conv.5} parent=39 // pred_region
        %s444 = smul.u32 16, %s21
        %p445 = scmp.lt.s32.totalorder %s20, 1
        %s446 = scalar_select %p445, %s20, 1
        %p447 = scmp.lt.s32.totalorder %s444, 15
        %s448 = scalar_select %p447, %s444, 15
        %s449 = smul.addr %s448, 2
        %s450 = smul.addr %s446, 32
        %s451 = sadd.s32 %s449, %s450
        %s452 = smul.addr %s451, 8
        %s453 = scalar_lea.vmem %s3, %s452
      $region44: #{double_conv.5} parent=39 // pred_fallthru
        _
    $region40: #{double_conv.5} parent=5 // pred_fallthru
      _
  $region6: #{double_conv.5} parent=0 // loop_footer
    %s13 = sadd.s32 1, %s9
  $region7: #{double_conv.5} parent=0 // loop_footer_branch
    %8 = sbr.rel target = $region3
  $region8: #{double_conv.5} parent=0 // loop_exit
    _

// kernel: double_conv.3
$region0: #{double_conv.3}
  #allocation0 [shape = 'u32[]', space=smem, size = 0x4, offset = 0x4, fixed_abs, tag = 'smem constant byte address 0x4 - core index']
  #allocation1 [shape = 'u32[144,128]{1,0:T(1,128)}', space=vmem, size = 0x12000, scoped, tag = 'internal scratch']
  %s0 = inlined_call_operand.vmem [shape: bf16[2,16,16,4], index: 0, kind: input, shape index: {}]
  %s1 = inlined_call_operand.vmem [shape: bf16[36,8], index: 1, kind: input, shape index: {}]
  %s2 = inlined_call_operand.vmem [shape: bf16[2,16,16,8], index: 2, kind: output, shape index: {0}]
  %s3 = inlined_call_operand.vmem [shape: f32[2,1,1,8], index: 3, kind: output, shape index: {1}]
  %s4 = inlined_call_operand.vmem [shape: f32[2,1,1,8], index: 4, kind: output, shape index: {2}]
  %5 = xla_tuple %s2, %s3, %s4
  %s6 = sld [smem:[#allocation0]]
  $region57: #{double_conv.3} parent=0
    _
  %s8 = ssub.s32 1, %s6
  %s9 = scalar_select 0, %s8, %s6
  loop: start=0, step=1, limit=4
  $region2: #{double_conv.3} parent=0 // loop_pre_header
    _
  $region3: #{double_conv.3} parent=0 // loop_header
    %s11 = sphi 0, %s15
    %p12 = scmp.ge.s32.totalorder %s11, 4
    %s18 = sphi 0, %s30
    %s19 = sphi 0, %s26
    %s20 = sphi 0, %s18
    %s21 = sphi 0, %s19
    %s22 = sphi 0, %s20
    %s23 = sphi 0, %s21
    %s33 = sphi 0, %s35
    %s36 = sphi 0, %s33
    %s37 = sphi 0, %s36
    %s53 = sphi 0, %s37
    %s57 = sphi 0, %s57
    %s59 = sphi 0, %s57
    %s60 = sphi 0, %s59
    %s74 = sphi 0, %s60
    %s82 = sphi 0, %s84
    %s85 = sphi 0, %s82
    %s86 = sphi 0, %s85
    %s102 = sphi 0, %s86
    %s110 = sphi 0, %s112
    %s113 = sphi 0, %s110
    %s114 = sphi 0, %s113
    %s130 = sphi 0, %s114
    %s138 = sphi 0, %s140
    %s141 = sphi 0, %s138
    %s142 = sphi 0, %s141
    %s158 = sphi 0, %s142
  $region4: #{double_conv.3} parent=0 // loop_header_branch
    %14 = sbr.rel (%p12) target = $region8
  $region5: #{double_conv.3} parent=0 // loop_body
    %s16 = ssub.s32 %s11, 1
    %s17 = ssub.s32 %s11, 2
    %s24 = sadd.s32 1, %s19
    %p25 = scmp.ge.s32.totalorder %s24, 1
    %s26 = scalar_select %p25, 0, %s24
    %s27 = sadd.s32 1, %s18
    %s28 = scalar_select %p25, %s27, %s18
    %p29 = scmp.ge.s32.totalorder %s28, 2
    %s30 = scalar_select %p29, 0, %s28
    %s31 = ssub.s32 %s18, %s30
    %p32 = scmp.eq.s32.totalorder %s31, 0
    %s34 = sadd.s32 %s33, 1
    %s35 = scalar_select %p32, %s33, %s34
    %p38 = pneg %p32
    %p39 = scmp.eq.s32.totalorder %s11, 1
    %p40 = por %p38, %p39
    %p41 = scmp.ne.s32.totalorder %s33, %s36
    %p42 = scmp.eq.s32.totalorder %s11, 0
    %p43 = por %p41, %p42
    %p44 = scmp.ne.s32.totalorder %s33, %s36
    %p45 = scmp.eq.s32.totalorder %s16, 1
    %p46 = por %p44, %p45
    %p47 = scmp.ne.s32.totalorder %s36, %s37
    %p48 = scmp.eq.s32.totalorder %s16, 0
    %p49 = por %p47, %p48
    %p50 = scmp.ne.s32.totalorder %s36, %s37
    %p51 = scmp.eq.s32.totalorder %s17, 1
    %p52 = por %p50, %p51
    %p54 = scmp.ne.s32.totalorder %s37, %s53
    %p55 = scmp.eq.s32.totalorder %s17, 0
    %p56 = por %p54, %p55
    %s58 = sadd.s32 %s57, 1
    %p61 = scmp.eq.s32.totalorder %s11, 1
    %p62 = scmp.ne.s32.totalorder %s57, %s59
    %p63 = scmp.eq.s32.totalorder %s11, 0
    %p64 = por %p62, %p63
    %p65 = scmp.ne.s32.totalorder %s57, %s59
    %p66 = scmp.eq.s32.totalorder %s16, 1
    %p67 = por %p65, %p66
    %p68 = scmp.ne.s32.totalorder %s59, %s60
    %p69 = scmp.eq.s32.totalorder %s16, 0
    %p70 = por %p68, %p69
    %p71 = scmp.ne.s32.totalorder %s59, %s60
    %p72 = scmp.eq.s32.totalorder %s17, 1
    %p73 = por %p71, %p72
    %p75 = scmp.ne.s32.totalorder %s60, %s74
    %p76 = scmp.eq.s32.totalorder %s17, 0
    %p77 = por %p75, %p76
    %s78 = ssub.s32 %s18, %s30
    %s79 = ssub.s32 %s19, %s26
    %s80 = sor.u32 %s78, %s79
    %p81 = scmp.eq.s32.totalorder %s80, 0
    %s83 = sadd.s32 %s82, 1
    %s84 = scalar_select %p81, %s82, %s83
    %p87 = pneg %p81
    %p88 = scmp.eq.s32.totalorder %s11, 1
    %p89 = por %p87, %p88
    %p90 = scmp.ne.s32.totalorder %s82, %s85
    %p91 = scmp.eq.s32.totalorder %s11, 0
    %p92 = por %p90, %p91
    %p93 = scmp.ne.s32.totalorder %s82, %s85
    %p94 = scmp.eq.s32.totalorder %s16, 1
    %p95 = por %p93, %p94
    %p96 = scmp.ne.s32.totalorder %s85, %s86
    %p97 = scmp.eq.s32.totalorder %s16, 0
    %p98 = por %p96, %p97
    %p99 = scmp.ne.s32.totalorder %s85, %s86
    %p100 = scmp.eq.s32.totalorder %s17, 1
    %p101 = por %p99, %p100
    %p103 = scmp.ne.s32.totalorder %s86, %s102
    %p104 = scmp.eq.s32.totalorder %s17, 0
    %p105 = por %p103, %p104
    %s106 = ssub.s32 %s18, %s30
    %s107 = ssub.s32 %s19, %s26
    %s108 = sor.u32 %s106, %s107
    %p109 = scmp.eq.s32.totalorder %s108, 0
    %s111 = sadd.s32 %s110, 1
    %s112 = scalar_select %p109, %s110, %s111
    %p115 = pneg %p109
    %p116 = scmp.eq.s32.totalorder %s11, 1
    %p117 = por %p115, %p116
    %p118 = scmp.ne.s32.totalorder %s110, %s113
    %p119 = scmp.eq.s32.totalorder %s11, 0
    %p120 = por %p118, %p119
    %p121 = scmp.ne.s32.totalorder %s110, %s113
    %p122 = scmp.eq.s32.totalorder %s16, 1
    %p123 = por %p121, %p122
    %p124 = scmp.ne.s32.totalorder %s113, %s114
    %p125 = scmp.eq.s32.totalorder %s16, 0
    %p126 = por %p124, %p125
    %p127 = scmp.ne.s32.totalorder %s113, %s114
    %p128 = scmp.eq.s32.totalorder %s17, 1
    %p129 = por %p127, %p128
    %p131 = scmp.ne.s32.totalorder %s114, %s130
    %p132 = scmp.eq.s32.totalorder %s17, 0
    %p133 = por %p131, %p132
    %s134 = ssub.s32 %s18, %s30
    %s135 = ssub.s32 %s19, %s26
    %s136 = sor.u32 %s134, %s135
    %p137 = scmp.eq.s32.totalorder %s136, 0
    %s139 = sadd.s32 %s138, 1
    %s140 = scalar_select %p137, %s138, %s139
    %p143 = pneg %p137
    %p144 = scmp.eq.s32.totalorder %s11, 1
    %p145 = por %p143, %p144
    %p146 = scmp.ne.s32.totalorder %s138, %s141
    %p147 = scmp.eq.s32.totalorder %s11, 0
    %p148 = por %p146, %p147
    %p149 = scmp.ne.s32.totalorder %s138, %s141
    %p150 = scmp.eq.s32.totalorder %s16, 1
    %p151 = por %p149, %p150
    %p152 = scmp.ne.s32.totalorder %s141, %s142
    %p153 = scmp.eq.s32.totalorder %s16, 0
    %p154 = por %p152, %p153
    %p155 = scmp.ne.s32.totalorder %s141, %s142
    %p156 = scmp.eq.s32.totalorder %s17, 1
    %p157 = por %p155, %p156
    %p159 = scmp.ne.s32.totalorder %s142, %s158
    %p160 = scmp.eq.s32.totalorder %s17, 0
    %p161 = por %p159, %p160
    %p162 = scmp.le.s32.totalorder 1, %s11
    %p163 = scmp.lt.s32.totalorder %s11, 3
    %p164 = pnand %p162, %p163
    %p165 = pneg %p164
    // Predicated region
    $region9: #{double_conv.3} parent=5 // pred_check
      _
    $region10: #{double_conv.3} parent=5 // pred_check_branch
      %167 = sbr.rel (%p164) target = $region12
    $region11: #{double_conv.3} parent=5 // pred_region
      %s168 = ssub.s32 %s11, 1
      // Predicated region
      $region13: #{double_conv.3} parent=11 // pred_check
        %p169 = pneg %p70
      $region14: #{double_conv.3} parent=11 // pred_check_branch
        %171 = sbr.rel (%p169) target = $region16
      $region15: #{double_conv.3} parent=11 // pred_region
        _
      $region16: #{double_conv.3} parent=11 // pred_fallthru
        _
    $region12: #{double_conv.3} parent=5 // pred_fallthru
      _
    %p172 = scmp.lt.s32.totalorder %s11, 2
    // Predicated region
    $region17: #{double_conv.3} parent=5 // pred_check
      %p173 = pneg %p172
    $region18: #{double_conv.3} parent=5 // pred_check_branch
      %175 = sbr.rel (%p173) target = $region20
    $region19: #{double_conv.3} parent=5 // pred_region
      // Predicated region
      $region21: #{double_conv.3} parent=19 // pred_check
        %p176 = pneg %p43
      $region22: #{double_conv.3} parent=19 // pred_check_branch
        %178 = sbr.rel (%p176) target = $region24
      $region23: #{double_conv.3} parent=19 // pred_region
        %p179 = scmp.lt.s32.totalorder %s18, 1
        %s180 = scalar_select %p179, %s18, 1
        %s181 = smul.addr %s180, 32
        %s182 = smul.addr %s181, 4
        %s183 = scalar_lea.vmem %s0, %s182
      $region24: #{double_conv.3} parent=19 // pred_fallthru
        _
    $region20: #{double_conv.3} parent=5 // pred_fallthru
      _
    %p184 = scmp.le.s32.totalorder 1, %s11
    %p185 = scmp.lt.s32.totalorder %s11, 3
    %p186 = pnand %p184, %p185
    %p187 = pneg %p186
    // Predicated region
    $region25: #{double_conv.3} parent=5 // pred_check
      _
    $region26: #{double_conv.3} parent=5 // pred_check_branch
      %189 = sbr.rel (%p186) target = $region28
    $region27: #{double_conv.3} parent=5 // pred_region
      %s190 = ssub.s32 %s11, 1
      %p191 = scmp.lt.s32.totalorder %s20, 1
      %s192 = scalar_select %p191, %s20, 1
      %s193 = smul.addr %s192, 32
      %s194 = smul.addr %s193, 4
      %s195 = scalar_lea.vmem %s0, %s194
      %p196 = pneg %p49
      %p197 = pneg %p46
      %p198 = pneg %p70
      %p199 = pneg %p67
      %p200 = pneg %p98
      %p201 = pneg %p95
      %s202 = smul.u32 16, %s21
      %p203 = scmp.lt.s32.totalorder %s20, 1
      %s204 = scalar_select %p203, %s20, 1
      %p205 = scmp.lt.s32.totalorder %s202, 15
      %s206 = scalar_select %p205, %s202, 15
      %s207 = smul.addr %s206, 2
      %s208 = smul.addr %s204, 32
      %s209 = sadd.s32 %s207, %s208
      %s210 = smul.addr %s209, 4
      %s211 = scalar_lea.vmem %s2, %s210
      %p212 = pneg %p126
      %p213 = pneg %p123
      %p214 = scmp.lt.s32.totalorder %s20, 1
      %s215 = scalar_select %p214, %s20, 1
      %p216 = scmp.lt.s32.totalorder %s21, 0
      %s217 = scalar_select %p216, %s21, 0
      %s218 = sadd.s32 %s217, %s215
      %s219 = scalar_lea.vmem %s3, %s218
      %p220 = pneg %p154
      %p221 = pneg %p151
      %p222 = scmp.lt.s32.totalorder %s20, 1
      %s223 = scalar_select %p222, %s20, 1
      %p224 = scmp.lt.s32.totalorder %s21, 0
      %s225 = scalar_select %p224, %s21, 0
      %s226 = sadd.s32 %s225, %s223
      %s227 = scalar_lea.vmem %s4, %s226
      %p228 = scmp.lt.s32.totalorder %s20, 1
      %s229 = scalar_select %p228, %s20, 1
      %s230 = smul.addr %s229, 32
      %s231 = smul.addr %s230, 4
      %s232 = scalar_lea.vmem %s0, %s231
      %s233 = smul.u32 16, %s21
      %p234 = scmp.lt.s32.totalorder %s20, 1
      %s235 = scalar_select %p234, %s20, 1
      %p236 = scmp.lt.s32.totalorder %s233, 15
      %s237 = scalar_select %p236, %s233, 15
      %s238 = smul.addr %s237, 2
      %s239 = smul.addr %s235, 32
      %s240 = sadd.s32 %s238, %s239
      %s241 = smul.addr %s240, 4
      %s242 = scalar_lea.vmem %s2, %s241
      %s243 = smul.u32 16, %s21
      %p244 = scmp.lt.s32.totalorder %s20, 1
      %s245 = scalar_select %p244, %s20, 1
      %p246 = scmp.lt.s32.totalorder %s21, 0
      %s247 = scalar_select %p246, %s21, 0
      %s248 = sadd.s32 %s247, %s245
      %s249 = scalar_lea.vmem %s3, %s248
      %p250 = scmp.lt.s32.totalorder %s20, 1
      %s251 = scalar_select %p250, %s20, 1
      %p252 = scmp.lt.s32.totalorder %s21, 0
      %s253 = scalar_select %p252, %s21, 0
      %s254 = sadd.s32 %s253, %s251
      %s255 = scalar_lea.vmem %s4, %s254
      %s257 = smul.u32 %s21, 16
      %s258 = smul.u32 %s257, 2
      %s259 = smul.addr %s258, 4
      %s260 = scalar_lea.vmem %s232, %s259
      %v261 = vld [vmem:[%s260] sm:$0xf]
      %v262 = vld [vmem:[%s260 + $0x4] sm:$0xf]
      %v263 = vld [vmem:[%s260 + $0x8] sm:$0xf]
      %v264 = vld [vmem:[%s260 + $0xc] sm:$0xf]
      %v265 = vld [vmem:[%s260 + $0x10] sm:$0xf]
      %v266 = vld [vmem:[%s260 + $0x14] sm:$0xf]
      %v267 = vld [vmem:[%s260 + $0x18] sm:$0xf]
      %v268 = vld [vmem:[%s260 + $0x1c] sm:$0xf]
      %v269 = vld [vmem:[%s260 + $0x20] sm:$0xf]
      %v270 = vld [vmem:[%s260 + $0x24] sm:$0xf]
      %v271 = vld [vmem:[%s260 + $0x28] sm:$0xf]
      %v272 = vld [vmem:[%s260 + $0x2c] sm:$0xf]
      %v273 = vld [vmem:[%s260 + $0x30] sm:$0xf]
      %v274 = vld [vmem:[%s260 + $0x34] sm:$0xf]
      %v275 = vld [vmem:[%s260 + $0x38] sm:$0xf]
      %v276 = vld [vmem:[%s260 + $0x3c] sm:$0xf]
      %v277 = vld [vmem:[%s260 + $0x40] sm:$0xf]
      %v278 = vld [vmem:[%s260 + $0x44] sm:$0xf]
      %v279 = vld [vmem:[%s260 + $0x48] sm:$0xf]
      %v280 = vld [vmem:[%s260 + $0x4c] sm:$0xf]
      %v281 = vld [vmem:[%s260 + $0x50] sm:$0xf]
      %v282 = vld [vmem:[%s260 + $0x54] sm:$0xf]
      %v283 = vld [vmem:[%s260 + $0x58] sm:$0xf]
      %v284 = vld [vmem:[%s260 + $0x5c] sm:$0xf]
      %v285 = vld [vmem:[%s260 + $0x60] sm:$0xf]
      %v286 = vld [vmem:[%s260 + $0x64] sm:$0xf]
      %v287 = vld [vmem:[%s260 + $0x68] sm:$0xf]
      %v288 = vld [vmem:[%s260 + $0x6c] sm:$0xf]
      %v289 = vld [vmem:[%s260 + $0x70] sm:$0xf]
      %v290 = vld [vmem:[%s260 + $0x74] sm:$0xf]
      %v291 = vld [vmem:[%s260 + $0x78] sm:$0xf]
      %v292 = vld [vmem:[%s260 + $0x7c] sm:$0xf]
      %s293 = ssub.s32 %s257, 1
      %p294 = scmp.gt.s32.totalorder %s293, 0
      %s295 = scalar_select %p294, %s293, 0
      %s296 = smul.u32 %s295, 2
      %s297 = smul.addr %s296, 4
      %s298 = scalar_lea.vmem %s232, %s297
      %v299 = vld [vmem:[%s298] sm:$0xf]
      %v300 = vld [vmem:[%s298 + $0x4] sm:$0xf]
      %s301 = sadd.s32 %s257, 16
      %p302 = scmp.lt.s32.totalorder %s301, 15
      %s303 = scalar_select %p302, %s301, 15
      %s304 = smul.u32 %s303, 2
      %s305 = smul.addr %s304, 4
      %s306 = scalar_lea.vmem %s232, %s305
      %v307 = vld [vmem:[%s306] sm:$0xf]
      %v308 = vld [vmem:[%s306 + $0x4] sm:$0xf]
      %p309 = scmp.gt.s32.totalorder %s21, 0
      %s310 = scalar_select %p309, 1, 0
      %v311 = vstv %s310
      %vm312 = vcmp.eq.s32.totalorder %v311, 1
      %v313 = vsel %vm312, %v299, 0
      %v314 = vsel %vm312, %v300, 0
      %s315 = sadd.s32 %s21, 1
      %p316 = scmp.lt.s32.totalorder %s315, 1
      %s317 = scalar_select %p316, 1, 0
      %v318 = vstv %s317
      %vm319 = vcmp.eq.s32.totalorder %v318, 1
      %v320 = vsel %vm319, %v307, 0
      %v321 = vsel %vm319, %v308, 0
      %v358 = vunpack.c.l.b16 %v313
      %v359 = vunpack.c.l.b16 %v314
      %v360 = vunpack.c.l.b16 %v261
      %v361 = vunpack.c.l.b16 %v262
      %v362 = vunpack.c.l.b16 %v263
      %v363 = vunpack.c.l.b16 %v264
      %v364 = vunpack.c.l.b16 %v265
      %v365 = vunpack.c.l.b16 %v266
      %v366 = vunpack.c.l.b16 %v267
      %v367 = vunpack.c.l.b16 %v268
      %v368 = vunpack.c.l.b16 %v269
      %v369 = vunpack.c.l.b16 %v270
      %v370 = vunpack.c.l.b16 %v271
      %v371 = vunpack.c.l.b16 %v272
      %v372 = vunpack.c.l.b16 %v273
      %v373 = vunpack.c.l.b16 %v274
      %v374 = vunpack.c.l.b16 %v275
      %v375 = vunpack.c.l.b16 %v276
      %v376 = vunpack.c.l.b16 %v277
      %v377 = vunpack.c.l.b16 %v278
      %v378 = vunpack.c.l.b16 %v279
      %v379 = vunpack.c.l.b16 %v280
      %v380 = vunpack.c.l.b16 %v281
      %v381 = vunpack.c.l.b16 %v282
      %v382 = vunpack.c.l.b16 %v283
      %v383 = vunpack.c.l.b16 %v284
      %v384 = vunpack.c.l.b16 %v285
      %v385 = vunpack.c.l.b16 %v286
      %v386 = vunpack.c.l.b16 %v287
      %v387 = vunpack.c.l.b16 %v288
      %v388 = vunpack.c.l.b16 %v289
      %v389 = vunpack.c.l.b16 %v290
      %v390 = vunpack.c.l.b16 %v291
      %v391 = vunpack.c.l.b16 %v292
      %v392 = vunpack.c.l.b16 %v320
      %v393 = vunpack.c.l.b16 %v321
      %v394 = vpack.c.b16 %v359, %v358
      %v395 = vpack.c.b16 %v361, %v360
      %v396 = vpack.c.b16 %v363, %v362
      %v397 = vpack.c.b16 %v365, %v364
      %v398 = vpack.c.b16 %v367, %v366
      %v399 = vpack.c.b16 %v369, %v368
      %v400 = vpack.c.b16 %v371, %v370
      %v401 = vpack.c.b16 %v373, %v372
      %v402 = vpack.c.b16 %v375, %v374
      %v403 = vpack.c.b16 %v377, %v376
      %v404 = vpack.c.b16 %v379, %v378
      %v405 = vpack.c.b16 %v381, %v380
      %v406 = vpack.c.b16 %v383, %v382
      %v407 = vpack.c.b16 %v385, %v384
      %v408 = vpack.c.b16 %v387, %v386
      %v409 = vpack.c.b16 %v389, %v388
      %v410 = vpack.c.b16 %v391, %v390
      %v411 = vpack.c.b16 %v393, %v392
      %v413 = vshrl.u32 %v394, 16
      %v415 = vrot.slane %v413, 7
      %v416 = vshll.u32 %v394, 16
      %v418 = vor.u32 %v415, %v416
      %v420 = vshrl.u32 %v395, 16
      %v422 = vrot.slane %v420, 7
      %v423 = vshll.u32 %v395, 16
      %v425 = vor.u32 %v422, %v423
      %v427 = vshrl.u32 %v396, 16
      %v429 = vrot.slane %v427, 7
      %v430 = vshll.u32 %v396, 16
      %v432 = vor.u32 %v429, %v430
      %v434 = vshrl.u32 %v397, 16
      %v436 = vrot.slane %v434, 7
      %v437 = vshll.u32 %v397, 16
      %v439 = vor.u32 %v436, %v437
      %v441 = vshrl.u32 %v398, 16
      %v443 = vrot.slane %v441, 7
      %v444 = vshll.u32 %v398, 16
      %v446 = vor.u32 %v443, %v444
      %v448 = vshrl.u32 %v399, 16
      %v450 = vrot.slane %v448, 7
      %v451 = vshll.u32 %v399, 16
      %v453 = vor.u32 %v450, %v451
      %v455 = vshrl.u32 %v400, 16
      %v457 = vrot.slane %v455, 7
      %v458 = vshll.u32 %v400, 16
      %v460 = vor.u32 %v457, %v458
      %v462 = vshrl.u32 %v401, 16
      %v464 = vrot.slane %v462, 7
      %v465 = vshll.u32 %v401, 16
      %v467 = vor.u32 %v464, %v465
      %v469 = vshrl.u32 %v402, 16
      %v471 = vrot.slane %v469, 7
      %v472 = vshll.u32 %v402, 16
      %v474 = vor.u32 %v471, %v472
      %v476 = vshrl.u32 %v403, 16
      %v478 = vrot.slane %v476, 7
      %v479 = vshll.u32 %v403, 16
      %v481 = vor.u32 %v478, %v479
      %v483 = vshrl.u32 %v404, 16
      %v485 = vrot.slane %v483, 7
      %v486 = vshll.u32 %v404, 16
      %v488 = vor.u32 %v485, %v486
      %v490 = vshrl.u32 %v405, 16
      %v492 = vrot.slane %v490, 7
      %v493 = vshll.u32 %v405, 16
      %v495 = vor.u32 %v492, %v493
      %v497 = vshrl.u32 %v406, 16
      %v499 = vrot.slane %v497, 7
      %v500 = vshll.u32 %v406, 16
      %v502 = vor.u32 %v499, %v500
      %v504 = vshrl.u32 %v407, 16
      %v506 = vrot.slane %v504, 7
      %v507 = vshll.u32 %v407, 16
      %v509 = vor.u32 %v506, %v507
      %v511 = vshrl.u32 %v408, 16
      %v513 = vrot.slane %v511, 7
      %v514 = vshll.u32 %v408, 16
      %v516 = vor.u32 %v513, %v514
      %v518 = vshrl.u32 %v409, 16
      %v520 = vrot.slane %v518, 7
      %v521 = vshll.u32 %v409, 16
      %v523 = vor.u32 %v520, %v521
      %v525 = vshrl.u32 %v410, 16
      %v527 = vrot.slane %v525, 7
      %v528 = vshll.u32 %v410, 16
      %v530 = vor.u32 %v527, %v528
      %v532 = vshrl.u32 %v411, 16
      %v534 = vrot.slane %v532, 7
      %v535 = vshll.u32 %v411, 16
      %v537 = vor.u32 %v534, %v535
      %vm556 = vcmask 1040384
      %vm557 = vsmask.f32 256
      %vm558 = vmand %vm556, %vm557
      %v559 = vsel %vm558, 0, %v418
      %v560 = vsel %vm558, 0, %v425
      %v561 = vsel %vm558, 0, %v432
      %v562 = vsel %vm558, 0, %v439
      %v563 = vsel %vm558, 0, %v446
      %v564 = vsel %vm558, 0, %v453
      %v565 = vsel %vm558, 0, %v460
      %v566 = vsel %vm558, 0, %v467
      %v567 = vsel %vm558, 0, %v474
      %v568 = vsel %vm558, 0, %v481
      %v569 = vsel %vm558, 0, %v488
      %v570 = vsel %vm558, 0, %v495
      %v571 = vsel %vm558, 0, %v502
      %v572 = vsel %vm558, 0, %v509
      %v573 = vsel %vm558, 0, %v516
      %v574 = vsel %vm558, 0, %v523
      %v575 = vsel %vm558, 0, %v530
      %v576 = vsel %vm558, 0, %v537
      %v577 = vrot.slane %v416, 1
      %v578 = vor.u32 %v413, %v577
      %v579 = vrot.slane %v423, 1
      %v580 = vor.u32 %v420, %v579
      %v581 = vrot.slane %v430, 1
      %v582 = vor.u32 %v427, %v581
      %v583 = vrot.slane %v437, 1
      %v584 = vor.u32 %v434, %v583
      %v585 = vrot.slane %v444, 1
      %v586 = vor.u32 %v441, %v585
      %v587 = vrot.slane %v451, 1
      %v588 = vor.u32 %v448, %v587
      %v589 = vrot.slane %v458, 1
      %v590 = vor.u32 %v455, %v589
      %v591 = vrot.slane %v465, 1
      %v592 = vor.u32 %v462, %v591
      %v593 = vrot.slane %v472, 1
      %v594 = vor.u32 %v469, %v593
      %v595 = vrot.slane %v479, 1
      %v596 = vor.u32 %v476, %v595
      %v597 = vrot.slane %v486, 1
      %v598 = vor.u32 %v483, %v597
      %v599 = vrot.slane %v493, 1
      %v600 = vor.u32 %v490, %v599
      %v601 = vrot.slane %v500, 1
      %v602 = vor.u32 %v497, %v601
      %v603 = vrot.slane %v507, 1
      %v604 = vor.u32 %v504, %v603
      %v605 = vrot.slane %v514, 1
      %v606 = vor.u32 %v511, %v605
      %v607 = vrot.slane %v521, 1
      %v608 = vor.u32 %v518, %v607
      %v609 = vrot.slane %v528, 1
      %v610 = vor.u32 %v525, %v609
      %v611 = vrot.slane %v535, 1
      %v612 = vor.u32 %v532, %v611
      %vm631 = vcmask 1047552
      %vm632 = vsmask.f32 7424
      %vm633 = vmand %vm631, %vm632
      %v634 = vsel %vm633, %v578, 0
      %v635 = vsel %vm633, %v580, 0
      %v636 = vsel %vm633, %v582, 0
      %v637 = vsel %vm633, %v584, 0
      %v638 = vsel %vm633, %v586, 0
      %v639 = vsel %vm633, %v588, 0
      %v640 = vsel %vm633, %v590, 0
      %v641 = vsel %vm633, %v592, 0
      %v642 = vsel %vm633, %v594, 0
      %v643 = vsel %vm633, %v596, 0
      %v644 = vsel %vm633, %v598, 0
      %v645 = vsel %vm633, %v600, 0
      %v646 = vsel %vm633, %v602, 0
      %v647 = vsel %vm633, %v604, 0
      %v648 = vsel %vm633, %v606, 0
      %v649 = vsel %vm633, %v608, 0
      %v650 = vsel %vm633, %v610, 0
      %v651 = vsel %vm633, %v612, 0
      %652 = vrot.lane.b32.xlu0 %v394, 4
      %v653 = vpop.permute.xlu0 %652
      %654 = vrot.lane.b32.xlu0 %v395, 4
      %v655 = vpop.permute.xlu0 %654
      %656 = vrot.lane.b32.xlu0 %v396, 4
      %v657 = vpop.permute.xlu0 %656
      %658 = vrot.lane.b32.xlu0 %v397, 4
      %v659 = vpop.permute.xlu0 %658
      %660 = vrot.lane.b32.xlu0 %v398, 4
      %v661 = vpop.permute.xlu0 %660
      %662 = vrot.lane.b32.xlu0 %v399, 4
      %v663 = vpop.permute.xlu0 %662
      %664 = vrot.lane.b32.xlu0 %v400, 4
      %v665 = vpop.permute.xlu0 %664
      %666 = vrot.lane.b32.xlu0 %v401, 4
      %v667 = vpop.permute.xlu0 %666
      %668 = vrot.lane.b32.xlu0 %v402, 4
      %v669 = vpop.permute.xlu0 %668
      %670 = vrot.lane.b32.xlu0 %v403, 4
      %v671 = vpop.permute.xlu0 %670
      %672 = vrot.lane.b32.xlu0 %v404, 4
      %v673 = vpop.permute.xlu0 %672
      %674 = vrot.lane.b32.xlu0 %v405, 4
      %v675 = vpop.permute.xlu0 %674
      %676 = vrot.lane.b32.xlu0 %v406, 4
      %v677 = vpop.permute.xlu0 %676
      %678 = vrot.lane.b32.xlu0 %v407, 4
      %v679 = vpop.permute.xlu0 %678
      %680 = vrot.lane.b32.xlu0 %v408, 4
      %v681 = vpop.permute.xlu0 %680
      %682 = vrot.lane.b32.xlu0 %v409, 4
      %v683 = vpop.permute.xlu0 %682
      %700 = vrot.lane.b32.xlu0 %v634, 8
      %v701 = vpop.permute.xlu0 %700
      %702 = vrot.lane.b32.xlu0 %v635, 8
      %v703 = vpop.permute.xlu0 %702
      %704 = vrot.lane.b32.xlu0 %v636, 8
      %v705 = vpop.permute.xlu0 %704
      %706 = vrot.lane.b32.xlu0 %v637, 8
      %v707 = vpop.permute.xlu0 %706
      %708 = vrot.lane.b32.xlu0 %v638, 8
      %v709 = vpop.permute.xlu0 %708
      %710 = vrot.lane.b32.xlu0 %v639, 8
      %v711 = vpop.permute.xlu0 %710
      %712 = vrot.lane.b32.xlu0 %v640, 8
      %v713 = vpop.permute.xlu0 %712
      %714 = vrot.lane.b32.xlu0 %v641, 8
      %v715 = vpop.permute.xlu0 %714
      %716 = vrot.lane.b32.xlu0 %v642, 8
      %v717 = vpop.permute.xlu0 %716
      %718 = vrot.lane.b32.xlu0 %v643, 8
      %v719 = vpop.permute.xlu0 %718
      %720 = vrot.lane.b32.xlu0 %v644, 8
      %v721 = vpop.permute.xlu0 %720
      %722 = vrot.lane.b32.xlu0 %v645, 8
      %v723 = vpop.permute.xlu0 %722
      %724 = vrot.lane.b32.xlu0 %v646, 8
      %v725 = vpop.permute.xlu0 %724
      %726 = vrot.lane.b32.xlu0 %v647, 8
      %v727 = vpop.permute.xlu0 %726
      %728 = vrot.lane.b32.xlu0 %v648, 8
      %v729 = vpop.permute.xlu0 %728
      %730 = vrot.lane.b32.xlu0 %v649, 8
      %v731 = vpop.permute.xlu0 %730
      %748 = vrot.lane.b32.xlu0 %v560, 12
      %v749 = vpop.permute.xlu0 %748
      %750 = vrot.lane.b32.xlu0 %v561, 12
      %v751 = vpop.permute.xlu0 %750
      %752 = vrot.lane.b32.xlu0 %v562, 12
      %v753 = vpop.permute.xlu0 %752
      %754 = vrot.lane.b32.xlu0 %v563, 12
      %v755 = vpop.permute.xlu0 %754
      %756 = vrot.lane.b32.xlu0 %v564, 12
      %v757 = vpop.permute.xlu0 %756
      %758 = vrot.lane.b32.xlu0 %v565, 12
      %v759 = vpop.permute.xlu0 %758
      %760 = vrot.lane.b32.xlu0 %v566, 12
      %v761 = vpop.permute.xlu0 %760
      %762 = vrot.lane.b32.xlu0 %v567, 12
      %v763 = vpop.permute.xlu0 %762
      %764 = vrot.lane.b32.xlu0 %v568, 12
      %v765 = vpop.permute.xlu0 %764
      %766 = vrot.lane.b32.xlu0 %v569, 12
      %v767 = vpop.permute.xlu0 %766
      %768 = vrot.lane.b32.xlu0 %v570, 12
      %v769 = vpop.permute.xlu0 %768
      %770 = vrot.lane.b32.xlu0 %v571, 12
      %v771 = vpop.permute.xlu0 %770
      %772 = vrot.lane.b32.xlu0 %v572, 12
      %v773 = vpop.permute.xlu0 %772
      %774 = vrot.lane.b32.xlu0 %v573, 12
      %v775 = vpop.permute.xlu0 %774
      %776 = vrot.lane.b32.xlu0 %v574, 12
      %v777 = vpop.permute.xlu0 %776
      %778 = vrot.lane.b32.xlu0 %v575, 12
      %v779 = vpop.permute.xlu0 %778
      %780 = vrot.lane.b32.xlu0 %v395, 16
      %v781 = vpop.permute.xlu0 %780
      %782 = vrot.lane.b32.xlu0 %v396, 16
      %v783 = vpop.permute.xlu0 %782
      %784 = vrot.lane.b32.xlu0 %v397, 16
      %v785 = vpop.permute.xlu0 %784
      %786 = vrot.lane.b32.xlu0 %v398, 16
      %v787 = vpop.permute.xlu0 %786
      %788 = vrot.lane.b32.xlu0 %v399, 16
      %v789 = vpop.permute.xlu0 %788
      %790 = vrot.lane.b32.xlu0 %v400, 16
      %v791 = vpop.permute.xlu0 %790
      %792 = vrot.lane.b32.xlu0 %v401, 16
      %v793 = vpop.permute.xlu0 %792
      %794 = vrot.lane.b32.xlu0 %v402, 16
      %v795 = vpop.permute.xlu0 %794
      %796 = vrot.lane.b32.xlu0 %v403, 16
      %v797 = vpop.permute.xlu0 %796
      %798 = vrot.lane.b32.xlu0 %v404, 16
      %v799 = vpop.permute.xlu0 %798
      %800 = vrot.lane.b32.xlu0 %v405, 16
      %v801 = vpop.permute.xlu0 %800
      %802 = vrot.lane.b32.xlu0 %v406, 16
      %v803 = vpop.permute.xlu0 %802
      %804 = vrot.lane.b32.xlu0 %v407, 16
      %v805 = vpop.permute.xlu0 %804
      %806 = vrot.lane.b32.xlu0 %v408, 16
      %v807 = vpop.permute.xlu0 %806
      %808 = vrot.lane.b32.xlu0 %v409, 16
      %v809 = vpop.permute.xlu0 %808
      %810 = vrot.lane.b32.xlu0 %v410, 16
      %v811 = vpop.permute.xlu0 %810
      %813 = vrot.lane.b32.xlu0 %v635, 20
      %v814 = vpop.permute.xlu0 %813
      %815 = vrot.lane.b32.xlu0 %v636, 20
      %v816 = vpop.permute.xlu0 %815
      %817 = vrot.lane.b32.xlu0 %v637, 20
      %v818 = vpop.permute.xlu0 %817
      %819 = vrot.lane.b32.xlu0 %v638, 20
      %v820 = vpop.permute.xlu0 %819
      %821 = vrot.lane.b32.xlu0 %v639, 20
      %v822 = vpop.permute.xlu0 %821
      %823 = vrot.lane.b32.xlu0 %v640, 20
      %v824 = vpop.permute.xlu0 %823
      %825 = vrot.lane.b32.xlu0 %v641, 20
      %v826 = vpop.permute.xlu0 %825
      %827 = vrot.lane.b32.xlu0 %v642, 20
      %v828 = vpop.permute.xlu0 %827
      %829 = vrot.lane.b32.xlu0 %v643, 20
      %v830 = vpop.permute.xlu0 %829
      %831 = vrot.lane.b32.xlu0 %v644, 20
      %v832 = vpop.permute.xlu0 %831
      %833 = vrot.lane.b32.xlu0 %v645, 20
      %v834 = vpop.permute.xlu0 %833
      %835 = vrot.lane.b32.xlu0 %v646, 20
      %v836 = vpop.permute.xlu0 %835
      %837 = vrot.lane.b32.xlu0 %v647, 20
      %v838 = vpop.permute.xlu0 %837
      %839 = vrot.lane.b32.xlu0 %v648, 20
      %v840 = vpop.permute.xlu0 %839
      %841 = vrot.lane.b32.xlu0 %v649, 20
      %v842 = vpop.permute.xlu0 %841
      %843 = vrot.lane.b32.xlu0 %v650, 20
      %v844 = vpop.permute.xlu0 %843
      %846 = vrot.lane.b32.xlu0 %v561, 24
      %v847 = vpop.permute.xlu0 %846
      %848 = vrot.lane.b32.xlu0 %v562, 24
      %v849 = vpop.permute.xlu0 %848
      %850 = vrot.lane.b32.xlu0 %v563, 24
      %v851 = vpop.permute.xlu0 %850
      %852 = vrot.lane.b32.xlu0 %v564, 24
      %v853 = vpop.permute.xlu0 %852
      %854 = vrot.lane.b32.xlu0 %v565, 24
      %v855 = vpop.permute.xlu0 %854
      %856 = vrot.lane.b32.xlu0 %v566, 24
      %v857 = vpop.permute.xlu0 %856
      %858 = vrot.lane.b32.xlu0 %v567, 24
      %v859 = vpop.permute.xlu0 %858
      %860 = vrot.lane.b32.xlu0 %v568, 24
      %v861 = vpop.permute.xlu0 %860
      %862 = vrot.lane.b32.xlu0 %v569, 24
      %v863 = vpop.permute.xlu0 %862
      %864 = vrot.lane.b32.xlu0 %v570, 24
      %v865 = vpop.permute.xlu0 %864
      %866 = vrot.lane.b32.xlu0 %v571, 24
      %v867 = vpop.permute.xlu0 %866
      %868 = vrot.lane.b32.xlu0 %v572, 24
      %v869 = vpop.permute.xlu0 %868
      %870 = vrot.lane.b32.xlu0 %v573, 24
      %v871 = vpop.permute.xlu0 %870
      %872 = vrot.lane.b32.xlu0 %v574, 24
      %v873 = vpop.permute.xlu0 %872
      %874 = vrot.lane.b32.xlu0 %v575, 24
      %v875 = vpop.permute.xlu0 %874
      %876 = vrot.lane.b32.xlu0 %v576, 24
      %v877 = vpop.permute.xlu0 %876
      %878 = vrot.lane.b32.xlu0 %v396, 28
      %v879 = vpop.permute.xlu0 %878
      %880 = vrot.lane.b32.xlu0 %v397, 28
      %v881 = vpop.permute.xlu0 %880
      %882 = vrot.lane.b32.xlu0 %v398, 28
      %v883 = vpop.permute.xlu0 %882
      %884 = vrot.lane.b32.xlu0 %v399, 28
      %v885 = vpop.permute.xlu0 %884
      %886 = vrot.lane.b32.xlu0 %v400, 28
      %v887 = vpop.permute.xlu0 %886
      %888 = vrot.lane.b32.xlu0 %v401, 28
      %v889 = vpop.permute.xlu0 %888
      %890 = vrot.lane.b32.xlu0 %v402, 28
      %v891 = vpop.permute.xlu0 %890
      %892 = vrot.lane.b32.xlu0 %v403, 28
      %v893 = vpop.permute.xlu0 %892
      %894 = vrot.lane.b32.xlu0 %v404, 28
      %v895 = vpop.permute.xlu0 %894
      %896 = vrot.lane.b32.xlu0 %v405, 28
      %v897 = vpop.permute.xlu0 %896
      %898 = vrot.lane.b32.xlu0 %v406, 28
      %v899 = vpop.permute.xlu0 %898
      %900 = vrot.lane.b32.xlu0 %v407, 28
      %v901 = vpop.permute.xlu0 %900
      %902 = vrot.lane.b32.xlu0 %v408, 28
      %v903 = vpop.permute.xlu0 %902
      %904 = vrot.lane.b32.xlu0 %v409, 28
      %v905 = vpop.permute.xlu0 %904
      %906 = vrot.lane.b32.xlu0 %v410, 28
      %v907 = vpop.permute.xlu0 %906
      %908 = vrot.lane.b32.xlu0 %v411, 28
      %v909 = vpop.permute.xlu0 %908
      %911 = vrot.lane.b32.xlu0 %v636, 32
      %v912 = vpop.permute.xlu0 %911
      %913 = vrot.lane.b32.xlu0 %v637, 32
      %v914 = vpop.permute.xlu0 %913
      %915 = vrot.lane.b32.xlu0 %v638, 32
      %v916 = vpop.permute.xlu0 %915
      %917 = vrot.lane.b32.xlu0 %v639, 32
      %v918 = vpop.permute.xlu0 %917
      %919 = vrot.lane.b32.xlu0 %v640, 32
      %v920 = vpop.permute.xlu0 %919
      %921 = vrot.lane.b32.xlu0 %v641, 32
      %v922 = vpop.permute.xlu0 %921
      %923 = vrot.lane.b32.xlu0 %v642, 32
      %v924 = vpop.permute.xlu0 %923
      %925 = vrot.lane.b32.xlu0 %v643, 32
      %v926 = vpop.permute.xlu0 %925
      %927 = vrot.lane.b32.xlu0 %v644, 32
      %v928 = vpop.permute.xlu0 %927
      %929 = vrot.lane.b32.xlu0 %v645, 32
      %v930 = vpop.permute.xlu0 %929
      %931 = vrot.lane.b32.xlu0 %v646, 32
      %v932 = vpop.permute.xlu0 %931
      %933 = vrot.lane.b32.xlu0 %v647, 32
      %v934 = vpop.permute.xlu0 %933
      %935 = vrot.lane.b32.xlu0 %v648, 32
      %v936 = vpop.permute.xlu0 %935
      %937 = vrot.lane.b32.xlu0 %v649, 32
      %v938 = vpop.permute.xlu0 %937
      %939 = vrot.lane.b32.xlu0 %v650, 32
      %v940 = vpop.permute.xlu0 %939
      %941 = vrot.lane.b32.xlu0 %v651, 32
      %v942 = vpop.permute.xlu0 %941
      %vm943 = vcmask 31744
      %v946 = vsel %vm943, %v559, %v653
      %v949 = vsel %vm943, %v560, %v655
      %v952 = vsel %vm943, %v561, %v657
      %v955 = vsel %vm943, %v562, %v659
      %v958 = vsel %vm943, %v563, %v661
      %v961 = vsel %vm943, %v564, %v663
      %v964 = vsel %vm943, %v565, %v665
      %v967 = vsel %vm943, %v566, %v667
      %v970 = vsel %vm943, %v567, %v669
      %v973 = vsel %vm943, %v568, %v671
      %v976 = vsel %vm943, %v569, %v673
      %v979 = vsel %vm943, %v570, %v675
      %v982 = vsel %vm943, %v571, %v677
      %v985 = vsel %vm943, %v572, %v679
      %v988 = vsel %vm943, %v573, %v681
      %v991 = vsel %vm943, %v574, %v683
      %vm992 = vcmask 64512
      %v994 = vsel %vm992, %v946, %v701
      %v996 = vsel %vm992, %v949, %v703
      %v998 = vsel %vm992, %v952, %v705
      %v1000 = vsel %vm992, %v955, %v707
      %v1002 = vsel %vm992, %v958, %v709
      %v1004 = vsel %vm992, %v961, %v711
      %v1006 = vsel %vm992, %v964, %v713
      %v1008 = vsel %vm992, %v967, %v715
      %v1010 = vsel %vm992, %v970, %v717
      %v1012 = vsel %vm992, %v973, %v719
      %v1014 = vsel %vm992, %v976, %v721
      %v1016 = vsel %vm992, %v979, %v723
      %v1018 = vsel %vm992, %v982, %v725
      %v1020 = vsel %vm992, %v985, %v727
      %v1022 = vsel %vm992, %v988, %v729
      %v1024 = vsel %vm992, %v991, %v731
      %vm1025 = vcmask 97280
      %v1027 = vsel %vm1025, %v994, %v749
      %v1029 = vsel %vm1025, %v996, %v751
      %v1031 = vsel %vm1025, %v998, %v753
      %v1033 = vsel %vm1025, %v1000, %v755
      %v1035 = vsel %vm1025, %v1002, %v757
      %v1037 = vsel %vm1025, %v1004, %v759
      %v1039 = vsel %vm1025, %v1006, %v761
      %v1041 = vsel %vm1025, %v1008, %v763
      %v1043 = vsel %vm1025, %v1010, %v765
      %v1045 = vsel %vm1025, %v1012, %v767
      %v1047 = vsel %vm1025, %v1014, %v769
      %v1049 = vsel %vm1025, %v1016, %v771
      %v1051 = vsel %vm1025, %v1018, %v773
      %v1053 = vsel %vm1025, %v1020, %v775
      %v1055 = vsel %vm1025, %v1022, %v777
      %v1057 = vsel %vm1025, %v1024, %v779
      %vm1058 = vcmask 130048
      %v1060 = vsel %vm1058, %v1027, %v781
      %v1062 = vsel %vm1058, %v1029, %v783
      %v1064 = vsel %vm1058, %v1031, %v785
      %v1066 = vsel %vm1058, %v1033, %v787
      %v1068 = vsel %vm1058, %v1035, %v789
      %v1070 = vsel %vm1058, %v1037, %v791
      %v1072 = vsel %vm1058, %v1039, %v793
      %v1074 = vsel %vm1058, %v1041, %v795
      %v1076 = vsel %vm1058, %v1043, %v797
      %v1078 = vsel %vm1058, %v1045, %v799
      %v1080 = vsel %vm1058, %v1047, %v801
      %v1082 = vsel %vm1058, %v1049, %v803
      %v1084 = vsel %vm1058, %v1051, %v805
      %v1086 = vsel %vm1058, %v1053, %v807
      %v1088 = vsel %vm1058, %v1055, %v809
      %v1090 = vsel %vm1058, %v1057, %v811
      %vm1091 = vcmask 162816
      %v1093 = vsel %vm1091, %v1060, %v814
      %v1095 = vsel %vm1091, %v1062, %v816
      %v1097 = vsel %vm1091, %v1064, %v818
      %v1099 = vsel %vm1091, %v1066, %v820
      %v1101 = vsel %vm1091, %v1068, %v822
      %v1103 = vsel %vm1091, %v1070, %v824
      %v1105 = vsel %vm1091, %v1072, %v826
      %v1107 = vsel %vm1091, %v1074, %v828
      %v1109 = vsel %vm1091, %v1076, %v830
      %v1111 = vsel %vm1091, %v1078, %v832
      %v1113 = vsel %vm1091, %v1080, %v834
      %v1115 = vsel %vm1091, %v1082, %v836
      %v1117 = vsel %vm1091, %v1084, %v838
      %v1119 = vsel %vm1091, %v1086, %v840
      %v1121 = vsel %vm1091, %v1088, %v842
      %v1123 = vsel %vm1091, %v1090, %v844
      %vm1124 = vcmask 195584
      %v1126 = vsel %vm1124, %v1093, %v847
      %v1128 = vsel %vm1124, %v1095, %v849
      %v1130 = vsel %vm1124, %v1097, %v851
      %v1132 = vsel %vm1124, %v1099, %v853
      %v1134 = vsel %vm1124, %v1101, %v855
      %v1136 = vsel %vm1124, %v1103, %v857
      %v1138 = vsel %vm1124, %v1105, %v859
      %v1140 = vsel %vm1124, %v1107, %v861
      %v1142 = vsel %vm1124, %v1109, %v863
      %v1144 = vsel %vm1124, %v1111, %v865
      %v1146 = vsel %vm1124, %v1113, %v867
      %v1148 = vsel %vm1124, %v1115, %v869
      %v1150 = vsel %vm1124, %v1117, %v871
      %v1152 = vsel %vm1124, %v1119, %v873
      %v1154 = vsel %vm1124, %v1121, %v875
      %v1156 = vsel %vm1124, %v1123, %v877
      %vm1157 = vcmask 228352
      %v1159 = vsel %vm1157, %v1126, %v879
      %v1161 = vsel %vm1157, %v1128, %v881
      %v1163 = vsel %vm1157, %v1130, %v883
      %v1165 = vsel %vm1157, %v1132, %v885
      %v1167 = vsel %vm1157, %v1134, %v887
      %v1169 = vsel %vm1157, %v1136, %v889
      %v1171 = vsel %vm1157, %v1138, %v891
      %v1173 = vsel %vm1157, %v1140, %v893
      %v1175 = vsel %vm1157, %v1142, %v895
      %v1177 = vsel %vm1157, %v1144, %v897
      %v1179 = vsel %vm1157, %v1146, %v899
      %v1181 = vsel %vm1157, %v1148, %v901
      %v1183 = vsel %vm1157, %v1150, %v903
      %v1185 = vsel %vm1157, %v1152, %v905
      %v1187 = vsel %vm1157, %v1154, %v907
      %v1189 = vsel %vm1157, %v1156, %v909
      %vm1190 = vcmask 261120
      %v1192 = vsel %vm1190, %v1159, %v912
      %v1194 = vsel %vm1190, %v1161, %v914
      %v1196 = vsel %vm1190, %v1163, %v916
      %v1198 = vsel %vm1190, %v1165, %v918
      %v1200 = vsel %vm1190, %v1167, %v920
      %v1202 = vsel %vm1190, %v1169, %v922
      %v1204 = vsel %vm1190, %v1171, %v924
      %v1206 = vsel %vm1190, %v1173, %v926
      %v1208 = vsel %vm1190, %v1175, %v928
      %v1210 = vsel %vm1190, %v1177, %v930
      %v1212 = vsel %vm1190, %v1179, %v932
      %v1214 = vsel %vm1190, %v1181, %v934
      %v1216 = vsel %vm1190, %v1183, %v936
      %v1218 = vsel %vm1190, %v1185, %v938
      %v1220 = vsel %vm1190, %v1187, %v940
      %v1222 = vsel %vm1190, %v1189, %v942
      %v1223 = vld [vmem:[%s1] sm:$0xf]
      %v1224 = vld [vmem:[%s1 + $0x4] sm:$0xf]
      %v1225 = vld [vmem:[%s1 + $0x8] sm:$0xf]
      %v1226 = vld [vmem:[%s1 + $0xc] sm:$0xf]
      %v1227 = vld [vmem:[%s1 + $0x10] sm:$0x3]
      %v1233 = vunpack.c.l.b16 %v1223
      %v1234 = vunpack.c.l.b16 %v1224
      %v1235 = vunpack.c.l.b16 %v1225
      %v1236 = vunpack.c.l.b16 %v1226
      %v1237 = vunpack.c.l.b16 %v1227
      %v1238 = vpack.c.b16 %v1234, %v1233
      %v1239 = vpack.c.b16 %v1236, %v1235
      %v1240 = vpack.c.b16 %v1237, %v1237
      %vm1243 = vcmask 293888
      %v1244 = vsel %vm1243, %v1192, 0
      %v1246 = vsel %vm1243, %v1194, 0
      %v1248 = vsel %vm1243, %v1196, 0
      %v1250 = vsel %vm1243, %v1198, 0
      %v1252 = vsel %vm1243, %v1200, 0
      %v1254 = vsel %vm1243, %v1202, 0
      %v1256 = vsel %vm1243, %v1204, 0
      %v1258 = vsel %vm1243, %v1206, 0
      %v1260 = vsel %vm1243, %v1208, 0
      %v1262 = vsel %vm1243, %v1210, 0
      %v1264 = vsel %vm1243, %v1212, 0
      %v1266 = vsel %vm1243, %v1214, 0
      %v1268 = vsel %vm1243, %v1216, 0
      %v1270 = vsel %vm1243, %v1218, 0
      %v1272 = vsel %vm1243, %v1220, 0
      %v1274 = vsel %vm1243, %v1222, 0
      %vm1276 = vcmask 1041408
      %v1278 = vsel %vm1276, %v1240, 0
      %1280 = vmatprep.subr.bf16.mxu0 0
      %1281 = vmatpush1.bf16.msra.mxu0 0
      %1282 = vmatprep.subr.bf16.mxu0 0
      %1283 = vmatpush1.bf16.msra.mxu0 0
      %1284 = vmatprep.subr.bf16.mxu0 0
      %1285 = vmatpush1.bf16.msra.mxu0 0
      %1286 = vmatprep.subr.bf16.mxu0 0
      %1287 = vmatpush1.bf16.msra.mxu0 0
      %1288 = vmatprep.subr.bf16.mxu0 0
      %1289 = vmatpush1.bf16.msra.mxu0 0
      %1290 = vmatprep.subr.bf16.mxu0 0
      %1291 = vmatpush1.bf16.msra.mxu0 %v1278
      %1292 = vmatprep.subr.bf16.mxu0 0
      %1293 = vmatpush1.bf16.msra.mxu0 %v1239
      %1294 = vmatprep.subr.bf16.mxu0 0
      %1295 = vmatpush1.bf16.msra.mxu0 %v1238
      %1296 = vmatprep.subr.bf16.mxu0 0
      %1297 = vmatpush2.bf16.msra.mxu0 0
      %1298 = vmatprep.subr.bf16.mxu0 0
      %1299 = vmatpush2.bf16.msra.mxu0 0
      %1300 = vmatprep.subr.bf16.mxu0 0
      %1301 = vmatpush2.bf16.msra.mxu0 0
      %1302 = vmatprep.subr.bf16.mxu0 0
      %1303 = vmatpush2.bf16.msra.mxu0 0
      %1304 = vmatprep.subr.bf16.mxu0 0
      %1305 = vmatpush2.bf16.msra.mxu0 0
      %1306 = vmatprep.subr.bf16.mxu0 0
      %1307 = vmatpush2.bf16.msra.mxu0 0
      %1308 = vmatprep.subr.bf16.mxu0 0
      %1309 = vmatpush2.bf16.msra.mxu0 0
      %1310 = vmatprep.subr.bf16.mxu0 0
      %1311 = vmatpush2.bf16.msra.mxu0 0
      %1312 = vmatprep.mubr.bf16.mxu0 0
      %1313 = vmatmul.mubr.bf16.gmra.mxu0 %v1244
      %v1314 = vpop.f32.mrf.mxu0
      %v1315 = vadd.f32 0.0, %v1314
      %v1316 = vpop.f32.mrf.mxu0
      %v1317 = vpop.f32.mrf.mxu0
      %v1318 = vadd.f32 0.0, %v1317
      %v1319 = vpop.f32.mrf.mxu0
      %1320 = vmatprep.mubr.bf16.mxu0 0
      %1321 = vmatmul.mubr.bf16.gmra.mxu0 %v1246
      %v1322 = vpop.f32.mrf.mxu0
      %v1323 = vadd.f32 0.0, %v1322
      %v1324 = vpop.f32.mrf.mxu0
      %v1325 = vpop.f32.mrf.mxu0
      %v1326 = vadd.f32 0.0, %v1325
      %v1327 = vpop.f32.mrf.mxu0
      %1328 = vmatprep.mubr.bf16.mxu0 0
      %1329 = vmatmul.mubr.bf16.gmra.mxu0 %v1248
      %v1330 = vpop.f32.mrf.mxu0
      %v1331 = vadd.f32 0.0, %v1330
      %v1332 = vpop.f32.mrf.mxu0
      %v1333 = vpop.f32.mrf.mxu0
      %v1334 = vadd.f32 0.0, %v1333
      %v1335 = vpop.f32.mrf.mxu0
      %1336 = vmatprep.mubr.bf16.mxu0 0
      %1337 = vmatmul.mubr.bf16.gmra.mxu0 %v1250
      %v1338 = vpop.f32.mrf.mxu0
      %v1339 = vadd.f32 0.0, %v1338
      %v1340 = vpop.f32.mrf.mxu0
      %v1341 = vpop.f32.mrf.mxu0
      %v1342 = vadd.f32 0.0, %v1341
      %v1343 = vpop.f32.mrf.mxu0
      %1344 = vmatprep.mubr.bf16.mxu0 0
      %1345 = vmatmul.mubr.bf16.gmra.mxu0 %v1252
      %v1346 = vpop.f32.mrf.mxu0
      %v1347 = vadd.f32 0.0, %v1346
      %v1348 = vpop.f32.mrf.mxu0
      %v1349 = vpop.f32.mrf.mxu0
      %v1350 = vadd.f32 0.0, %v1349
      %v1351 = vpop.f32.mrf.mxu0
      %1352 = vmatprep.mubr.bf16.mxu0 0
      %1353 = vmatmul.mubr.bf16.gmra.mxu0 %v1254
      %v1354 = vpop.f32.mrf.mxu0
      %v1355 = vadd.f32 0.0, %v1354
      %v1356 = vpop.f32.mrf.mxu0
      %v1357 = vpop.f32.mrf.mxu0
      %v1358 = vadd.f32 0.0, %v1357
      %v1359 = vpop.f32.mrf.mxu0
      %1360 = vmatprep.mubr.bf16.mxu0 0
      %1361 = vmatmul.mubr.bf16.gmra.mxu0 %v1256
      %v1362 = vpop.f32.mrf.mxu0
      %v1363 = vadd.f32 0.0, %v1362
      %v1364 = vpop.f32.mrf.mxu0
      %v1365 = vpop.f32.mrf.mxu0
      %v1366 = vadd.f32 0.0, %v1365
      %v1367 = vpop.f32.mrf.mxu0
      %1368 = vmatprep.mubr.bf16.mxu0 0
      %1369 = vmatmul.mubr.bf16.gmra.mxu0 %v1258
      %v1370 = vpop.f32.mrf.mxu0
      %v1371 = vadd.f32 0.0, %v1370
      %v1372 = vpop.f32.mrf.mxu0
      %v1373 = vpop.f32.mrf.mxu0
      %v1374 = vadd.f32 0.0, %v1373
      %v1375 = vpop.f32.mrf.mxu0
      %1376 = vmatprep.mubr.bf16.mxu0 0
      %1377 = vmatmul.mubr.bf16.gmra.mxu0 %v1260
      %v1378 = vpop.f32.mrf.mxu0
      %v1379 = vadd.f32 0.0, %v1378
      %v1380 = vpop.f32.mrf.mxu0
      %v1381 = vpop.f32.mrf.mxu0
      %v1382 = vadd.f32 0.0, %v1381
      %v1383 = vpop.f32.mrf.mxu0
      %1384 = vmatprep.mubr.bf16.mxu0 0
      %1385 = vmatmul.mubr.bf16.gmra.mxu0 %v1262
      %v1386 = vpop.f32.mrf.mxu0
      %v1387 = vadd.f32 0.0, %v1386
      %v1388 = vpop.f32.mrf.mxu0
      %v1389 = vpop.f32.mrf.mxu0
      %v1390 = vadd.f32 0.0, %v1389
      %v1391 = vpop.f32.mrf.mxu0
      %1392 = vmatprep.mubr.bf16.mxu0 0
      %1393 = vmatmul.mubr.bf16.gmra.mxu0 %v1264
      %v1394 = vpop.f32.mrf.mxu0
      %v1395 = vadd.f32 0.0, %v1394
      %v1396 = vpop.f32.mrf.mxu0
      %v1397 = vpop.f32.mrf.mxu0
      %v1398 = vadd.f32 0.0, %v1397
      %v1399 = vpop.f32.mrf.mxu0
      %1400 = vmatprep.mubr.bf16.mxu0 0
      %1401 = vmatmul.mubr.bf16.gmra.mxu0 %v1266
      %v1402 = vpop.f32.mrf.mxu0
      %v1403 = vadd.f32 0.0, %v1402
      %v1404 = vpop.f32.mrf.mxu0
      %v1405 = vpop.f32.mrf.mxu0
      %v1406 = vadd.f32 0.0, %v1405
      %v1407 = vpop.f32.mrf.mxu0
      %1408 = vmatprep.mubr.bf16.mxu0 0
      %1409 = vmatmul.mubr.bf16.gmra.mxu0 %v1268
      %v1410 = vpop.f32.mrf.mxu0
      %v1411 = vadd.f32 0.0, %v1410
      %v1412 = vpop.f32.mrf.mxu0
      %v1413 = vpop.f32.mrf.mxu0
      %v1414 = vadd.f32 0.0, %v1413
      %v1415 = vpop.f32.mrf.mxu0
      %1416 = vmatprep.mubr.bf16.mxu0 0
      %1417 = vmatmul.mubr.bf16.gmra.mxu0 %v1270
      %v1418 = vpop.f32.mrf.mxu0
      %v1419 = vadd.f32 0.0, %v1418
      %v1420 = vpop.f32.mrf.mxu0
      %v1421 = vpop.f32.mrf.mxu0
      %v1422 = vadd.f32 0.0, %v1421
      %v1423 = vpop.f32.mrf.mxu0
      %1424 = vmatprep.mubr.bf16.mxu0 0
      %1425 = vmatmul.mubr.bf16.gmra.mxu0 %v1272
      %v1426 = vpop.f32.mrf.mxu0
      %v1427 = vadd.f32 0.0, %v1426
      %v1428 = vpop.f32.mrf.mxu0
      %v1429 = vpop.f32.mrf.mxu0
      %v1430 = vadd.f32 0.0, %v1429
      %v1431 = vpop.f32.mrf.mxu0
      %1432 = vmatprep.mubr.bf16.mxu0 0
      %1433 = vmatmul.mubr.bf16.gmra.mxu0 %v1274
      %v1434 = vpop.f32.mrf.mxu0
      %v1435 = vadd.f32 0.0, %v1434
      %v1436 = vpop.f32.mrf.mxu0
      %v1437 = vpop.f32.mrf.mxu0
      %v1438 = vadd.f32 0.0, %v1437
      %v1439 = vpop.f32.mrf.mxu0
      %1440 = vdwg.mxu0
      %v1441 = vpack.c.bf16 %v1318, %v1315
      %v1442 = vpack.c.bf16 %v1326, %v1323
      %v1443 = vpack.c.bf16 %v1334, %v1331
      %v1444 = vpack.c.bf16 %v1342, %v1339
      %v1445 = vpack.c.bf16 %v1350, %v1347
      %v1446 = vpack.c.bf16 %v1358, %v1355
      %v1447 = vpack.c.bf16 %v1366, %v1363
      %v1448 = vpack.c.bf16 %v1374, %v1371
      %v1449 = vpack.c.bf16 %v1382, %v1379
      %v1450 = vpack.c.bf16 %v1390, %v1387
      %v1451 = vpack.c.bf16 %v1398, %v1395
      %v1452 = vpack.c.bf16 %v1406, %v1403
      %v1453 = vpack.c.bf16 %v1414, %v1411
      %v1454 = vpack.c.bf16 %v1422, %v1419
      %v1455 = vpack.c.bf16 %v1430, %v1427
      %v1456 = vpack.c.bf16 %v1438, %v1435
      %v1473 = vunpack.c.l.b16 %v1441
      %v1474 = vunpack.c.h.b16 %v1441
      %v1475 = vunpack.c.l.b16 %v1442
      %v1476 = vunpack.c.h.b16 %v1442
      %v1477 = vunpack.c.l.b16 %v1443
      %v1478 = vunpack.c.h.b16 %v1443
      %v1479 = vunpack.c.l.b16 %v1444
      %v1480 = vunpack.c.h.b16 %v1444
      %v1481 = vunpack.c.l.b16 %v1445
      %v1482 = vunpack.c.h.b16 %v1445
      %v1483 = vunpack.c.l.b16 %v1446
      %v1484 = vunpack.c.h.b16 %v1446
      %v1485 = vunpack.c.l.b16 %v1447
      %v1486 = vunpack.c.h.b16 %v1447
      %v1487 = vunpack.c.l.b16 %v1448
      %v1488 = vunpack.c.h.b16 %v1448
      %v1489 = vunpack.c.l.b16 %v1449
      %v1490 = vunpack.c.h.b16 %v1449
      %v1491 = vunpack.c.l.b16 %v1450
      %v1492 = vunpack.c.h.b16 %v1450
      %v1493 = vunpack.c.l.b16 %v1451
      %v1494 = vunpack.c.h.b16 %v1451
      %v1495 = vunpack.c.l.b16 %v1452
      %v1496 = vunpack.c.h.b16 %v1452
      %v1497 = vunpack.c.l.b16 %v1453
      %v1498 = vunpack.c.h.b16 %v1453
      %v1499 = vunpack.c.l.b16 %v1454
      %v1500 = vunpack.c.h.b16 %v1454
      %v1501 = vunpack.c.l.b16 %v1455
      %v1502 = vunpack.c.h.b16 %v1455
      %v1503 = vunpack.c.l.b16 %v1456
      %v1504 = vunpack.c.h.b16 %v1456
      %v1505 = vpack.c.b16 %v1473, %v1473
      %v1506 = vpack.c.b16 %v1474, %v1474
      %v1507 = vpack.c.b16 %v1475, %v1475
      %v1508 = vpack.c.b16 %v1476, %v1476
      %v1509 = vpack.c.b16 %v1477, %v1477
      %v1510 = vpack.c.b16 %v1478, %v1478
      %v1511 = vpack.c.b16 %v1479, %v1479
      %v1512 = vpack.c.b16 %v1480, %v1480
      %v1513 = vpack.c.b16 %v1481, %v1481
      %v1514 = vpack.c.b16 %v1482, %v1482
      %v1515 = vpack.c.b16 %v1483, %v1483
      %v1516 = vpack.c.b16 %v1484, %v1484
      %v1517 = vpack.c.b16 %v1485, %v1485
      %v1518 = vpack.c.b16 %v1486, %v1486
      %v1519 = vpack.c.b16 %v1487, %v1487
      %v1520 = vpack.c.b16 %v1488, %v1488
      %v1521 = vpack.c.b16 %v1489, %v1489
      %v1522 = vpack.c.b16 %v1490, %v1490
      %v1523 = vpack.c.b16 %v1491, %v1491
      %v1524 = vpack.c.b16 %v1492, %v1492
      %v1525 = vpack.c.b16 %v1493, %v1493
      %v1526 = vpack.c.b16 %v1494, %v1494
      %v1527 = vpack.c.b16 %v1495, %v1495
      %v1528 = vpack.c.b16 %v1496, %v1496
      %v1529 = vpack.c.b16 %v1497, %v1497
      %v1530 = vpack.c.b16 %v1498, %v1498
      %v1531 = vpack.c.b16 %v1499, %v1499
      %v1532 = vpack.c.b16 %v1500, %v1500
      %v1533 = vpack.c.b16 %v1501, %v1501
      %v1534 = vpack.c.b16 %v1502, %v1502
      %v1535 = vpack.c.b16 %v1503, %v1503
      %v1536 = vpack.c.b16 %v1504, %v1504
      %vm1569 = vcmask 60416
      %1570 = vst.msk [vmem:[%s242] sm:$0xf] %vm1569, %v1505
      %1571 = vst.msk [vmem:[%s242 + $0x4] sm:$0xf] %vm1569, %v1506
      %1572 = vst.msk [vmem:[%s242 + $0x8] sm:$0xf] %vm1569, %v1507
      %1573 = vst.msk [vmem:[%s242 + $0xc] sm:$0xf] %vm1569, %v1508
      %1574 = vst.msk [vmem:[%s242 + $0x10] sm:$0xf] %vm1569, %v1509
      %1575 = vst.msk [vmem:[%s242 + $0x14] sm:$0xf] %vm1569, %v1510
      %1576 = vst.msk [vmem:[%s242 + $0x18] sm:$0xf] %vm1569, %v1511
      %1577 = vst.msk [vmem:[%s242 + $0x1c] sm:$0xf] %vm1569, %v1512
      %1578 = vst.msk [vmem:[%s242 + $0x20] sm:$0xf] %vm1569, %v1513
      %1579 = vst.msk [vmem:[%s242 + $0x24] sm:$0xf] %vm1569, %v1514
      %1580 = vst.msk [vmem:[%s242 + $0x28] sm:$0xf] %vm1569, %v1515
      %1581 = vst.msk [vmem:[%s242 + $0x2c] sm:$0xf] %vm1569, %v1516
      %1582 = vst.msk [vmem:[%s242 + $0x30] sm:$0xf] %vm1569, %v1517
      %1583 = vst.msk [vmem:[%s242 + $0x34] sm:$0xf] %vm1569, %v1518
      %1584 = vst.msk [vmem:[%s242 + $0x38] sm:$0xf] %vm1569, %v1519
      %1585 = vst.msk [vmem:[%s242 + $0x3c] sm:$0xf] %vm1569, %v1520
      %1586 = vst.msk [vmem:[%s242 + $0x40] sm:$0xf] %vm1569, %v1521
      %1587 = vst.msk [vmem:[%s242 + $0x44] sm:$0xf] %vm1569, %v1522
      %1588 = vst.msk [vmem:[%s242 + $0x48] sm:$0xf] %vm1569, %v1523
      %1589 = vst.msk [vmem:[%s242 + $0x4c] sm:$0xf] %vm1569, %v1524
      %1590 = vst.msk [vmem:[%s242 + $0x50] sm:$0xf] %vm1569, %v1525
      %1591 = vst.msk [vmem:[%s242 + $0x54] sm:$0xf] %vm1569, %v1526
      %1592 = vst.msk [vmem:[%s242 + $0x58] sm:$0xf] %vm1569, %v1527
      %1593 = vst.msk [vmem:[%s242 + $0x5c] sm:$0xf] %vm1569, %v1528
      %1594 = vst.msk [vmem:[%s242 + $0x60] sm:$0xf] %vm1569, %v1529
      %1595 = vst.msk [vmem:[%s242 + $0x64] sm:$0xf] %vm1569, %v1530
      %1596 = vst.msk [vmem:[%s242 + $0x68] sm:$0xf] %vm1569, %v1531
      %1597 = vst.msk [vmem:[%s242 + $0x6c] sm:$0xf] %vm1569, %v1532
      %1598 = vst.msk [vmem:[%s242 + $0x70] sm:$0xf] %vm1569, %v1533
      %1599 = vst.msk [vmem:[%s242 + $0x74] sm:$0xf] %vm1569, %v1534
      %1600 = vst.msk [vmem:[%s242 + $0x78] sm:$0xf] %vm1569, %v1535
      %1601 = vst.msk [vmem:[%s242 + $0x7c] sm:$0xf] %vm1569, %v1536
      %v1602 = vsel %vm992, %v1315, 0.0
      %v1603 = vsel %vm992, %v1318, 0.0
      %v1604 = vadd.f32 %v1602, %v1603
      %v1605 = vsel %vm992, %v1323, 0.0
      %v1606 = vadd.f32 %v1604, %v1605
      %v1607 = vsel %vm992, %v1326, 0.0
      %v1608 = vadd.f32 %v1606, %v1607
      %v1609 = vsel %vm992, %v1331, 0.0
      %v1610 = vadd.f32 %v1608, %v1609
      %v1611 = vsel %vm992, %v1334, 0.0
      %v1612 = vadd.f32 %v1610, %v1611
      %v1613 = vsel %vm992, %v1339, 0.0
      %v1614 = vadd.f32 %v1612, %v1613
      %v1615 = vsel %vm992, %v1342, 0.0
      %v1616 = vadd.f32 %v1614, %v1615
      %v1617 = vsel %vm992, %v1347, 0.0
      %v1618 = vadd.f32 %v1616, %v1617
      %v1619 = vsel %vm992, %v1350, 0.0
      %v1620 = vadd.f32 %v1618, %v1619
      %v1621 = vsel %vm992, %v1355, 0.0
      %v1622 = vadd.f32 %v1620, %v1621
      %v1623 = vsel %vm992, %v1358, 0.0
      %v1624 = vadd.f32 %v1622, %v1623
      %v1625 = vsel %vm992, %v1363, 0.0
      %v1626 = vadd.f32 %v1624, %v1625
      %v1627 = vsel %vm992, %v1366, 0.0
      %v1628 = vadd.f32 %v1626, %v1627
      %v1629 = vsel %vm992, %v1371, 0.0
      %v1630 = vadd.f32 %v1628, %v1629
      %v1631 = vsel %vm992, %v1374, 0.0
      %v1632 = vadd.f32 %v1630, %v1631
      %v1633 = vsel %vm992, %v1379, 0.0
      %v1634 = vadd.f32 %v1632, %v1633
      %v1635 = vsel %vm992, %v1382, 0.0
      %v1636 = vadd.f32 %v1634, %v1635
      %v1637 = vsel %vm992, %v1387, 0.0
      %v1638 = vadd.f32 %v1636, %v1637
      %v1639 = vsel %vm992, %v1390, 0.0
      %v1640 = vadd.f32 %v1638, %v1639
      %v1641 = vsel %vm992, %v1395, 0.0
      %v1642 = vadd.f32 %v1640, %v1641
      %v1643 = vsel %vm992, %v1398, 0.0
      %v1644 = vadd.f32 %v1642, %v1643
      %v1645 = vsel %vm992, %v1403, 0.0
      %v1646 = vadd.f32 %v1644, %v1645
      %v1647 = vsel %vm992, %v1406, 0.0
      %v1648 = vadd.f32 %v1646, %v1647
      %v1649 = vsel %vm992, %v1411, 0.0
      %v1650 = vadd.f32 %v1648, %v1649
      %v1651 = vsel %vm992, %v1414, 0.0
      %v1652 = vadd.f32 %v1650, %v1651
      %v1653 = vsel %vm992, %v1419, 0.0
      %v1654 = vadd.f32 %v1652, %v1653
      %v1655 = vsel %vm992, %v1422, 0.0
      %v1656 = vadd.f32 %v1654, %v1655
      %v1657 = vsel %vm992, %v1427, 0.0
      %v1658 = vadd.f32 %v1656, %v1657
      %v1659 = vsel %vm992, %v1430, 0.0
      %v1660 = vadd.f32 %v1658, %v1659
      %v1661 = vsel %vm992, %v1435, 0.0
      %v1662 = vadd.f32 %v1660, %v1661
      %v1663 = vsel %vm992, %v1438, 0.0
      %v1664 = vadd.f32 %v1662, %v1663
      %v1665 = vrot.slane %v1664, 4
      %v1666 = vadd.f32 %v1664, %v1665
      %v1667 = vrot.slane %v1666, 2
      %v1668 = vadd.f32 %v1666, %v1667
      %v1669 = vrot.slane %v1668, 1
      %v1670 = vadd.f32 %v1668, %v1669
      %vm1671 = vcmask 57344
      %1672 = vst.msk [vmem:[%s249] sm:$0x1] %vm1671, %v1670
      %v1673 = vmul.f32 %v1315, %v1315
      %v1674 = vmul.f32 %v1318, %v1318
      %v1675 = vmul.f32 %v1323, %v1323
      %v1676 = vmul.f32 %v1326, %v1326
      %v1677 = vmul.f32 %v1331, %v1331
      %v1678 = vmul.f32 %v1334, %v1334
      %v1679 = vmul.f32 %v1339, %v1339
      %v1680 = vmul.f32 %v1342, %v1342
      %v1681 = vmul.f32 %v1347, %v1347
      %v1682 = vmul.f32 %v1350, %v1350
      %v1683 = vmul.f32 %v1355, %v1355
      %v1684 = vmul.f32 %v1358, %v1358
      %v1685 = vmul.f32 %v1363, %v1363
      %v1686 = vmul.f32 %v1366, %v1366
      %v1687 = vmul.f32 %v1371, %v1371
      %v1688 = vmul.f32 %v1374, %v1374
      %v1689 = vmul.f32 %v1379, %v1379
      %v1690 = vmul.f32 %v1382, %v1382
      %v1691 = vmul.f32 %v1387, %v1387
      %v1692 = vmul.f32 %v1390, %v1390
      %v1693 = vmul.f32 %v1395, %v1395
      %v1694 = vmul.f32 %v1398, %v1398
      %v1695 = vmul.f32 %v1403, %v1403
      %v1696 = vmul.f32 %v1406, %v1406
      %v1697 = vmul.f32 %v1411, %v1411
      %v1698 = vmul.f32 %v1414, %v1414
      %v1699 = vmul.f32 %v1419, %v1419
      %v1700 = vmul.f32 %v1422, %v1422
      %v1701 = vmul.f32 %v1427, %v1427
      %v1702 = vmul.f32 %v1430, %v1430
      %v1703 = vmul.f32 %v1435, %v1435
      %v1704 = vmul.f32 %v1438, %v1438
      %v1705 = vsel %vm992, %v1673, 0.0
      %v1706 = vsel %vm992, %v1674, 0.0
      %v1707 = vadd.f32 %v1705, %v1706
      %v1708 = vsel %vm992, %v1675, 0.0
      %v1709 = vadd.f32 %v1707, %v1708
      %v1710 = vsel %vm992, %v1676, 0.0
      %v1711 = vadd.f32 %v1709, %v1710
      %v1712 = vsel %vm992, %v1677, 0.0
      %v1713 = vadd.f32 %v1711, %v1712
      %v1714 = vsel %vm992, %v1678, 0.0
      %v1715 = vadd.f32 %v1713, %v1714
      %v1716 = vsel %vm992, %v1679, 0.0
      %v1717 = vadd.f32 %v1715, %v1716
      %v1718 = vsel %vm992, %v1680, 0.0
      %v1719 = vadd.f32 %v1717, %v1718
      %v1720 = vsel %vm992, %v1681, 0.0
      %v1721 = vadd.f32 %v1719, %v1720
      %v1722 = vsel %vm992, %v1682, 0.0
      %v1723 = vadd.f32 %v1721, %v1722
      %v1724 = vsel %vm992, %v1683, 0.0
      %v1725 = vadd.f32 %v1723, %v1724
      %v1726 = vsel %vm992, %v1684, 0.0
      %v1727 = vadd.f32 %v1725, %v1726
      %v1728 = vsel %vm992, %v1685, 0.0
      %v1729 = vadd.f32 %v1727, %v1728
      %v1730 = vsel %vm992, %v1686, 0.0
      %v1731 = vadd.f32 %v1729, %v1730
      %v1732 = vsel %vm992, %v1687, 0.0
      %v1733 = vadd.f32 %v1731, %v1732
      %v1734 = vsel %vm992, %v1688, 0.0
      %v1735 = vadd.f32 %v1733, %v1734
      %v1736 = vsel %vm992, %v1689, 0.0
      %v1737 = vadd.f32 %v1735, %v1736
      %v1738 = vsel %vm992, %v1690, 0.0
      %v1739 = vadd.f32 %v1737, %v1738
      %v1740 = vsel %vm992, %v1691, 0.0
      %v1741 = vadd.f32 %v1739, %v1740
      %v1742 = vsel %vm992, %v1692, 0.0
      %v1743 = vadd.f32 %v1741, %v1742
      %v1744 = vsel %vm992, %v1693, 0.0
      %v1745 = vadd.f32 %v1743, %v1744
      %v1746 = vsel %vm992, %v1694, 0.0
      %v1747 = vadd.f32 %v1745, %v1746
      %v1748 = vsel %vm992, %v1695, 0.0
      %v1749 = vadd.f32 %v1747, %v1748
      %v1750 = vsel %vm992, %v1696, 0.0
      %v1751 = vadd.f32 %v1749, %v1750
      %v1752 = vsel %vm992, %v1697, 0.0
      %v1753 = vadd.f32 %v1751, %v1752
      %v1754 = vsel %vm992, %v1698, 0.0
      %v1755 = vadd.f32 %v1753, %v1754
      %v1756 = vsel %vm992, %v1699, 0.0
      %v1757 = vadd.f32 %v1755, %v1756
      %v1758 = vsel %vm992, %v1700, 0.0
      %v1759 = vadd.f32 %v1757, %v1758
      %v1760 = vsel %vm992, %v1701, 0.0
      %v1761 = vadd.f32 %v1759, %v1760
      %v1762 = vsel %vm992, %v1702, 0.0
      %v1763 = vadd.f32 %v1761, %v1762
      %v1764 = vsel %vm992, %v1703, 0.0
      %v1765 = vadd.f32 %v1763, %v1764
      %v1766 = vsel %vm992, %v1704, 0.0
      %v1767 = vadd.f32 %v1765, %v1766
      %v1768 = vrot.slane %v1767, 4
      %v1769 = vadd.f32 %v1767, %v1768
      %v1770 = vrot.slane %v1769, 2
      %v1771 = vadd.f32 %v1769, %v1770
      %v1772 = vrot.slane %v1771, 1
      %v1773 = vadd.f32 %v1771, %v1772
      %1774 = vst.msk [vmem:[%s255] sm:$0x1] %vm1671, %v1773
      %s1775 = smul.u32 16, %s21
      %p1776 = scmp.lt.s32.totalorder %s20, 1
      %s1777 = scalar_select %p1776, %s20, 1
      %p1778 = scmp.lt.s32.totalorder %s1775, 15
      %s1779 = scalar_select %p1778, %s1775, 15
      %s1780 = smul.addr %s1779, 2
      %s1781 = smul.addr %s1777, 32
      %s1782 = sadd.s32 %s1780, %s1781
      %s1783 = smul.addr %s1782, 4
      %s1784 = scalar_lea.vmem %s2, %s1783
      %p1785 = scmp.lt.s32.totalorder %s20, 1
      %s1786 = scalar_select %p1785, %s20, 1
      %p1787 = scmp.lt.s32.totalorder %s21, 0
      %s1788 = scalar_select %p1787, %s21, 0
      %s1789 = sadd.s32 %s1788, %s1786
      %s1790 = scalar_lea.vmem %s3, %s1789
      %p1791 = scmp.lt.s32.totalorder %s20, 1
      %s1792 = scalar_select %p1791, %s20, 1
      %p1793 = scmp.lt.s32.totalorder %s21, 0
      %s1794 = scalar_select %p1793, %s21, 0
      %s1795 = sadd.s32 %s1794, %s1792
      %s1796 = scalar_lea.vmem %s4, %s1795
      // Predicated region
      $region29: #{double_conv.3} parent=27 // pred_check
        %p1797 = pneg %p95
      $region30: #{double_conv.3} parent=27 // pred_check_branch
        %1799 = sbr.rel (%p1797) target = $region32
      $region31: #{double_conv.3} parent=27 // pred_region
        %s1800 = smul.u32 16, %s21
      $region32: #{double_conv.3} parent=27 // pred_fallthru
        _
      // Predicated region
      $region33: #{double_conv.3} parent=27 // pred_check
        %p1801 = pneg %p123
      $region34: #{double_conv.3} parent=27 // pred_check_branch
        %1803 = sbr.rel (%p1801) target = $region36
      $region35: #{double_conv.3} parent=27 // pred_region
        _
      $region36: #{double_conv.3} parent=27 // pred_fallthru
        _
      // Predicated region
      $region37: #{double_conv.3} parent=27 // pred_check
        %p1804 = pneg %p151
      $region38: #{double_conv.3} parent=27 // pred_check_branch
        %1806 = sbr.rel (%p1804) target = $region40
      $region39: #{double_conv.3} parent=27 // pred_region
        _
      $region40: #{double_conv.3} parent=27 // pred_fallthru
        _
    $region28: #{double_conv.3} parent=5 // pred_fallthru
      _
    %p1807 = scmp.le.s32.totalorder 2, %s11
    // Predicated region
    $region41: #{double_conv.3} parent=5 // pred_check
      %p1808 = pneg %p1807
    $region42: #{double_conv.3} parent=5 // pred_check_branch
      %1810 = sbr.rel (%p1808) target = $region44
    $region43: #{double_conv.3} parent=5 // pred_region
      %s1811 = ssub.s32 %s11, 2
      // Predicated region
      $region45: #{double_conv.3} parent=43 // pred_check
        %p1812 = pneg %p101
      $region46: #{double_conv.3} parent=43 // pred_check_branch
        %1814 = sbr.rel (%p1812) target = $region48
      $region47: #{double_conv.3} parent=43 // pred_region
        %s1815 = smul.u32 16, %s23
        %p1816 = scmp.lt.s32.totalorder %s22, 1
        %s1817 = scalar_select %p1816, %s22, 1
        %p1818 = scmp.lt.s32.totalorder %s1815, 15
        %s1819 = scalar_select %p1818, %s1815, 15
        %s1820 = smul.addr %s1819, 2
        %s1821 = smul.addr %s1817, 32
        %s1822 = sadd.s32 %s1820, %s1821
        %s1823 = smul.addr %s1822, 4
        %s1824 = scalar_lea.vmem %s2, %s1823
      $region48: #{double_conv.3} parent=43 // pred_fallthru
        _
      // Predicated region
      $region49: #{double_conv.3} parent=43 // pred_check
        %p1825 = pneg %p129
      $region50: #{double_conv.3} parent=43 // pred_check_branch
        %1827 = sbr.rel (%p1825) target = $region52
      $region51: #{double_conv.3} parent=43 // pred_region
        %p1828 = scmp.lt.s32.totalorder %s22, 1
        %s1829 = scalar_select %p1828, %s22, 1
        %p1830 = scmp.lt.s32.totalorder %s23, 0
        %s1831 = scalar_select %p1830, %s23, 0
        %s1832 = sadd.s32 %s1831, %s1829
        %s1833 = scalar_lea.vmem %s3, %s1832
      $region52: #{double_conv.3} parent=43 // pred_fallthru
        _
      // Predicated region
      $region53: #{double_conv.3} parent=43 // pred_check
        %p1834 = pneg %p157
      $region54: #{double_conv.3} parent=43 // pred_check_branch
        %1836 = sbr.rel (%p1834) target = $region56
      $region55: #{double_conv.3} parent=43 // pred_region
        %p1837 = scmp.lt.s32.totalorder %s22, 1
        %s1838 = scalar_select %p1837, %s22, 1
        %p1839 = scmp.lt.s32.totalorder %s23, 0
        %s1840 = scalar_select %p1839, %s23, 0
        %s1841 = sadd.s32 %s1840, %s1838
        %s1842 = scalar_lea.vmem %s4, %s1841
      $region56: #{double_conv.3} parent=43 // pred_fallthru
        _
    $region44: #{double_conv.3} parent=5 // pred_fallthru
      _
  $region6: #{double_conv.3} parent=0 // loop_footer
    %s15 = sadd.s32 1, %s11
  $region7: #{double_conv.3} parent=0 // loop_footer_branch
    %10 = sbr.rel target = $region3
  $region8: #{double_conv.3} parent=0 // loop_exit
    _

// kernel: double_conv.4
$region0: #{double_conv.4}
  #allocation0 [shape = 'u32[]', space=smem, size = 0x4, offset = 0x4, fixed_abs, tag = 'smem constant byte address 0x4 - core index']
  #allocation1 [shape = 'u32[144,128]{1,0:T(1,128)}', space=vmem, size = 0x12000, scoped, tag = 'internal scratch']
  %s0 = inlined_call_operand.vmem [shape: bf16[2,16,16,8], index: 0, kind: input, shape index: {}]
  %s1 = inlined_call_operand.vmem [shape: bf16[72,8], index: 1, kind: input, shape index: {}]
  %s2 = inlined_call_operand.vmem [shape: f32[1,8], index: 2, kind: input, shape index: {}]
  %s3 = inlined_call_operand.vmem [shape: f32[1,8], index: 3, kind: input, shape index: {}]
  %s4 = inlined_call_operand.vmem [shape: bf16[2,16,16,8], index: 4, kind: output, shape index: {0}]
  %s5 = inlined_call_operand.vmem [shape: f32[2,1,1,8], index: 5, kind: output, shape index: {1}]
  %s6 = inlined_call_operand.vmem [shape: f32[2,1,1,8], index: 6, kind: output, shape index: {2}]
  %7 = xla_tuple %s4, %s5, %s6
  %s8 = sld [smem:[#allocation0]]
  $region65: #{double_conv.4} parent=0
    _
  %s10 = ssub.s32 1, %s8
  %s11 = scalar_select 0, %s10, %s8
  loop: start=0, step=1, limit=4
  $region2: #{double_conv.4} parent=0 // loop_pre_header
    _
  $region3: #{double_conv.4} parent=0 // loop_header
    %s13 = sphi 0, %s17
    %p14 = scmp.ge.s32.totalorder %s13, 4
    %s20 = sphi 0, %s32
    %s21 = sphi 0, %s28
    %s22 = sphi 0, %s20
    %s23 = sphi 0, %s21
    %s24 = sphi 0, %s22
    %s25 = sphi 0, %s23
    %s35 = sphi 0, %s37
    %s38 = sphi 0, %s35
    %s39 = sphi 0, %s38
    %s55 = sphi 0, %s39
    %s59 = sphi 0, %s59
    %s61 = sphi 0, %s59
    %s62 = sphi 0, %s61
    %s76 = sphi 0, %s62
    %s80 = sphi 0, %s80
    %s82 = sphi 0, %s80
    %s83 = sphi 0, %s82
    %s97 = sphi 0, %s83
    %s101 = sphi 0, %s101
    %s103 = sphi 0, %s101
    %s104 = sphi 0, %s103
    %s118 = sphi 0, %s104
    %s126 = sphi 0, %s128
    %s129 = sphi 0, %s126
    %s130 = sphi 0, %s129
    %s146 = sphi 0, %s130
    %s154 = sphi 0, %s156
    %s157 = sphi 0, %s154
    %s158 = sphi 0, %s157
    %s174 = sphi 0, %s158
    %s182 = sphi 0, %s184
    %s185 = sphi 0, %s182
    %s186 = sphi 0, %s185
    %s202 = sphi 0, %s186
  $region4: #{double_conv.4} parent=0 // loop_header_branch
    %16 = sbr.rel (%p14) target = $region8
  $region5: #{double_conv.4} parent=0 // loop_body
    %s18 = ssub.s32 %s13, 1
    %s19 = ssub.s32 %s13, 2
    %s26 = sadd.s32 1, %s21
    %p27 = scmp.ge.s32.totalorder %s26, 1
    %s28 = scalar_select %p27, 0, %s26
    %s29 = sadd.s32 1, %s20
    %s30 = scalar_select %p27, %s29, %s20
    %p31 = scmp.ge.s32.totalorder %s30, 2
    %s32 = scalar_select %p31, 0, %s30
    %s33 = ssub.s32 %s20, %s32
    %p34 = scmp.eq.s32.totalorder %s33, 0
    %s36 = sadd.s32 %s35, 1
    %s37 = scalar_select %p34, %s35, %s36
    %p40 = pneg %p34
    %p41 = scmp.eq.s32.totalorder %s13, 1
    %p42 = por %p40, %p41
    %p43 = scmp.ne.s32.totalorder %s35, %s38
    %p44 = scmp.eq.s32.totalorder %s13, 0
    %p45 = por %p43, %p44
    %p46 = scmp.ne.s32.totalorder %s35, %s38
    %p47 = scmp.eq.s32.totalorder %s18, 1
    %p48 = por %p46, %p47
    %p49 = scmp.ne.s32.totalorder %s38, %s39
    %p50 = scmp.eq.s32.totalorder %s18, 0
    %p51 = por %p49, %p50
    %p52 = scmp.ne.s32.totalorder %s38, %s39
    %p53 = scmp.eq.s32.totalorder %s19, 1
    %p54 = por %p52, %p53
    %p56 = scmp.ne.s32.totalorder %s39, %s55
    %p57 = scmp.eq.s32.totalorder %s19, 0
    %p58 = por %p56, %p57
    %s60 = sadd.s32 %s59, 1
    %p63 = scmp.eq.s32.totalorder %s13, 1
    %p64 = scmp.ne.s32.totalorder %s59, %s61
    %p65 = scmp.eq.s32.totalorder %s13, 0
    %p66 = por %p64, %p65
    %p67 = scmp.ne.s32.totalorder %s59, %s61
    %p68 = scmp.eq.s32.totalorder %s18, 1
    %p69 = por %p67, %p68
    %p70 = scmp.ne.s32.totalorder %s61, %s62
    %p71 = scmp.eq.s32.totalorder %s18, 0
    %p72 = por %p70, %p71
    %p73 = scmp.ne.s32.totalorder %s61, %s62
    %p74 = scmp.eq.s32.totalorder %s19, 1
    %p75 = por %p73, %p74
    %p77 = scmp.ne.s32.totalorder %s62, %s76
    %p78 = scmp.eq.s32.totalorder %s19, 0
    %p79 = por %p77, %p78
    %s81 = sadd.s32 %s80, 1
    %p84 = scmp.eq.s32.totalorder %s13, 1
    %p85 = scmp.ne.s32.totalorder %s80, %s82
    %p86 = scmp.eq.s32.totalorder %s13, 0
    %p87 = por %p85, %p86
    %p88 = scmp.ne.s32.totalorder %s80, %s82
    %p89 = scmp.eq.s32.totalorder %s18, 1
    %p90 = por %p88, %p89
    %p91 = scmp.ne.s32.totalorder %s82, %s83
    %p92 = scmp.eq.s32.totalorder %s18, 0
    %p93 = por %p91, %p92
    %p94 = scmp.ne.s32.totalorder %s82, %s83
    %p95 = scmp.eq.s32.totalorder %s19, 1
    %p96 = por %p94, %p95
    %p98 = scmp.ne.s32.totalorder %s83, %s97
    %p99 = scmp.eq.s32.totalorder %s19, 0
    %p100 = por %p98, %p99
    %s102 = sadd.s32 %s101, 1
    %p105 = scmp.eq.s32.totalorder %s13, 1
    %p106 = scmp.ne.s32.totalorder %s101, %s103
    %p107 = scmp.eq.s32.totalorder %s13, 0
    %p108 = por %p106, %p107
    %p109 = scmp.ne.s32.totalorder %s101, %s103
    %p110 = scmp.eq.s32.totalorder %s18, 1
    %p111 = por %p109, %p110
    %p112 = scmp.ne.s32.totalorder %s103, %s104
    %p113 = scmp.eq.s32.totalorder %s18, 0
    %p114 = por %p112, %p113
    %p115 = scmp.ne.s32.totalorder %s103, %s104
    %p116 = scmp.eq.s32.totalorder %s19, 1
    %p117 = por %p115, %p116
    %p119 = scmp.ne.s32.totalorder %s104, %s118
    %p120 = scmp.eq.s32.totalorder %s19, 0
    %p121 = por %p119, %p120
    %s122 = ssub.s32 %s20, %s32
    %s123 = ssub.s32 %s21, %s28
    %s124 = sor.u32 %s122, %s123
    %p125 = scmp.eq.s32.totalorder %s124, 0
    %s127 = sadd.s32 %s126, 1
    %s128 = scalar_select %p125, %s126, %s127
    %p131 = pneg %p125
    %p132 = scmp.eq.s32.totalorder %s13, 1
    %p133 = por %p131, %p132
    %p134 = scmp.ne.s32.totalorder %s126, %s129
    %p135 = scmp.eq.s32.totalorder %s13, 0
    %p136 = por %p134, %p135
    %p137 = scmp.ne.s32.totalorder %s126, %s129
    %p138 = scmp.eq.s32.totalorder %s18, 1
    %p139 = por %p137, %p138
    %p140 = scmp.ne.s32.totalorder %s129, %s130
    %p141 = scmp.eq.s32.totalorder %s18, 0
    %p142 = por %p140, %p141
    %p143 = scmp.ne.s32.totalorder %s129, %s130
    %p144 = scmp.eq.s32.totalorder %s19, 1
    %p145 = por %p143, %p144
    %p147 = scmp.ne.s32.totalorder %s130, %s146
    %p148 = scmp.eq.s32.totalorder %s19, 0
    %p149 = por %p147, %p148
    %s150 = ssub.s32 %s20, %s32
    %s151 = ssub.s32 %s21, %s28
    %s152 = sor.u32 %s150, %s151
    %p153 = scmp.eq.s32.totalorder %s152, 0
    %s155 = sadd.s32 %s154, 1
    %s156 = scalar_select %p153, %s154, %s155
    %p159 = pneg %p153
    %p160 = scmp.eq.s32.totalorder %s13, 1
    %p161 = por %p159, %p160
    %p162 = scmp.ne.s32.totalorder %s154, %s157
    %p163 = scmp.eq.s32.totalorder %s13, 0
    %p164 = por %p162, %p163
    %p165 = scmp.ne.s32.totalorder %s154, %s157
    %p166 = scmp.eq.s32.totalorder %s18, 1
    %p167 = por %p165, %p166
    %p168 = scmp.ne.s32.totalorder %s157, %s158
    %p169 = scmp.eq.s32.totalorder %s18, 0
    %p170 = por %p168, %p169
    %p171 = scmp.ne.s32.totalorder %s157, %s158
    %p172 = scmp.eq.s32.totalorder %s19, 1
    %p173 = por %p171, %p172
    %p175 = scmp.ne.s32.totalorder %s158, %s174
    %p176 = scmp.eq.s32.totalorder %s19, 0
    %p177 = por %p175, %p176
    %s178 = ssub.s32 %s20, %s32
    %s179 = ssub.s32 %s21, %s28
    %s180 = sor.u32 %s178, %s179
    %p181 = scmp.eq.s32.totalorder %s180, 0
    %s183 = sadd.s32 %s182, 1
    %s184 = scalar_select %p181, %s182, %s183
    %p187 = pneg %p181
    %p188 = scmp.eq.s32.totalorder %s13, 1
    %p189 = por %p187, %p188
    %p190 = scmp.ne.s32.totalorder %s182, %s185
    %p191 = scmp.eq.s32.totalorder %s13, 0
    %p192 = por %p190, %p191
    %p193 = scmp.ne.s32.totalorder %s182, %s185
    %p194 = scmp.eq.s32.totalorder %s18, 1
    %p195 = por %p193, %p194
    %p196 = scmp.ne.s32.totalorder %s185, %s186
    %p197 = scmp.eq.s32.totalorder %s18, 0
    %p198 = por %p196, %p197
    %p199 = scmp.ne.s32.totalorder %s185, %s186
    %p200 = scmp.eq.s32.totalorder %s19, 1
    %p201 = por %p199, %p200
    %p203 = scmp.ne.s32.totalorder %s186, %s202
    %p204 = scmp.eq.s32.totalorder %s19, 0
    %p205 = por %p203, %p204
    %p206 = scmp.le.s32.totalorder 1, %s13
    %p207 = scmp.lt.s32.totalorder %s13, 3
    %p208 = pnand %p206, %p207
    %p209 = pneg %p208
    // Predicated region
    $region9: #{double_conv.4} parent=5 // pred_check
      _
    $region10: #{double_conv.4} parent=5 // pred_check_branch
      %211 = sbr.rel (%p208) target = $region12
    $region11: #{double_conv.4} parent=5 // pred_region
      %s212 = ssub.s32 %s13, 1
      // Predicated region
      $region13: #{double_conv.4} parent=11 // pred_check
        %p213 = pneg %p72
      $region14: #{double_conv.4} parent=11 // pred_check_branch
        %215 = sbr.rel (%p213) target = $region16
      $region15: #{double_conv.4} parent=11 // pred_region
        _
      $region16: #{double_conv.4} parent=11 // pred_fallthru
        _
      // Predicated region
      $region17: #{double_conv.4} parent=11 // pred_check
        %p216 = pneg %p93
      $region18: #{double_conv.4} parent=11 // pred_check_branch
        %218 = sbr.rel (%p216) target = $region20
      $region19: #{double_conv.4} parent=11 // pred_region
        _
      $region20: #{double_conv.4} parent=11 // pred_fallthru
        _
      // Predicated region
      $region21: #{double_conv.4} parent=11 // pred_check
        %p219 = pneg %p114
      $region22: #{double_conv.4} parent=11 // pred_check_branch
        %221 = sbr.rel (%p219) target = $region24
      $region23: #{double_conv.4} parent=11 // pred_region
        _
      $region24: #{double_conv.4} parent=11 // pred_fallthru
        _
    $region12: #{double_conv.4} parent=5 // pred_fallthru
      _
    %p222 = scmp.lt.s32.totalorder %s13, 2
    // Predicated region
    $region25: #{double_conv.4} parent=5 // pred_check
      %p223 = pneg %p222
    $region26: #{double_conv.4} parent=5 // pred_check_branch
      %225 = sbr.rel (%p223) target = $region28
    $region27: #{double_conv.4} parent=5 // pred_region
      // Predicated region
      $region29: #{double_conv.4} parent=27 // pred_check
        %p226 = pneg %p45
      $region30: #{double_conv.4} parent=27 // pred_check_branch
        %228 = sbr.rel (%p226) target = $region32
      $region31: #{double_conv.4} parent=27 // pred_region
        %p229 = scmp.lt.s32.totalorder %s20, 1
        %s230 = scalar_select %p229, %s20, 1
        %s231 = smul.addr %s230, 32
        %s232 = smul.addr %s231, 4
        %s233 = scalar_lea.vmem %s0, %s232
      $region32: #{double_conv.4} parent=27 // pred_fallthru
        _
    $region28: #{double_conv.4} parent=5 // pred_fallthru
      _
    %p234 = scmp.le.s32.totalorder 1, %s13
    %p235 = scmp.lt.s32.totalorder %s13, 3
    %p236 = pnand %p234, %p235
    %p237 = pneg %p236
    // Predicated region
    $region33: #{double_conv.4} parent=5 // pred_check
      _
    $region34: #{double_conv.4} parent=5 // pred_check_branch
      %239 = sbr.rel (%p236) target = $region36
    $region35: #{double_conv.4} parent=5 // pred_region
      %s240 = ssub.s32 %s13, 1
      %p241 = scmp.lt.s32.totalorder %s22, 1
      %s242 = scalar_select %p241, %s22, 1
      %s243 = smul.addr %s242, 32
      %s244 = smul.addr %s243, 4
      %s245 = scalar_lea.vmem %s0, %s244
      %p246 = pneg %p51
      %p247 = pneg %p48
      %p248 = pneg %p72
      %p249 = pneg %p69
      %p250 = pneg %p93
      %p251 = pneg %p90
      %p252 = pneg %p114
      %p253 = pneg %p111
      %p254 = pneg %p142
      %p255 = pneg %p139
      %s256 = smul.u32 16, %s23
      %p257 = scmp.lt.s32.totalorder %s22, 1
      %s258 = scalar_select %p257, %s22, 1
      %p259 = scmp.lt.s32.totalorder %s256, 15
      %s260 = scalar_select %p259, %s256, 15
      %s261 = smul.addr %s260, 2
      %s262 = smul.addr %s258, 32
      %s263 = sadd.s32 %s261, %s262
      %s264 = smul.addr %s263, 4
      %s265 = scalar_lea.vmem %s4, %s264
      %p266 = pneg %p170
      %p267 = pneg %p167
      %p268 = scmp.lt.s32.totalorder %s22, 1
      %s269 = scalar_select %p268, %s22, 1
      %p270 = scmp.lt.s32.totalorder %s23, 0
      %s271 = scalar_select %p270, %s23, 0
      %s272 = sadd.s32 %s271, %s269
      %s273 = scalar_lea.vmem %s5, %s272
      %p274 = pneg %p198
      %p275 = pneg %p195
      %p276 = scmp.lt.s32.totalorder %s22, 1
      %s277 = scalar_select %p276, %s22, 1
      %p278 = scmp.lt.s32.totalorder %s23, 0
      %s279 = scalar_select %p278, %s23, 0
      %s280 = sadd.s32 %s279, %s277
      %s281 = scalar_lea.vmem %s6, %s280
      %p282 = scmp.lt.s32.totalorder %s22, 1
      %s283 = scalar_select %p282, %s22, 1
      %s284 = smul.addr %s283, 32
      %s285 = smul.addr %s284, 4
      %s286 = scalar_lea.vmem %s0, %s285
      %s287 = smul.u32 16, %s23
      %p288 = scmp.lt.s32.totalorder %s22, 1
      %s289 = scalar_select %p288, %s22, 1
      %p290 = scmp.lt.s32.totalorder %s287, 15
      %s291 = scalar_select %p290, %s287, 15
      %s292 = smul.addr %s291, 2
      %s293 = smul.addr %s289, 32
      %s294 = sadd.s32 %s292, %s293
      %s295 = smul.addr %s294, 4
      %s296 = scalar_lea.vmem %s4, %s295
      %s297 = smul.u32 16, %s23
      %p298 = scmp.lt.s32.totalorder %s22, 1
      %s299 = scalar_select %p298, %s22, 1
      %p300 = scmp.lt.s32.totalorder %s23, 0
      %s301 = scalar_select %p300, %s23, 0
      %s302 = sadd.s32 %s301, %s299
      %s303 = scalar_lea.vmem %s5, %s302
      %p304 = scmp.lt.s32.totalorder %s22, 1
      %s305 = scalar_select %p304, %s22, 1
      %p306 = scmp.lt.s32.totalorder %s23, 0
      %s307 = scalar_select %p306, %s23, 0
      %s308 = sadd.s32 %s307, %s305
      %s309 = scalar_lea.vmem %s6, %s308
      %s311 = smul.u32 %s23, 16
      %v312 = vld [vmem:[%s2] sm:$0x1]
      %v313 = vld [vmem:[%s3] sm:$0x1]
      %s314 = smul.u32 %s311, 2
      %s315 = smul.addr %s314, 4
      %s316 = scalar_lea.vmem %s286, %s315
      %v317 = vld [vmem:[%s316] sm:$0xf]
      %v318 = vld [vmem:[%s316 + $0x4] sm:$0xf]
      %v319 = vld [vmem:[%s316 + $0x8] sm:$0xf]
      %v320 = vld [vmem:[%s316 + $0xc] sm:$0xf]
      %v321 = vld [vmem:[%s316 + $0x10] sm:$0xf]
      %v322 = vld [vmem:[%s316 + $0x14] sm:$0xf]
      %v323 = vld [vmem:[%s316 + $0x18] sm:$0xf]
      %v324 = vld [vmem:[%s316 + $0x1c] sm:$0xf]
      %v325 = vld [vmem:[%s316 + $0x20] sm:$0xf]
      %v326 = vld [vmem:[%s316 + $0x24] sm:$0xf]
      %v327 = vld [vmem:[%s316 + $0x28] sm:$0xf]
      %v328 = vld [vmem:[%s316 + $0x2c] sm:$0xf]
      %v329 = vld [vmem:[%s316 + $0x30] sm:$0xf]
      %v330 = vld [vmem:[%s316 + $0x34] sm:$0xf]
      %v331 = vld [vmem:[%s316 + $0x38] sm:$0xf]
      %v332 = vld [vmem:[%s316 + $0x3c] sm:$0xf]
      %v333 = vld [vmem:[%s316 + $0x40] sm:$0xf]
      %v334 = vld [vmem:[%s316 + $0x44] sm:$0xf]
      %v335 = vld [vmem:[%s316 + $0x48] sm:$0xf]
      %v336 = vld [vmem:[%s316 + $0x4c] sm:$0xf]
      %v337 = vld [vmem:[%s316 + $0x50] sm:$0xf]
      %v338 = vld [vmem:[%s316 + $0x54] sm:$0xf]
      %v339 = vld [vmem:[%s316 + $0x58] sm:$0xf]
      %v340 = vld [vmem:[%s316 + $0x5c] sm:$0xf]
      %v341 = vld [vmem:[%s316 + $0x60] sm:$0xf]
      %v342 = vld [vmem:[%s316 + $0x64] sm:$0xf]
      %v343 = vld [vmem:[%s316 + $0x68] sm:$0xf]
      %v344 = vld [vmem:[%s316 + $0x6c] sm:$0xf]
      %v345 = vld [vmem:[%s316 + $0x70] sm:$0xf]
      %v346 = vld [vmem:[%s316 + $0x74] sm:$0xf]
      %v347 = vld [vmem:[%s316 + $0x78] sm:$0xf]
      %v348 = vld [vmem:[%s316 + $0x7c] sm:$0xf]
      %v349 = vunpack.c.l.bf16 %v317
      %v350 = vunpack.c.l.bf16 %v318
      %v351 = vunpack.c.l.bf16 %v319
      %v352 = vunpack.c.l.bf16 %v320
      %v353 = vunpack.c.l.bf16 %v321
      %v354 = vunpack.c.l.bf16 %v322
      %v355 = vunpack.c.l.bf16 %v323
      %v356 = vunpack.c.l.bf16 %v324
      %v357 = vunpack.c.l.bf16 %v325
      %v358 = vunpack.c.l.bf16 %v326
      %v359 = vunpack.c.l.bf16 %v327
      %v360 = vunpack.c.l.bf16 %v328
      %v361 = vunpack.c.l.bf16 %v329
      %v362 = vunpack.c.l.bf16 %v330
      %v363 = vunpack.c.l.bf16 %v331
      %v364 = vunpack.c.l.bf16 %v332
      %v365 = vunpack.c.l.bf16 %v333
      %v366 = vunpack.c.l.bf16 %v334
      %v367 = vunpack.c.l.bf16 %v335
      %v368 = vunpack.c.l.bf16 %v336
      %v369 = vunpack.c.l.bf16 %v337
      %v370 = vunpack.c.l.bf16 %v338
      %v371 = vunpack.c.l.bf16 %v339
      %v372 = vunpack.c.l.bf16 %v340
      %v373 = vunpack.c.l.bf16 %v341
      %v374 = vunpack.c.l.bf16 %v342
      %v375 = vunpack.c.l.bf16 %v343
      %v376 = vunpack.c.l.bf16 %v344
      %v377 = vunpack.c.l.bf16 %v345
      %v378 = vunpack.c.l.bf16 %v346
      %v379 = vunpack.c.l.bf16 %v347
      %v380 = vunpack.c.l.bf16 %v348
      %v382 = vlaneseq
      %v383 = vshrl.u32 %v382, 7
      %v384 = vsub.s32 0, %v383
      %v385 = vrot.slane %v312, %v384
      %v387 = vmul.f32 %v349, %v385
      %v388 = vmul.f32 %v350, %v385
      %v389 = vmul.f32 %v351, %v385
      %v390 = vmul.f32 %v352, %v385
      %v391 = vmul.f32 %v353, %v385
      %v392 = vmul.f32 %v354, %v385
      %v393 = vmul.f32 %v355, %v385
      %v394 = vmul.f32 %v356, %v385
      %v395 = vmul.f32 %v357, %v385
      %v396 = vmul.f32 %v358, %v385
      %v397 = vmul.f32 %v359, %v385
      %v398 = vmul.f32 %v360, %v385
      %v399 = vmul.f32 %v361, %v385
      %v400 = vmul.f32 %v362, %v385
      %v401 = vmul.f32 %v363, %v385
      %v402 = vmul.f32 %v364, %v385
      %v403 = vmul.f32 %v365, %v385
      %v404 = vmul.f32 %v366, %v385
      %v405 = vmul.f32 %v367, %v385
      %v406 = vmul.f32 %v368, %v385
      %v407 = vmul.f32 %v369, %v385
      %v408 = vmul.f32 %v370, %v385
      %v409 = vmul.f32 %v371, %v385
      %v410 = vmul.f32 %v372, %v385
      %v411 = vmul.f32 %v373, %v385
      %v412 = vmul.f32 %v374, %v385
      %v413 = vmul.f32 %v375, %v385
      %v414 = vmul.f32 %v376, %v385
      %v415 = vmul.f32 %v377, %v385
      %v416 = vmul.f32 %v378, %v385
      %v417 = vmul.f32 %v379, %v385
      %v418 = vmul.f32 %v380, %v385
      %v420 = vlaneseq
      %v421 = vshrl.u32 %v420, 7
      %v422 = vsub.s32 0, %v421
      %v423 = vrot.slane %v313, %v422
      %v425 = vadd.f32 %v387, %v423
      %v426 = vadd.f32 %v388, %v423
      %v427 = vadd.f32 %v389, %v423
      %v428 = vadd.f32 %v390, %v423
      %v429 = vadd.f32 %v391, %v423
      %v430 = vadd.f32 %v392, %v423
      %v431 = vadd.f32 %v393, %v423
      %v432 = vadd.f32 %v394, %v423
      %v433 = vadd.f32 %v395, %v423
      %v434 = vadd.f32 %v396, %v423
      %v435 = vadd.f32 %v397, %v423
      %v436 = vadd.f32 %v398, %v423
      %v437 = vadd.f32 %v399, %v423
      %v438 = vadd.f32 %v400, %v423
      %v439 = vadd.f32 %v401, %v423
      %v440 = vadd.f32 %v402, %v423
      %v441 = vadd.f32 %v403, %v423
      %v442 = vadd.f32 %v404, %v423
      %v443 = vadd.f32 %v405, %v423
      %v444 = vadd.f32 %v406, %v423
      %v445 = vadd.f32 %v407, %v423
      %v446 = vadd.f32 %v408, %v423
      %v447 = vadd.f32 %v409, %v423
      %v448 = vadd.f32 %v410, %v423
      %v449 = vadd.f32 %v411, %v423
      %v450 = vadd.f32 %v412, %v423
      %v451 = vadd.f32 %v413, %v423
      %v452 = vadd.f32 %v414, %v423
      %v453 = vadd.f32 %v415, %v423
      %v454 = vadd.f32 %v416, %v423
      %v455 = vadd.f32 %v417, %v423
      %v456 = vadd.f32 %v418, %v423
      %v457 = vmax.f32 %v425, 0.0
      %v458 = vmax.f32 %v426, 0.0
      %v459 = vmax.f32 %v427, 0.0
      %v460 = vmax.f32 %v428, 0.0
      %v461 = vmax.f32 %v429, 0.0
      %v462 = vmax.f32 %v430, 0.0
      %v463 = vmax.f32 %v431, 0.0
      %v464 = vmax.f32 %v432, 0.0
      %v465 = vmax.f32 %v433, 0.0
      %v466 = vmax.f32 %v434, 0.0
      %v467 = vmax.f32 %v435, 0.0
      %v468 = vmax.f32 %v436, 0.0
      %v469 = vmax.f32 %v437, 0.0
      %v470 = vmax.f32 %v438, 0.0
      %v471 = vmax.f32 %v439, 0.0
      %v472 = vmax.f32 %v440, 0.0
      %v473 = vmax.f32 %v441, 0.0
      %v474 = vmax.f32 %v442, 0.0
      %v475 = vmax.f32 %v443, 0.0
      %v476 = vmax.f32 %v444, 0.0
      %v477 = vmax.f32 %v445, 0.0
      %v478 = vmax.f32 %v446, 0.0
      %v479 = vmax.f32 %v447, 0.0
      %v480 = vmax.f32 %v448, 0.0
      %v481 = vmax.f32 %v449, 0.0
      %v482 = vmax.f32 %v450, 0.0
      %v483 = vmax.f32 %v451, 0.0
      %v484 = vmax.f32 %v452, 0.0
      %v485 = vmax.f32 %v453, 0.0
      %v486 = vmax.f32 %v454, 0.0
      %v487 = vmax.f32 %v455, 0.0
      %v488 = vmax.f32 %v456, 0.0
      %v489 = vpack.c.bf16 %v458, %v457
      %v490 = vpack.c.bf16 %v460, %v459
      %v491 = vpack.c.bf16 %v462, %v461
      %v492 = vpack.c.bf16 %v464, %v463
      %v493 = vpack.c.bf16 %v466, %v465
      %v494 = vpack.c.bf16 %v468, %v467
      %v495 = vpack.c.bf16 %v470, %v469
      %v496 = vpack.c.bf16 %v472, %v471
      %v497 = vpack.c.bf16 %v474, %v473
      %v498 = vpack.c.bf16 %v476, %v475
      %v499 = vpack.c.bf16 %v478, %v477
      %v500 = vpack.c.bf16 %v480, %v479
      %v501 = vpack.c.bf16 %v482, %v481
      %v502 = vpack.c.bf16 %v484, %v483
      %v503 = vpack.c.bf16 %v486, %v485
      %v504 = vpack.c.bf16 %v488, %v487
      %s505 = ssub.s32 %s311, 1
      %p506 = scmp.gt.s32.totalorder %s505, 0
      %s507 = scalar_select %p506, %s505, 0
      %s508 = smul.u32 %s507, 2
      %s509 = smul.addr %s508, 4
      %s510 = scalar_lea.vmem %s286, %s509
      %v511 = vld [vmem:[%s510] sm:$0xf]
      %v512 = vld [vmem:[%s510 + $0x4] sm:$0xf]
      %v513 = vunpack.c.l.bf16 %v511
      %v514 = vunpack.c.l.bf16 %v512
      %v515 = vmul.f32 %v513, %v385
      %v516 = vmul.f32 %v514, %v385
      %v517 = vadd.f32 %v515, %v423
      %v518 = vadd.f32 %v516, %v423
      %v519 = vmax.f32 %v517, 0.0
      %v520 = vmax.f32 %v518, 0.0
      %v521 = vpack.c.bf16 %v520, %v519
      %s522 = sadd.s32 %s311, 16
      %p523 = scmp.lt.s32.totalorder %s522, 15
      %s524 = scalar_select %p523, %s522, 15
      %s525 = smul.u32 %s524, 2
      %s526 = smul.addr %s525, 4
      %s527 = scalar_lea.vmem %s286, %s526
      %v528 = vld [vmem:[%s527] sm:$0xf]
      %v529 = vld [vmem:[%s527 + $0x4] sm:$0xf]
      %v530 = vunpack.c.l.bf16 %v528
      %v531 = vunpack.c.l.bf16 %v529
      %v532 = vmul.f32 %v530, %v385
      %v533 = vmul.f32 %v531, %v385
      %v534 = vadd.f32 %v532, %v423
      %v535 = vadd.f32 %v533, %v423
      %v536 = vmax.f32 %v534, 0.0
      %v537 = vmax.f32 %v535, 0.0
      %v538 = vpack.c.bf16 %v537, %v536
      %p539 = scmp.gt.s32.totalorder %s23, 0
      %s540 = scalar_select %p539, 1, 0
      %v541 = vstv %s540
      %vm542 = vcmp.eq.s32.totalorder %v541, 1
      %v543 = vsel %vm542, %v521, 0
      %s544 = sadd.s32 %s23, 1
      %p545 = scmp.lt.s32.totalorder %s544, 1
      %s546 = scalar_select %p545, 1, 0
      %v547 = vstv %s546
      %vm548 = vcmp.eq.s32.totalorder %v547, 1
      %v549 = vsel %vm548, %v538, 0
      %v551 = vshrl.u32 %v543, 16
      %v553 = vrot.slane %v551, 7
      %v554 = vshll.u32 %v543, 16
      %v556 = vor.u32 %v553, %v554
      %v558 = vshrl.u32 %v489, 16
      %v560 = vrot.slane %v558, 7
      %v561 = vshll.u32 %v489, 16
      %v563 = vor.u32 %v560, %v561
      %v565 = vshrl.u32 %v490, 16
      %v567 = vrot.slane %v565, 7
      %v568 = vshll.u32 %v490, 16
      %v570 = vor.u32 %v567, %v568
      %v572 = vshrl.u32 %v491, 16
      %v574 = vrot.slane %v572, 7
      %v575 = vshll.u32 %v491, 16
      %v577 = vor.u32 %v574, %v575
      %v579 = vshrl.u32 %v492, 16
      %v581 = vrot.slane %v579, 7
      %v582 = vshll.u32 %v492, 16
      %v584 = vor.u32 %v581, %v582
      %v586 = vshrl.u32 %v493, 16
      %v588 = vrot.slane %v586, 7
      %v589 = vshll.u32 %v493, 16
      %v591 = vor.u32 %v588, %v589
      %v593 = vshrl.u32 %v494, 16
      %v595 = vrot.slane %v593, 7
      %v596 = vshll.u32 %v494, 16
      %v598 = vor.u32 %v595, %v596
      %v600 = vshrl.u32 %v495, 16
      %v602 = vrot.slane %v600, 7
      %v603 = vshll.u32 %v495, 16
      %v605 = vor.u32 %v602, %v603
      %v607 = vshrl.u32 %v496, 16
      %v609 = vrot.slane %v607, 7
      %v610 = vshll.u32 %v496, 16
      %v612 = vor.u32 %v609, %v610
      %v614 = vshrl.u32 %v497, 16
      %v616 = vrot.slane %v614, 7
      %v617 = vshll.u32 %v497, 16
      %v619 = vor.u32 %v616, %v617
      %v621 = vshrl.u32 %v498, 16
      %v623 = vrot.slane %v621, 7
      %v624 = vshll.u32 %v498, 16
      %v626 = vor.u32 %v623, %v624
      %v628 = vshrl.u32 %v499, 16
      %v630 = vrot.slane %v628, 7
      %v631 = vshll.u32 %v499, 16
      %v633 = vor.u32 %v630, %v631
      %v635 = vshrl.u32 %v500, 16
      %v637 = vrot.slane %v635, 7
      %v638 = vshll.u32 %v500, 16
      %v640 = vor.u32 %v637, %v638
      %v642 = vshrl.u32 %v501, 16
      %v644 = vrot.slane %v642, 7
      %v645 = vshll.u32 %v501, 16
      %v647 = vor.u32 %v644, %v645
      %v649 = vshrl.u32 %v502, 16
      %v651 = vrot.slane %v649, 7
      %v652 = vshll.u32 %v502, 16
      %v654 = vor.u32 %v651, %v652
      %v656 = vshrl.u32 %v503, 16
      %v658 = vrot.slane %v656, 7
      %v659 = vshll.u32 %v503, 16
      %v661 = vor.u32 %v658, %v659
      %v663 = vshrl.u32 %v504, 16
      %v665 = vrot.slane %v663, 7
      %v666 = vshll.u32 %v504, 16
      %v668 = vor.u32 %v665, %v666
      %v670 = vshrl.u32 %v549, 16
      %v672 = vrot.slane %v670, 7
      %v673 = vshll.u32 %v549, 16
      %v675 = vor.u32 %v672, %v673
      %vm694 = vcmask 1040384
      %vm695 = vsmask.f32 256
      %vm696 = vmand %vm694, %vm695
      %v697 = vsel %vm696, 0, %v556
      %v698 = vsel %vm696, 0, %v563
      %v699 = vsel %vm696, 0, %v570
      %v700 = vsel %vm696, 0, %v577
      %v701 = vsel %vm696, 0, %v584
      %v702 = vsel %vm696, 0, %v591
      %v703 = vsel %vm696, 0, %v598
      %v704 = vsel %vm696, 0, %v605
      %v705 = vsel %vm696, 0, %v612
      %v706 = vsel %vm696, 0, %v619
      %v707 = vsel %vm696, 0, %v626
      %v708 = vsel %vm696, 0, %v633
      %v709 = vsel %vm696, 0, %v640
      %v710 = vsel %vm696, 0, %v647
      %v711 = vsel %vm696, 0, %v654
      %v712 = vsel %vm696, 0, %v661
      %v713 = vsel %vm696, 0, %v668
      %v714 = vsel %vm696, 0, %v675
      %v715 = vrot.slane %v554, 1
      %v716 = vor.u32 %v551, %v715
      %v717 = vrot.slane %v561, 1
      %v718 = vor.u32 %v558, %v717
      %v719 = vrot.slane %v568, 1
      %v720 = vor.u32 %v565, %v719
      %v721 = vrot.slane %v575, 1
      %v722 = vor.u32 %v572, %v721
      %v723 = vrot.slane %v582, 1
      %v724 = vor.u32 %v579, %v723
      %v725 = vrot.slane %v589, 1
      %v726 = vor.u32 %v586, %v725
      %v727 = vrot.slane %v596, 1
      %v728 = vor.u32 %v593, %v727
      %v729 = vrot.slane %v603, 1
      %v730 = vor.u32 %v600, %v729
      %v731 = vrot.slane %v610, 1
      %v732 = vor.u32 %v607, %v731
      %v733 = vrot.slane %v617, 1
      %v734 = vor.u32 %v614, %v733
      %v735 = vrot.slane %v624, 1
      %v736 = vor.u32 %v621, %v735
      %v737 = vrot.slane %v631, 1
      %v738 = vor.u32 %v628, %v737
      %v739 = vrot.slane %v638, 1
      %v740 = vor.u32 %v635, %v739
      %v741 = vrot.slane %v645, 1
      %v742 = vor.u32 %v642, %v741
      %v743 = vrot.slane %v652, 1
      %v744 = vor.u32 %v649, %v743
      %v745 = vrot.slane %v659, 1
      %v746 = vor.u32 %v656, %v745
      %v747 = vrot.slane %v666, 1
      %v748 = vor.u32 %v663, %v747
      %v749 = vrot.slane %v673, 1
      %v750 = vor.u32 %v670, %v749
      %vm769 = vcmask 1047552
      %vm770 = vsmask.f32 7424
      %vm771 = vmand %vm769, %vm770
      %v772 = vsel %vm771, %v716, 0
      %v773 = vsel %vm771, %v718, 0
      %v774 = vsel %vm771, %v720, 0
      %v775 = vsel %vm771, %v722, 0
      %v776 = vsel %vm771, %v724, 0
      %v777 = vsel %vm771, %v726, 0
      %v778 = vsel %vm771, %v728, 0
      %v779 = vsel %vm771, %v730, 0
      %v780 = vsel %vm771, %v732, 0
      %v781 = vsel %vm771, %v734, 0
      %v782 = vsel %vm771, %v736, 0
      %v783 = vsel %vm771, %v738, 0
      %v784 = vsel %vm771, %v740, 0
      %v785 = vsel %vm771, %v742, 0
      %v786 = vsel %vm771, %v744, 0
      %v787 = vsel %vm771, %v746, 0
      %v788 = vsel %vm771, %v748, 0
      %v789 = vsel %vm771, %v750, 0
      %806 = vrot.lane.b32.xlu0 %v543, 8
      %v807 = vpop.permute.xlu0 %806
      %808 = vrot.lane.b32.xlu0 %v489, 8
      %v809 = vpop.permute.xlu0 %808
      %810 = vrot.lane.b32.xlu0 %v490, 8
      %v811 = vpop.permute.xlu0 %810
      %812 = vrot.lane.b32.xlu0 %v491, 8
      %v813 = vpop.permute.xlu0 %812
      %814 = vrot.lane.b32.xlu0 %v492, 8
      %v815 = vpop.permute.xlu0 %814
      %816 = vrot.lane.b32.xlu0 %v493, 8
      %v817 = vpop.permute.xlu0 %816
      %818 = vrot.lane.b32.xlu0 %v494, 8
      %v819 = vpop.permute.xlu0 %818
      %820 = vrot.lane.b32.xlu0 %v495, 8
      %v821 = vpop.permute.xlu0 %820
      %822 = vrot.lane.b32.xlu0 %v496, 8
      %v823 = vpop.permute.xlu0 %822
      %824 = vrot.lane.b32.xlu0 %v497, 8
      %v825 = vpop.permute.xlu0 %824
      %826 = vrot.lane.b32.xlu0 %v498, 8
      %v827 = vpop.permute.xlu0 %826
      %828 = vrot.lane.b32.xlu0 %v499, 8
      %v829 = vpop.permute.xlu0 %828
      %830 = vrot.lane.b32.xlu0 %v500, 8
      %v831 = vpop.permute.xlu0 %830
      %832 = vrot.lane.b32.xlu0 %v501, 8
      %v833 = vpop.permute.xlu0 %832
      %834 = vrot.lane.b32.xlu0 %v502, 8
      %v835 = vpop.permute.xlu0 %834
      %836 = vrot.lane.b32.xlu0 %v503, 8
      %v837 = vpop.permute.xlu0 %836
      %854 = vrot.lane.b32.xlu0 %v772, 16
      %v855 = vpop.permute.xlu0 %854
      %856 = vrot.lane.b32.xlu0 %v773, 16
      %v857 = vpop.permute.xlu0 %856
      %858 = vrot.lane.b32.xlu0 %v774, 16
      %v859 = vpop.permute.xlu0 %858
      %860 = vrot.lane.b32.xlu0 %v775, 16
      %v861 = vpop.permute.xlu0 %860
      %862 = vrot.lane.b32.xlu0 %v776, 16
      %v863 = vpop.permute.xlu0 %862
      %864 = vrot.lane.b32.xlu0 %v777, 16
      %v865 = vpop.permute.xlu0 %864
      %866 = vrot.lane.b32.xlu0 %v778, 16
      %v867 = vpop.permute.xlu0 %866
      %868 = vrot.lane.b32.xlu0 %v779, 16
      %v869 = vpop.permute.xlu0 %868
      %870 = vrot.lane.b32.xlu0 %v780, 16
      %v871 = vpop.permute.xlu0 %870
      %872 = vrot.lane.b32.xlu0 %v781, 16
      %v873 = vpop.permute.xlu0 %872
      %874 = vrot.lane.b32.xlu0 %v782, 16
      %v875 = vpop.permute.xlu0 %874
      %876 = vrot.lane.b32.xlu0 %v783, 16
      %v877 = vpop.permute.xlu0 %876
      %878 = vrot.lane.b32.xlu0 %v784, 16
      %v879 = vpop.permute.xlu0 %878
      %880 = vrot.lane.b32.xlu0 %v785, 16
      %v881 = vpop.permute.xlu0 %880
      %882 = vrot.lane.b32.xlu0 %v786, 16
      %v883 = vpop.permute.xlu0 %882
      %884 = vrot.lane.b32.xlu0 %v787, 16
      %v885 = vpop.permute.xlu0 %884
      %902 = vrot.lane.b32.xlu0 %v698, 24
      %v903 = vpop.permute.xlu0 %902
      %904 = vrot.lane.b32.xlu0 %v699, 24
      %v905 = vpop.permute.xlu0 %904
      %906 = vrot.lane.b32.xlu0 %v700, 24
      %v907 = vpop.permute.xlu0 %906
      %908 = vrot.lane.b32.xlu0 %v701, 24
      %v909 = vpop.permute.xlu0 %908
      %910 = vrot.lane.b32.xlu0 %v702, 24
      %v911 = vpop.permute.xlu0 %910
      %912 = vrot.lane.b32.xlu0 %v703, 24
      %v913 = vpop.permute.xlu0 %912
      %914 = vrot.lane.b32.xlu0 %v704, 24
      %v915 = vpop.permute.xlu0 %914
      %916 = vrot.lane.b32.xlu0 %v705, 24
      %v917 = vpop.permute.xlu0 %916
      %918 = vrot.lane.b32.xlu0 %v706, 24
      %v919 = vpop.permute.xlu0 %918
      %920 = vrot.lane.b32.xlu0 %v707, 24
      %v921 = vpop.permute.xlu0 %920
      %922 = vrot.lane.b32.xlu0 %v708, 24
      %v923 = vpop.permute.xlu0 %922
      %924 = vrot.lane.b32.xlu0 %v709, 24
      %v925 = vpop.permute.xlu0 %924
      %926 = vrot.lane.b32.xlu0 %v710, 24
      %v927 = vpop.permute.xlu0 %926
      %928 = vrot.lane.b32.xlu0 %v711, 24
      %v929 = vpop.permute.xlu0 %928
      %930 = vrot.lane.b32.xlu0 %v712, 24
      %v931 = vpop.permute.xlu0 %930
      %932 = vrot.lane.b32.xlu0 %v713, 24
      %v933 = vpop.permute.xlu0 %932
      %935 = vrot.lane.b32.xlu0 %v489, 32
      %v936 = vpop.permute.xlu0 %935
      %937 = vrot.lane.b32.xlu0 %v490, 32
      %v938 = vpop.permute.xlu0 %937
      %939 = vrot.lane.b32.xlu0 %v491, 32
      %v940 = vpop.permute.xlu0 %939
      %941 = vrot.lane.b32.xlu0 %v492, 32
      %v942 = vpop.permute.xlu0 %941
      %943 = vrot.lane.b32.xlu0 %v493, 32
      %v944 = vpop.permute.xlu0 %943
      %945 = vrot.lane.b32.xlu0 %v494, 32
      %v946 = vpop.permute.xlu0 %945
      %947 = vrot.lane.b32.xlu0 %v495, 32
      %v948 = vpop.permute.xlu0 %947
      %949 = vrot.lane.b32.xlu0 %v496, 32
      %v950 = vpop.permute.xlu0 %949
      %951 = vrot.lane.b32.xlu0 %v497, 32
      %v952 = vpop.permute.xlu0 %951
      %953 = vrot.lane.b32.xlu0 %v498, 32
      %v954 = vpop.permute.xlu0 %953
      %955 = vrot.lane.b32.xlu0 %v499, 32
      %v956 = vpop.permute.xlu0 %955
      %957 = vrot.lane.b32.xlu0 %v500, 32
      %v958 = vpop.permute.xlu0 %957
      %959 = vrot.lane.b32.xlu0 %v501, 32
      %v960 = vpop.permute.xlu0 %959
      %961 = vrot.lane.b32.xlu0 %v502, 32
      %v962 = vpop.permute.xlu0 %961
      %963 = vrot.lane.b32.xlu0 %v503, 32
      %v964 = vpop.permute.xlu0 %963
      %965 = vrot.lane.b32.xlu0 %v504, 32
      %v966 = vpop.permute.xlu0 %965
      %968 = vrot.lane.b32.xlu0 %v773, 40
      %v969 = vpop.permute.xlu0 %968
      %970 = vrot.lane.b32.xlu0 %v774, 40
      %v971 = vpop.permute.xlu0 %970
      %972 = vrot.lane.b32.xlu0 %v775, 40
      %v973 = vpop.permute.xlu0 %972
      %974 = vrot.lane.b32.xlu0 %v776, 40
      %v975 = vpop.permute.xlu0 %974
      %976 = vrot.lane.b32.xlu0 %v777, 40
      %v977 = vpop.permute.xlu0 %976
      %978 = vrot.lane.b32.xlu0 %v778, 40
      %v979 = vpop.permute.xlu0 %978
      %980 = vrot.lane.b32.xlu0 %v779, 40
      %v981 = vpop.permute.xlu0 %980
      %982 = vrot.lane.b32.xlu0 %v780, 40
      %v983 = vpop.permute.xlu0 %982
      %984 = vrot.lane.b32.xlu0 %v781, 40
      %v985 = vpop.permute.xlu0 %984
      %986 = vrot.lane.b32.xlu0 %v782, 40
      %v987 = vpop.permute.xlu0 %986
      %988 = vrot.lane.b32.xlu0 %v783, 40
      %v989 = vpop.permute.xlu0 %988
      %990 = vrot.lane.b32.xlu0 %v784, 40
      %v991 = vpop.permute.xlu0 %990
      %992 = vrot.lane.b32.xlu0 %v785, 40
      %v993 = vpop.permute.xlu0 %992
      %994 = vrot.lane.b32.xlu0 %v786, 40
      %v995 = vpop.permute.xlu0 %994
      %996 = vrot.lane.b32.xlu0 %v787, 40
      %v997 = vpop.permute.xlu0 %996
      %998 = vrot.lane.b32.xlu0 %v788, 40
      %v999 = vpop.permute.xlu0 %998
      %1001 = vrot.lane.b32.xlu0 %v699, 48
      %v1002 = vpop.permute.xlu0 %1001
      %1003 = vrot.lane.b32.xlu0 %v700, 48
      %v1004 = vpop.permute.xlu0 %1003
      %1005 = vrot.lane.b32.xlu0 %v701, 48
      %v1006 = vpop.permute.xlu0 %1005
      %1007 = vrot.lane.b32.xlu0 %v702, 48
      %v1008 = vpop.permute.xlu0 %1007
      %1009 = vrot.lane.b32.xlu0 %v703, 48
      %v1010 = vpop.permute.xlu0 %1009
      %1011 = vrot.lane.b32.xlu0 %v704, 48
      %v1012 = vpop.permute.xlu0 %1011
      %1013 = vrot.lane.b32.xlu0 %v705, 48
      %v1014 = vpop.permute.xlu0 %1013
      %1015 = vrot.lane.b32.xlu0 %v706, 48
      %v1016 = vpop.permute.xlu0 %1015
      %1017 = vrot.lane.b32.xlu0 %v707, 48
      %v1018 = vpop.permute.xlu0 %1017
      %1019 = vrot.lane.b32.xlu0 %v708, 48
      %v1020 = vpop.permute.xlu0 %1019
      %1021 = vrot.lane.b32.xlu0 %v709, 48
      %v1022 = vpop.permute.xlu0 %1021
      %1023 = vrot.lane.b32.xlu0 %v710, 48
      %v1024 = vpop.permute.xlu0 %1023
      %1025 = vrot.lane.b32.xlu0 %v711, 48
      %v1026 = vpop.permute.xlu0 %1025
      %1027 = vrot.lane.b32.xlu0 %v712, 48
      %v1028 = vpop.permute.xlu0 %1027
      %1029 = vrot.lane.b32.xlu0 %v713, 48
      %v1030 = vpop.permute.xlu0 %1029
      %1031 = vrot.lane.b32.xlu0 %v714, 48
      %v1032 = vpop.permute.xlu0 %1031
      %1034 = vrot.lane.b32.xlu0 %v490, 56
      %v1035 = vpop.permute.xlu0 %1034
      %1036 = vrot.lane.b32.xlu0 %v491, 56
      %v1037 = vpop.permute.xlu0 %1036
      %1038 = vrot.lane.b32.xlu0 %v492, 56
      %v1039 = vpop.permute.xlu0 %1038
      %1040 = vrot.lane.b32.xlu0 %v493, 56
      %v1041 = vpop.permute.xlu0 %1040
      %1042 = vrot.lane.b32.xlu0 %v494, 56
      %v1043 = vpop.permute.xlu0 %1042
      %1044 = vrot.lane.b32.xlu0 %v495, 56
      %v1045 = vpop.permute.xlu0 %1044
      %1046 = vrot.lane.b32.xlu0 %v496, 56
      %v1047 = vpop.permute.xlu0 %1046
      %1048 = vrot.lane.b32.xlu0 %v497, 56
      %v1049 = vpop.permute.xlu0 %1048
      %1050 = vrot.lane.b32.xlu0 %v498, 56
      %v1051 = vpop.permute.xlu0 %1050
      %1052 = vrot.lane.b32.xlu0 %v499, 56
      %v1053 = vpop.permute.xlu0 %1052
      %1054 = vrot.lane.b32.xlu0 %v500, 56
      %v1055 = vpop.permute.xlu0 %1054
      %1056 = vrot.lane.b32.xlu0 %v501, 56
      %v1057 = vpop.permute.xlu0 %1056
      %1058 = vrot.lane.b32.xlu0 %v502, 56
      %v1059 = vpop.permute.xlu0 %1058
      %1060 = vrot.lane.b32.xlu0 %v503, 56
      %v1061 = vpop.permute.xlu0 %1060
      %1062 = vrot.lane.b32.xlu0 %v504, 56
      %v1063 = vpop.permute.xlu0 %1062
      %1064 = vrot.lane.b32.xlu0 %v549, 56
      %v1065 = vpop.permute.xlu0 %1064
      %1067 = vrot.lane.b32.xlu0 %v774, 64
      %v1068 = vpop.permute.xlu0 %1067
      %1069 = vrot.lane.b32.xlu0 %v775, 64
      %v1070 = vpop.permute.xlu0 %1069
      %1071 = vrot.lane.b32.xlu0 %v776, 64
      %v1072 = vpop.permute.xlu0 %1071
      %1073 = vrot.lane.b32.xlu0 %v777, 64
      %v1074 = vpop.permute.xlu0 %1073
      %1075 = vrot.lane.b32.xlu0 %v778, 64
      %v1076 = vpop.permute.xlu0 %1075
      %1077 = vrot.lane.b32.xlu0 %v779, 64
      %v1078 = vpop.permute.xlu0 %1077
      %1079 = vrot.lane.b32.xlu0 %v780, 64
      %v1080 = vpop.permute.xlu0 %1079
      %1081 = vrot.lane.b32.xlu0 %v781, 64
      %v1082 = vpop.permute.xlu0 %1081
      %1083 = vrot.lane.b32.xlu0 %v782, 64
      %v1084 = vpop.permute.xlu0 %1083
      %1085 = vrot.lane.b32.xlu0 %v783, 64
      %v1086 = vpop.permute.xlu0 %1085
      %1087 = vrot.lane.b32.xlu0 %v784, 64
      %v1088 = vpop.permute.xlu0 %1087
      %1089 = vrot.lane.b32.xlu0 %v785, 64
      %v1090 = vpop.permute.xlu0 %1089
      %1091 = vrot.lane.b32.xlu0 %v786, 64
      %v1092 = vpop.permute.xlu0 %1091
      %1093 = vrot.lane.b32.xlu0 %v787, 64
      %v1094 = vpop.permute.xlu0 %1093
      %1095 = vrot.lane.b32.xlu0 %v788, 64
      %v1096 = vpop.permute.xlu0 %1095
      %1097 = vrot.lane.b32.xlu0 %v789, 64
      %v1098 = vpop.permute.xlu0 %1097
      %vm1099 = vcmask 64512
      %v1102 = vsel %vm1099, %v697, %v807
      %v1105 = vsel %vm1099, %v698, %v809
      %v1108 = vsel %vm1099, %v699, %v811
      %v1111 = vsel %vm1099, %v700, %v813
      %v1114 = vsel %vm1099, %v701, %v815
      %v1117 = vsel %vm1099, %v702, %v817
      %v1120 = vsel %vm1099, %v703, %v819
      %v1123 = vsel %vm1099, %v704, %v821
      %v1126 = vsel %vm1099, %v705, %v823
      %v1129 = vsel %vm1099, %v706, %v825
      %v1132 = vsel %vm1099, %v707, %v827
      %v1135 = vsel %vm1099, %v708, %v829
      %v1138 = vsel %vm1099, %v709, %v831
      %v1141 = vsel %vm1099, %v710, %v833
      %v1144 = vsel %vm1099, %v711, %v835
      %v1147 = vsel %vm1099, %v712, %v837
      %vm1148 = vcmask 130048
      %v1150 = vsel %vm1148, %v1102, %v855
      %v1152 = vsel %vm1148, %v1105, %v857
      %v1154 = vsel %vm1148, %v1108, %v859
      %v1156 = vsel %vm1148, %v1111, %v861
      %v1158 = vsel %vm1148, %v1114, %v863
      %v1160 = vsel %vm1148, %v1117, %v865
      %v1162 = vsel %vm1148, %v1120, %v867
      %v1164 = vsel %vm1148, %v1123, %v869
      %v1166 = vsel %vm1148, %v1126, %v871
      %v1168 = vsel %vm1148, %v1129, %v873
      %v1170 = vsel %vm1148, %v1132, %v875
      %v1172 = vsel %vm1148, %v1135, %v877
      %v1174 = vsel %vm1148, %v1138, %v879
      %v1176 = vsel %vm1148, %v1141, %v881
      %v1178 = vsel %vm1148, %v1144, %v883
      %v1180 = vsel %vm1148, %v1147, %v885
      %vm1181 = vcmask 195584
      %v1183 = vsel %vm1181, %v1150, %v903
      %v1185 = vsel %vm1181, %v1152, %v905
      %v1187 = vsel %vm1181, %v1154, %v907
      %v1189 = vsel %vm1181, %v1156, %v909
      %v1191 = vsel %vm1181, %v1158, %v911
      %v1193 = vsel %vm1181, %v1160, %v913
      %v1195 = vsel %vm1181, %v1162, %v915
      %v1197 = vsel %vm1181, %v1164, %v917
      %v1199 = vsel %vm1181, %v1166, %v919
      %v1201 = vsel %vm1181, %v1168, %v921
      %v1203 = vsel %vm1181, %v1170, %v923
      %v1205 = vsel %vm1181, %v1172, %v925
      %v1207 = vsel %vm1181, %v1174, %v927
      %v1209 = vsel %vm1181, %v1176, %v929
      %v1211 = vsel %vm1181, %v1178, %v931
      %v1213 = vsel %vm1181, %v1180, %v933
      %vm1214 = vcmask 261120
      %v1216 = vsel %vm1214, %v1183, %v936
      %v1218 = vsel %vm1214, %v1185, %v938
      %v1220 = vsel %vm1214, %v1187, %v940
      %v1222 = vsel %vm1214, %v1189, %v942
      %v1224 = vsel %vm1214, %v1191, %v944
      %v1226 = vsel %vm1214, %v1193, %v946
      %v1228 = vsel %vm1214, %v1195, %v948
      %v1230 = vsel %vm1214, %v1197, %v950
      %v1232 = vsel %vm1214, %v1199, %v952
      %v1234 = vsel %vm1214, %v1201, %v954
      %v1236 = vsel %vm1214, %v1203, %v956
      %v1238 = vsel %vm1214, %v1205, %v958
      %v1240 = vsel %vm1214, %v1207, %v960
      %v1242 = vsel %vm1214, %v1209, %v962
      %v1244 = vsel %vm1214, %v1211, %v964
      %v1246 = vsel %vm1214, %v1213, %v966
      %vm1247 = vcmask 326656
      %v1249 = vsel %vm1247, %v1216, %v969
      %v1251 = vsel %vm1247, %v1218, %v971
      %v1253 = vsel %vm1247, %v1220, %v973
      %v1255 = vsel %vm1247, %v1222, %v975
      %v1257 = vsel %vm1247, %v1224, %v977
      %v1259 = vsel %vm1247, %v1226, %v979
      %v1261 = vsel %vm1247, %v1228, %v981
      %v1263 = vsel %vm1247, %v1230, %v983
      %v1265 = vsel %vm1247, %v1232, %v985
      %v1267 = vsel %vm1247, %v1234, %v987
      %v1269 = vsel %vm1247, %v1236, %v989
      %v1271 = vsel %vm1247, %v1238, %v991
      %v1273 = vsel %vm1247, %v1240, %v993
      %v1275 = vsel %vm1247, %v1242, %v995
      %v1277 = vsel %vm1247, %v1244, %v997
      %v1279 = vsel %vm1247, %v1246, %v999
      %vm1280 = vcmask 392192
      %v1282 = vsel %vm1280, %v1249, %v1002
      %v1284 = vsel %vm1280, %v1251, %v1004
      %v1286 = vsel %vm1280, %v1253, %v1006
      %v1288 = vsel %vm1280, %v1255, %v1008
      %v1290 = vsel %vm1280, %v1257, %v1010
      %v1292 = vsel %vm1280, %v1259, %v1012
      %v1294 = vsel %vm1280, %v1261, %v1014
      %v1296 = vsel %vm1280, %v1263, %v1016
      %v1298 = vsel %vm1280, %v1265, %v1018
      %v1300 = vsel %vm1280, %v1267, %v1020
      %v1302 = vsel %vm1280, %v1269, %v1022
      %v1304 = vsel %vm1280, %v1271, %v1024
      %v1306 = vsel %vm1280, %v1273, %v1026
      %v1308 = vsel %vm1280, %v1275, %v1028
      %v1310 = vsel %vm1280, %v1277, %v1030
      %v1312 = vsel %vm1280, %v1279, %v1032
      %vm1313 = vcmask 457728
      %v1315 = vsel %vm1313, %v1282, %v1035
      %v1317 = vsel %vm1313, %v1284, %v1037
      %v1319 = vsel %vm1313, %v1286, %v1039
      %v1321 = vsel %vm1313, %v1288, %v1041
      %v1323 = vsel %vm1313, %v1290, %v1043
      %v1325 = vsel %vm1313, %v1292, %v1045
      %v1327 = vsel %vm1313, %v1294, %v1047
      %v1329 = vsel %vm1313, %v1296, %v1049
      %v1331 = vsel %vm1313, %v1298, %v1051
      %v1333 = vsel %vm1313, %v1300, %v1053
      %v1335 = vsel %vm1313, %v1302, %v1055
      %v1337 = vsel %vm1313, %v1304, %v1057
      %v1339 = vsel %vm1313, %v1306, %v1059
      %v1341 = vsel %vm1313, %v1308, %v1061
      %v1343 = vsel %vm1313, %v1310, %v1063
      %v1345 = vsel %vm1313, %v1312, %v1065
      %vm1346 = vcmask 523264
      %v1348 = vsel %vm1346, %v1315, %v1068
      %v1350 = vsel %vm1346, %v1317, %v1070
      %v1352 = vsel %vm1346, %v1319, %v1072
      %v1354 = vsel %vm1346, %v1321, %v1074
      %v1356 = vsel %vm1346, %v1323, %v1076
      %v1358 = vsel %vm1346, %v1325, %v1078
      %v1360 = vsel %vm1346, %v1327, %v1080
      %v1362 = vsel %vm1346, %v1329, %v1082
      %v1364 = vsel %vm1346, %v1331, %v1084
      %v1366 = vsel %vm1346, %v1333, %v1086
      %v1368 = vsel %vm1346, %v1335, %v1088
      %v1370 = vsel %vm1346, %v1337, %v1090
      %v1372 = vsel %vm1346, %v1339, %v1092
      %v1374 = vsel %vm1346, %v1341, %v1094
      %v1376 = vsel %vm1346, %v1343, %v1096
      %v1378 = vsel %vm1346, %v1345, %v1098
      %v1379 = vld [vmem:[%s1] sm:$0xf]
      %v1380 = vld [vmem:[%s1 + $0x4] sm:$0xf]
      %v1381 = vld [vmem:[%s1 + $0x8] sm:$0xf]
      %v1382 = vld [vmem:[%s1 + $0xc] sm:$0xf]
      %v1383 = vld [vmem:[%s1 + $0x10] sm:$0xf]
      %v1384 = vld [vmem:[%s1 + $0x14] sm:$0xf]
      %v1385 = vld [vmem:[%s1 + $0x18] sm:$0xf]
      %v1386 = vld [vmem:[%s1 + $0x1c] sm:$0xf]
      %v1387 = vld [vmem:[%s1 + $0x20] sm:$0xf]
      %v1397 = vunpack.c.l.b16 %v1379
      %v1398 = vunpack.c.l.b16 %v1380
      %v1399 = vunpack.c.l.b16 %v1381
      %v1400 = vunpack.c.l.b16 %v1382
      %v1401 = vunpack.c.l.b16 %v1383
      %v1402 = vunpack.c.l.b16 %v1384
      %v1403 = vunpack.c.l.b16 %v1385
      %v1404 = vunpack.c.l.b16 %v1386
      %v1405 = vunpack.c.l.b16 %v1387
      %v1406 = vpack.c.b16 %v1398, %v1397
      %v1407 = vpack.c.b16 %v1400, %v1399
      %v1408 = vpack.c.b16 %v1402, %v1401
      %v1409 = vpack.c.b16 %v1404, %v1403
      %v1410 = vpack.c.b16 %v1405, %v1405
      %vm1415 = vcmask 588800
      %v1416 = vsel %vm1415, %v1348, 0
      %v1418 = vsel %vm1415, %v1350, 0
      %v1420 = vsel %vm1415, %v1352, 0
      %v1422 = vsel %vm1415, %v1354, 0
      %v1424 = vsel %vm1415, %v1356, 0
      %v1426 = vsel %vm1415, %v1358, 0
      %v1428 = vsel %vm1415, %v1360, 0
      %v1430 = vsel %vm1415, %v1362, 0
      %v1432 = vsel %vm1415, %v1364, 0
      %v1434 = vsel %vm1415, %v1366, 0
      %v1436 = vsel %vm1415, %v1368, 0
      %v1438 = vsel %vm1415, %v1370, 0
      %v1440 = vsel %vm1415, %v1372, 0
      %v1442 = vsel %vm1415, %v1374, 0
      %v1444 = vsel %vm1415, %v1376, 0
      %v1446 = vsel %vm1415, %v1378, 0
      %vm1448 = vcmask 1043456
      %v1450 = vsel %vm1448, %v1410, 0
      %1452 = vmatprep.subr.bf16.mxu0 0
      %1453 = vmatpush1.bf16.msra.mxu0 0
      %1454 = vmatprep.subr.bf16.mxu0 0
      %1455 = vmatpush1.bf16.msra.mxu0 0
      %1456 = vmatprep.subr.bf16.mxu0 0
      %1457 = vmatpush1.bf16.msra.mxu0 0
      %1458 = vmatprep.subr.bf16.mxu0 0
      %1459 = vmatpush1.bf16.msra.mxu0 %v1450
      %1460 = vmatprep.subr.bf16.mxu0 0
      %1461 = vmatpush1.bf16.msra.mxu0 %v1409
      %1462 = vmatprep.subr.bf16.mxu0 0
      %1463 = vmatpush1.bf16.msra.mxu0 %v1408
      %1464 = vmatprep.subr.bf16.mxu0 0
      %1465 = vmatpush1.bf16.msra.mxu0 %v1407
      %1466 = vmatprep.subr.bf16.mxu0 0
      %1467 = vmatpush1.bf16.msra.mxu0 %v1406
      %1468 = vmatprep.subr.bf16.mxu0 0
      %1469 = vmatpush2.bf16.msra.mxu0 0
      %1470 = vmatprep.subr.bf16.mxu0 0
      %1471 = vmatpush2.bf16.msra.mxu0 0
      %1472 = vmatprep.subr.bf16.mxu0 0
      %1473 = vmatpush2.bf16.msra.mxu0 0
      %1474 = vmatprep.subr.bf16.mxu0 0
      %1475 = vmatpush2.bf16.msra.mxu0 0
      %1476 = vmatprep.subr.bf16.mxu0 0
      %1477 = vmatpush2.bf16.msra.mxu0 0
      %1478 = vmatprep.subr.bf16.mxu0 0
      %1479 = vmatpush2.bf16.msra.mxu0 0
      %1480 = vmatprep.subr.bf16.mxu0 0
      %1481 = vmatpush2.bf16.msra.mxu0 0
      %1482 = vmatprep.subr.bf16.mxu0 0
      %1483 = vmatpush2.bf16.msra.mxu0 0
      %1484 = vmatprep.mubr.bf16.mxu0 0
      %1485 = vmatmul.mubr.bf16.gmra.mxu0 %v1416
      %v1486 = vpop.f32.mrf.mxu0
      %v1487 = vadd.f32 0.0, %v1486
      %v1488 = vpop.f32.mrf.mxu0
      %v1489 = vpop.f32.mrf.mxu0
      %v1490 = vadd.f32 0.0, %v1489
      %v1491 = vpop.f32.mrf.mxu0
      %1492 = vmatprep.mubr.bf16.mxu0 0
      %1493 = vmatmul.mubr.bf16.gmra.mxu0 %v1418
      %v1494 = vpop.f32.mrf.mxu0
      %v1495 = vadd.f32 0.0, %v1494
      %v1496 = vpop.f32.mrf.mxu0
      %v1497 = vpop.f32.mrf.mxu0
      %v1498 = vadd.f32 0.0, %v1497
      %v1499 = vpop.f32.mrf.mxu0
      %1500 = vmatprep.mubr.bf16.mxu0 0
      %1501 = vmatmul.mubr.bf16.gmra.mxu0 %v1420
      %v1502 = vpop.f32.mrf.mxu0
      %v1503 = vadd.f32 0.0, %v1502
      %v1504 = vpop.f32.mrf.mxu0
      %v1505 = vpop.f32.mrf.mxu0
      %v1506 = vadd.f32 0.0, %v1505
      %v1507 = vpop.f32.mrf.mxu0
      %1508 = vmatprep.mubr.bf16.mxu0 0
      %1509 = vmatmul.mubr.bf16.gmra.mxu0 %v1422
      %v1510 = vpop.f32.mrf.mxu0
      %v1511 = vadd.f32 0.0, %v1510
      %v1512 = vpop.f32.mrf.mxu0
      %v1513 = vpop.f32.mrf.mxu0
      %v1514 = vadd.f32 0.0, %v1513
      %v1515 = vpop.f32.mrf.mxu0
      %1516 = vmatprep.mubr.bf16.mxu0 0
      %1517 = vmatmul.mubr.bf16.gmra.mxu0 %v1424
      %v1518 = vpop.f32.mrf.mxu0
      %v1519 = vadd.f32 0.0, %v1518
      %v1520 = vpop.f32.mrf.mxu0
      %v1521 = vpop.f32.mrf.mxu0
      %v1522 = vadd.f32 0.0, %v1521
      %v1523 = vpop.f32.mrf.mxu0
      %1524 = vmatprep.mubr.bf16.mxu0 0
      %1525 = vmatmul.mubr.bf16.gmra.mxu0 %v1426
      %v1526 = vpop.f32.mrf.mxu0
      %v1527 = vadd.f32 0.0, %v1526
      %v1528 = vpop.f32.mrf.mxu0
      %v1529 = vpop.f32.mrf.mxu0
      %v1530 = vadd.f32 0.0, %v1529
      %v1531 = vpop.f32.mrf.mxu0
      %1532 = vmatprep.mubr.bf16.mxu0 0
      %1533 = vmatmul.mubr.bf16.gmra.mxu0 %v1428
      %v1534 = vpop.f32.mrf.mxu0
      %v1535 = vadd.f32 0.0, %v1534
      %v1536 = vpop.f32.mrf.mxu0
      %v1537 = vpop.f32.mrf.mxu0
      %v1538 = vadd.f32 0.0, %v1537
      %v1539 = vpop.f32.mrf.mxu0
      %1540 = vmatprep.mubr.bf16.mxu0 0
      %1541 = vmatmul.mubr.bf16.gmra.mxu0 %v1430
      %v1542 = vpop.f32.mrf.mxu0
      %v1543 = vadd.f32 0.0, %v1542
      %v1544 = vpop.f32.mrf.mxu0
      %v1545 = vpop.f32.mrf.mxu0
      %v1546 = vadd.f32 0.0, %v1545
      %v1547 = vpop.f32.mrf.mxu0
      %1548 = vmatprep.mubr.bf16.mxu0 0
      %1549 = vmatmul.mubr.bf16.gmra.mxu0 %v1432
      %v1550 = vpop.f32.mrf.mxu0
      %v1551 = vadd.f32 0.0, %v1550
      %v1552 = vpop.f32.mrf.mxu0
      %v1553 = vpop.f32.mrf.mxu0
      %v1554 = vadd.f32 0.0, %v1553
      %v1555 = vpop.f32.mrf.mxu0
      %1556 = vmatprep.mubr.bf16.mxu0 0
      %1557 = vmatmul.mubr.bf16.gmra.mxu0 %v1434
      %v1558 = vpop.f32.mrf.mxu0
      %v1559 = vadd.f32 0.0, %v1558
      %v1560 = vpop.f32.mrf.mxu0
      %v1561 = vpop.f32.mrf.mxu0
      %v1562 = vadd.f32 0.0, %v1561
      %v1563 = vpop.f32.mrf.mxu0
      %1564 = vmatprep.mubr.bf16.mxu0 0
      %1565 = vmatmul.mubr.bf16.gmra.mxu0 %v1436
      %v1566 = vpop.f32.mrf.mxu0
      %v1567 = vadd.f32 0.0, %v1566
      %v1568 = vpop.f32.mrf.mxu0
      %v1569 = vpop.f32.mrf.mxu0
      %v1570 = vadd.f32 0.0, %v1569
      %v1571 = vpop.f32.mrf.mxu0
      %1572 = vmatprep.mubr.bf16.mxu0 0
      %1573 = vmatmul.mubr.bf16.gmra.mxu0 %v1438
      %v1574 = vpop.f32.mrf.mxu0
      %v1575 = vadd.f32 0.0, %v1574
      %v1576 = vpop.f32.mrf.mxu0
      %v1577 = vpop.f32.mrf.mxu0
      %v1578 = vadd.f32 0.0, %v1577
      %v1579 = vpop.f32.mrf.mxu0
      %1580 = vmatprep.mubr.bf16.mxu0 0
      %1581 = vmatmul.mubr.bf16.gmra.mxu0 %v1440
      %v1582 = vpop.f32.mrf.mxu0
      %v1583 = vadd.f32 0.0, %v1582
      %v1584 = vpop.f32.mrf.mxu0
      %v1585 = vpop.f32.mrf.mxu0
      %v1586 = vadd.f32 0.0, %v1585
      %v1587 = vpop.f32.mrf.mxu0
      %1588 = vmatprep.mubr.bf16.mxu0 0
      %1589 = vmatmul.mubr.bf16.gmra.mxu0 %v1442
      %v1590 = vpop.f32.mrf.mxu0
      %v1591 = vadd.f32 0.0, %v1590
      %v1592 = vpop.f32.mrf.mxu0
      %v1593 = vpop.f32.mrf.mxu0
      %v1594 = vadd.f32 0.0, %v1593
      %v1595 = vpop.f32.mrf.mxu0
      %1596 = vmatprep.mubr.bf16.mxu0 0
      %1597 = vmatmul.mubr.bf16.gmra.mxu0 %v1444
      %v1598 = vpop.f32.mrf.mxu0
      %v1599 = vadd.f32 0.0, %v1598
      %v1600 = vpop.f32.mrf.mxu0
      %v1601 = vpop.f32.mrf.mxu0
      %v1602 = vadd.f32 0.0, %v1601
      %v1603 = vpop.f32.mrf.mxu0
      %1604 = vmatprep.mubr.bf16.mxu0 0
      %1605 = vmatmul.mubr.bf16.gmra.mxu0 %v1446
      %v1606 = vpop.f32.mrf.mxu0
      %v1607 = vadd.f32 0.0, %v1606
      %v1608 = vpop.f32.mrf.mxu0
      %v1609 = vpop.f32.mrf.mxu0
      %v1610 = vadd.f32 0.0, %v1609
      %v1611 = vpop.f32.mrf.mxu0
      %1612 = vdwg.mxu0
      %v1613 = vpack.c.bf16 %v1490, %v1487
      %v1614 = vpack.c.bf16 %v1498, %v1495
      %v1615 = vpack.c.bf16 %v1506, %v1503
      %v1616 = vpack.c.bf16 %v1514, %v1511
      %v1617 = vpack.c.bf16 %v1522, %v1519
      %v1618 = vpack.c.bf16 %v1530, %v1527
      %v1619 = vpack.c.bf16 %v1538, %v1535
      %v1620 = vpack.c.bf16 %v1546, %v1543
      %v1621 = vpack.c.bf16 %v1554, %v1551
      %v1622 = vpack.c.bf16 %v1562, %v1559
      %v1623 = vpack.c.bf16 %v1570, %v1567
      %v1624 = vpack.c.bf16 %v1578, %v1575
      %v1625 = vpack.c.bf16 %v1586, %v1583
      %v1626 = vpack.c.bf16 %v1594, %v1591
      %v1627 = vpack.c.bf16 %v1602, %v1599
      %v1628 = vpack.c.bf16 %v1610, %v1607
      %v1645 = vunpack.c.l.b16 %v1613
      %v1646 = vunpack.c.h.b16 %v1613
      %v1647 = vunpack.c.l.b16 %v1614
      %v1648 = vunpack.c.h.b16 %v1614
      %v1649 = vunpack.c.l.b16 %v1615
      %v1650 = vunpack.c.h.b16 %v1615
      %v1651 = vunpack.c.l.b16 %v1616
      %v1652 = vunpack.c.h.b16 %v1616
      %v1653 = vunpack.c.l.b16 %v1617
      %v1654 = vunpack.c.h.b16 %v1617
      %v1655 = vunpack.c.l.b16 %v1618
      %v1656 = vunpack.c.h.b16 %v1618
      %v1657 = vunpack.c.l.b16 %v1619
      %v1658 = vunpack.c.h.b16 %v1619
      %v1659 = vunpack.c.l.b16 %v1620
      %v1660 = vunpack.c.h.b16 %v1620
      %v1661 = vunpack.c.l.b16 %v1621
      %v1662 = vunpack.c.h.b16 %v1621
      %v1663 = vunpack.c.l.b16 %v1622
      %v1664 = vunpack.c.h.b16 %v1622
      %v1665 = vunpack.c.l.b16 %v1623
      %v1666 = vunpack.c.h.b16 %v1623
      %v1667 = vunpack.c.l.b16 %v1624
      %v1668 = vunpack.c.h.b16 %v1624
      %v1669 = vunpack.c.l.b16 %v1625
      %v1670 = vunpack.c.h.b16 %v1625
      %v1671 = vunpack.c.l.b16 %v1626
      %v1672 = vunpack.c.h.b16 %v1626
      %v1673 = vunpack.c.l.b16 %v1627
      %v1674 = vunpack.c.h.b16 %v1627
      %v1675 = vunpack.c.l.b16 %v1628
      %v1676 = vunpack.c.h.b16 %v1628
      %v1677 = vpack.c.b16 %v1645, %v1645
      %v1678 = vpack.c.b16 %v1646, %v1646
      %v1679 = vpack.c.b16 %v1647, %v1647
      %v1680 = vpack.c.b16 %v1648, %v1648
      %v1681 = vpack.c.b16 %v1649, %v1649
      %v1682 = vpack.c.b16 %v1650, %v1650
      %v1683 = vpack.c.b16 %v1651, %v1651
      %v1684 = vpack.c.b16 %v1652, %v1652
      %v1685 = vpack.c.b16 %v1653, %v1653
      %v1686 = vpack.c.b16 %v1654, %v1654
      %v1687 = vpack.c.b16 %v1655, %v1655
      %v1688 = vpack.c.b16 %v1656, %v1656
      %v1689 = vpack.c.b16 %v1657, %v1657
      %v1690 = vpack.c.b16 %v1658, %v1658
      %v1691 = vpack.c.b16 %v1659, %v1659
      %v1692 = vpack.c.b16 %v1660, %v1660
      %v1693 = vpack.c.b16 %v1661, %v1661
      %v1694 = vpack.c.b16 %v1662, %v1662
      %v1695 = vpack.c.b16 %v1663, %v1663
      %v1696 = vpack.c.b16 %v1664, %v1664
      %v1697 = vpack.c.b16 %v1665, %v1665
      %v1698 = vpack.c.b16 %v1666, %v1666
      %v1699 = vpack.c.b16 %v1667, %v1667
      %v1700 = vpack.c.b16 %v1668, %v1668
      %v1701 = vpack.c.b16 %v1669, %v1669
      %v1702 = vpack.c.b16 %v1670, %v1670
      %v1703 = vpack.c.b16 %v1671, %v1671
      %v1704 = vpack.c.b16 %v1672, %v1672
      %v1705 = vpack.c.b16 %v1673, %v1673
      %v1706 = vpack.c.b16 %v1674, %v1674
      %v1707 = vpack.c.b16 %v1675, %v1675
      %v1708 = vpack.c.b16 %v1676, %v1676
      %vm1741 = vcmask 60416
      %1742 = vst.msk [vmem:[%s296] sm:$0xf] %vm1741, %v1677
      %1743 = vst.msk [vmem:[%s296 + $0x4] sm:$0xf] %vm1741, %v1678
      %1744 = vst.msk [vmem:[%s296 + $0x8] sm:$0xf] %vm1741, %v1679
      %1745 = vst.msk [vmem:[%s296 + $0xc] sm:$0xf] %vm1741, %v1680
      %1746 = vst.msk [vmem:[%s296 + $0x10] sm:$0xf] %vm1741, %v1681
      %1747 = vst.msk [vmem:[%s296 + $0x14] sm:$0xf] %vm1741, %v1682
      %1748 = vst.msk [vmem:[%s296 + $0x18] sm:$0xf] %vm1741, %v1683
      %1749 = vst.msk [vmem:[%s296 + $0x1c] sm:$0xf] %vm1741, %v1684
      %1750 = vst.msk [vmem:[%s296 + $0x20] sm:$0xf] %vm1741, %v1685
      %1751 = vst.msk [vmem:[%s296 + $0x24] sm:$0xf] %vm1741, %v1686
      %1752 = vst.msk [vmem:[%s296 + $0x28] sm:$0xf] %vm1741, %v1687
      %1753 = vst.msk [vmem:[%s296 + $0x2c] sm:$0xf] %vm1741, %v1688
      %1754 = vst.msk [vmem:[%s296 + $0x30] sm:$0xf] %vm1741, %v1689
      %1755 = vst.msk [vmem:[%s296 + $0x34] sm:$0xf] %vm1741, %v1690
      %1756 = vst.msk [vmem:[%s296 + $0x38] sm:$0xf] %vm1741, %v1691
      %1757 = vst.msk [vmem:[%s296 + $0x3c] sm:$0xf] %vm1741, %v1692
      %1758 = vst.msk [vmem:[%s296 + $0x40] sm:$0xf] %vm1741, %v1693
      %1759 = vst.msk [vmem:[%s296 + $0x44] sm:$0xf] %vm1741, %v1694
      %1760 = vst.msk [vmem:[%s296 + $0x48] sm:$0xf] %vm1741, %v1695
      %1761 = vst.msk [vmem:[%s296 + $0x4c] sm:$0xf] %vm1741, %v1696
      %1762 = vst.msk [vmem:[%s296 + $0x50] sm:$0xf] %vm1741, %v1697
      %1763 = vst.msk [vmem:[%s296 + $0x54] sm:$0xf] %vm1741, %v1698
      %1764 = vst.msk [vmem:[%s296 + $0x58] sm:$0xf] %vm1741, %v1699
      %1765 = vst.msk [vmem:[%s296 + $0x5c] sm:$0xf] %vm1741, %v1700
      %1766 = vst.msk [vmem:[%s296 + $0x60] sm:$0xf] %vm1741, %v1701
      %1767 = vst.msk [vmem:[%s296 + $0x64] sm:$0xf] %vm1741, %v1702
      %1768 = vst.msk [vmem:[%s296 + $0x68] sm:$0xf] %vm1741, %v1703
      %1769 = vst.msk [vmem:[%s296 + $0x6c] sm:$0xf] %vm1741, %v1704
      %1770 = vst.msk [vmem:[%s296 + $0x70] sm:$0xf] %vm1741, %v1705
      %1771 = vst.msk [vmem:[%s296 + $0x74] sm:$0xf] %vm1741, %v1706
      %1772 = vst.msk [vmem:[%s296 + $0x78] sm:$0xf] %vm1741, %v1707
      %1773 = vst.msk [vmem:[%s296 + $0x7c] sm:$0xf] %vm1741, %v1708
      %v1774 = vsel %vm1099, %v1487, 0.0
      %v1775 = vsel %vm1099, %v1490, 0.0
      %v1776 = vadd.f32 %v1774, %v1775
      %v1777 = vsel %vm1099, %v1495, 0.0
      %v1778 = vadd.f32 %v1776, %v1777
      %v1779 = vsel %vm1099, %v1498, 0.0
      %v1780 = vadd.f32 %v1778, %v1779
      %v1781 = vsel %vm1099, %v1503, 0.0
      %v1782 = vadd.f32 %v1780, %v1781
      %v1783 = vsel %vm1099, %v1506, 0.0
      %v1784 = vadd.f32 %v1782, %v1783
      %v1785 = vsel %vm1099, %v1511, 0.0
      %v1786 = vadd.f32 %v1784, %v1785
      %v1787 = vsel %vm1099, %v1514, 0.0
      %v1788 = vadd.f32 %v1786, %v1787
      %v1789 = vsel %vm1099, %v1519, 0.0
      %v1790 = vadd.f32 %v1788, %v1789
      %v1791 = vsel %vm1099, %v1522, 0.0
      %v1792 = vadd.f32 %v1790, %v1791
      %v1793 = vsel %vm1099, %v1527, 0.0
      %v1794 = vadd.f32 %v1792, %v1793
      %v1795 = vsel %vm1099, %v1530, 0.0
      %v1796 = vadd.f32 %v1794, %v1795
      %v1797 = vsel %vm1099, %v1535, 0.0
      %v1798 = vadd.f32 %v1796, %v1797
      %v1799 = vsel %vm1099, %v1538, 0.0
      %v1800 = vadd.f32 %v1798, %v1799
      %v1801 = vsel %vm1099, %v1543, 0.0
      %v1802 = vadd.f32 %v1800, %v1801
      %v1803 = vsel %vm1099, %v1546, 0.0
      %v1804 = vadd.f32 %v1802, %v1803
      %v1805 = vsel %vm1099, %v1551, 0.0
      %v1806 = vadd.f32 %v1804, %v1805
      %v1807 = vsel %vm1099, %v1554, 0.0
      %v1808 = vadd.f32 %v1806, %v1807
      %v1809 = vsel %vm1099, %v1559, 0.0
      %v1810 = vadd.f32 %v1808, %v1809
      %v1811 = vsel %vm1099, %v1562, 0.0
      %v1812 = vadd.f32 %v1810, %v1811
      %v1813 = vsel %vm1099, %v1567, 0.0
      %v1814 = vadd.f32 %v1812, %v1813
      %v1815 = vsel %vm1099, %v1570, 0.0
      %v1816 = vadd.f32 %v1814, %v1815
      %v1817 = vsel %vm1099, %v1575, 0.0
      %v1818 = vadd.f32 %v1816, %v1817
      %v1819 = vsel %vm1099, %v1578, 0.0
      %v1820 = vadd.f32 %v1818, %v1819
      %v1821 = vsel %vm1099, %v1583, 0.0
      %v1822 = vadd.f32 %v1820, %v1821
      %v1823 = vsel %vm1099, %v1586, 0.0
      %v1824 = vadd.f32 %v1822, %v1823
      %v1825 = vsel %vm1099, %v1591, 0.0
      %v1826 = vadd.f32 %v1824, %v1825
      %v1827 = vsel %vm1099, %v1594, 0.0
      %v1828 = vadd.f32 %v1826, %v1827
      %v1829 = vsel %vm1099, %v1599, 0.0
      %v1830 = vadd.f32 %v1828, %v1829
      %v1831 = vsel %vm1099, %v1602, 0.0
      %v1832 = vadd.f32 %v1830, %v1831
      %v1833 = vsel %vm1099, %v1607, 0.0
      %v1834 = vadd.f32 %v1832, %v1833
      %v1835 = vsel %vm1099, %v1610, 0.0
      %v1836 = vadd.f32 %v1834, %v1835
      %v1837 = vrot.slane %v1836, 4
      %v1838 = vadd.f32 %v1836, %v1837
      %v1839 = vrot.slane %v1838, 2
      %v1840 = vadd.f32 %v1838, %v1839
      %v1841 = vrot.slane %v1840, 1
      %v1842 = vadd.f32 %v1840, %v1841
      %vm1843 = vcmask 57344
      %1844 = vst.msk [vmem:[%s303] sm:$0x1] %vm1843, %v1842
      %v1845 = vmul.f32 %v1487, %v1487
      %v1846 = vmul.f32 %v1490, %v1490
      %v1847 = vmul.f32 %v1495, %v1495
      %v1848 = vmul.f32 %v1498, %v1498
      %v1849 = vmul.f32 %v1503, %v1503
      %v1850 = vmul.f32 %v1506, %v1506
      %v1851 = vmul.f32 %v1511, %v1511
      %v1852 = vmul.f32 %v1514, %v1514
      %v1853 = vmul.f32 %v1519, %v1519
      %v1854 = vmul.f32 %v1522, %v1522
      %v1855 = vmul.f32 %v1527, %v1527
      %v1856 = vmul.f32 %v1530, %v1530
      %v1857 = vmul.f32 %v1535, %v1535
      %v1858 = vmul.f32 %v1538, %v1538
      %v1859 = vmul.f32 %v1543, %v1543
      %v1860 = vmul.f32 %v1546, %v1546
      %v1861 = vmul.f32 %v1551, %v1551
      %v1862 = vmul.f32 %v1554, %v1554
      %v1863 = vmul.f32 %v1559, %v1559
      %v1864 = vmul.f32 %v1562, %v1562
      %v1865 = vmul.f32 %v1567, %v1567
      %v1866 = vmul.f32 %v1570, %v1570
      %v1867 = vmul.f32 %v1575, %v1575
      %v1868 = vmul.f32 %v1578, %v1578
      %v1869 = vmul.f32 %v1583, %v1583
      %v1870 = vmul.f32 %v1586, %v1586
      %v1871 = vmul.f32 %v1591, %v1591
      %v1872 = vmul.f32 %v1594, %v1594
      %v1873 = vmul.f32 %v1599, %v1599
      %v1874 = vmul.f32 %v1602, %v1602
      %v1875 = vmul.f32 %v1607, %v1607
      %v1876 = vmul.f32 %v1610, %v1610
      %v1877 = vsel %vm1099, %v1845, 0.0
      %v1878 = vsel %vm1099, %v1846, 0.0
      %v1879 = vadd.f32 %v1877, %v1878
      %v1880 = vsel %vm1099, %v1847, 0.0
      %v1881 = vadd.f32 %v1879, %v1880
      %v1882 = vsel %vm1099, %v1848, 0.0
      %v1883 = vadd.f32 %v1881, %v1882
      %v1884 = vsel %vm1099, %v1849, 0.0
      %v1885 = vadd.f32 %v1883, %v1884
      %v1886 = vsel %vm1099, %v1850, 0.0
      %v1887 = vadd.f32 %v1885, %v1886
      %v1888 = vsel %vm1099, %v1851, 0.0
      %v1889 = vadd.f32 %v1887, %v1888
      %v1890 = vsel %vm1099, %v1852, 0.0
      %v1891 = vadd.f32 %v1889, %v1890
      %v1892 = vsel %vm1099, %v1853, 0.0
      %v1893 = vadd.f32 %v1891, %v1892
      %v1894 = vsel %vm1099, %v1854, 0.0
      %v1895 = vadd.f32 %v1893, %v1894
      %v1896 = vsel %vm1099, %v1855, 0.0
      %v1897 = vadd.f32 %v1895, %v1896
      %v1898 = vsel %vm1099, %v1856, 0.0
      %v1899 = vadd.f32 %v1897, %v1898
      %v1900 = vsel %vm1099, %v1857, 0.0
      %v1901 = vadd.f32 %v1899, %v1900
      %v1902 = vsel %vm1099, %v1858, 0.0
      %v1903 = vadd.f32 %v1901, %v1902
      %v1904 = vsel %vm1099, %v1859, 0.0
      %v1905 = vadd.f32 %v1903, %v1904
      %v1906 = vsel %vm1099, %v1860, 0.0
      %v1907 = vadd.f32 %v1905, %v1906
      %v1908 = vsel %vm1099, %v1861, 0.0
      %v1909 = vadd.f32 %v1907, %v1908
      %v1910 = vsel %vm1099, %v1862, 0.0
      %v1911 = vadd.f32 %v1909, %v1910
      %v1912 = vsel %vm1099, %v1863, 0.0
      %v1913 = vadd.f32 %v1911, %v1912
      %v1914 = vsel %vm1099, %v1864, 0.0
      %v1915 = vadd.f32 %v1913, %v1914
      %v1916 = vsel %vm1099, %v1865, 0.0
      %v1917 = vadd.f32 %v1915, %v1916
      %v1918 = vsel %vm1099, %v1866, 0.0
      %v1919 = vadd.f32 %v1917, %v1918
      %v1920 = vsel %vm1099, %v1867, 0.0
      %v1921 = vadd.f32 %v1919, %v1920
      %v1922 = vsel %vm1099, %v1868, 0.0
      %v1923 = vadd.f32 %v1921, %v1922
      %v1924 = vsel %vm1099, %v1869, 0.0
      %v1925 = vadd.f32 %v1923, %v1924
      %v1926 = vsel %vm1099, %v1870, 0.0
      %v1927 = vadd.f32 %v1925, %v1926
      %v1928 = vsel %vm1099, %v1871, 0.0
      %v1929 = vadd.f32 %v1927, %v1928
      %v1930 = vsel %vm1099, %v1872, 0.0
      %v1931 = vadd.f32 %v1929, %v1930
      %v1932 = vsel %vm1099, %v1873, 0.0
      %v1933 = vadd.f32 %v1931, %v1932
      %v1934 = vsel %vm1099, %v1874, 0.0
      %v1935 = vadd.f32 %v1933, %v1934
      %v1936 = vsel %vm1099, %v1875, 0.0
      %v1937 = vadd.f32 %v1935, %v1936
      %v1938 = vsel %vm1099, %v1876, 0.0
      %v1939 = vadd.f32 %v1937, %v1938
      %v1940 = vrot.slane %v1939, 4
      %v1941 = vadd.f32 %v1939, %v1940
      %v1942 = vrot.slane %v1941, 2
      %v1943 = vadd.f32 %v1941, %v1942
      %v1944 = vrot.slane %v1943, 1
      %v1945 = vadd.f32 %v1943, %v1944
      %1946 = vst.msk [vmem:[%s309] sm:$0x1] %vm1843, %v1945
      %s1947 = smul.u32 16, %s23
      %p1948 = scmp.lt.s32.totalorder %s22, 1
      %s1949 = scalar_select %p1948, %s22, 1
      %p1950 = scmp.lt.s32.totalorder %s1947, 15
      %s1951 = scalar_select %p1950, %s1947, 15
      %s1952 = smul.addr %s1951, 2
      %s1953 = smul.addr %s1949, 32
      %s1954 = sadd.s32 %s1952, %s1953
      %s1955 = smul.addr %s1954, 4
      %s1956 = scalar_lea.vmem %s4, %s1955
      %p1957 = scmp.lt.s32.totalorder %s22, 1
      %s1958 = scalar_select %p1957, %s22, 1
      %p1959 = scmp.lt.s32.totalorder %s23, 0
      %s1960 = scalar_select %p1959, %s23, 0
      %s1961 = sadd.s32 %s1960, %s1958
      %s1962 = scalar_lea.vmem %s5, %s1961
      %p1963 = scmp.lt.s32.totalorder %s22, 1
      %s1964 = scalar_select %p1963, %s22, 1
      %p1965 = scmp.lt.s32.totalorder %s23, 0
      %s1966 = scalar_select %p1965, %s23, 0
      %s1967 = sadd.s32 %s1966, %s1964
      %s1968 = scalar_lea.vmem %s6, %s1967
      // Predicated region
      $region37: #{double_conv.4} parent=35 // pred_check
        %p1969 = pneg %p139
      $region38: #{double_conv.4} parent=35 // pred_check_branch
        %1971 = sbr.rel (%p1969) target = $region40
      $region39: #{double_conv.4} parent=35 // pred_region
        %s1972 = smul.u32 16, %s23
      $region40: #{double_conv.4} parent=35 // pred_fallthru
        _
      // Predicated region
      $region41: #{double_conv.4} parent=35 // pred_check
        %p1973 = pneg %p167
      $region42: #{double_conv.4} parent=35 // pred_check_branch
        %1975 = sbr.rel (%p1973) target = $region44
      $region43: #{double_conv.4} parent=35 // pred_region
        _
      $region44: #{double_conv.4} parent=35 // pred_fallthru
        _
      // Predicated region
      $region45: #{double_conv.4} parent=35 // pred_check
        %p1976 = pneg %p195
      $region46: #{double_conv.4} parent=35 // pred_check_branch
        %1978 = sbr.rel (%p1976) target = $region48
      $region47: #{double_conv.4} parent=35 // pred_region
        _
      $region48: #{double_conv.4} parent=35 // pred_fallthru
        _
    $region36: #{double_conv.4} parent=5 // pred_fallthru
      _
    %p1979 = scmp.le.s32.totalorder 2, %s13
    // Predicated region
    $region49: #{double_conv.4} parent=5 // pred_check
      %p1980 = pneg %p1979
    $region50: #{double_conv.4} parent=5 // pred_check_branch
      %1982 = sbr.rel (%p1980) target = $region52
    $region51: #{double_conv.4} parent=5 // pred_region
      %s1983 = ssub.s32 %s13, 2
      // Predicated region
      $region53: #{double_conv.4} parent=51 // pred_check
        %p1984 = pneg %p145
      $region54: #{double_conv.4} parent=51 // pred_check_branch
        %1986 = sbr.rel (%p1984) target = $region56
      $region55: #{double_conv.4} parent=51 // pred_region
        %s1987 = smul.u32 16, %s25
        %p1988 = scmp.lt.s32.totalorder %s24, 1
        %s1989 = scalar_select %p1988, %s24, 1
        %p1990 = scmp.lt.s32.totalorder %s1987, 15
        %s1991 = scalar_select %p1990, %s1987, 15
        %s1992 = smul.addr %s1991, 2
        %s1993 = smul.addr %s1989, 32
        %s1994 = sadd.s32 %s1992, %s1993
        %s1995 = smul.addr %s1994, 4
        %s1996 = scalar_lea.vmem %s4, %s1995
      $region56: #{double_conv.4} parent=51 // pred_fallthru
        _
      // Predicated region
      $region57: #{double_conv.4} parent=51 // pred_check
        %p1997 = pneg %p173
      $region58: #{double_conv.4} parent=51 // pred_check_branch
        %1999 = sbr.rel (%p1997) target = $region60
      $region59: #{double_conv.4} parent=51 // pred_region
        %p2000 = scmp.lt.s32.totalorder %s24, 1
        %s2001 = scalar_select %p2000, %s24, 1
        %p2002 = scmp.lt.s32.totalorder %s25, 0
        %s2003 = scalar_select %p2002, %s25, 0
        %s2004 = sadd.s32 %s2003, %s2001
        %s2005 = scalar_lea.vmem %s5, %s2004
      $region60: #{double_conv.4} parent=51 // pred_fallthru
        _
      // Predicated region
      $region61: #{double_conv.4} parent=51 // pred_check
        %p2006 = pneg %p201
      $region62: #{double_conv.4} parent=51 // pred_check_branch
        %2008 = sbr.rel (%p2006) target = $region64
      $region63: #{double_conv.4} parent=51 // pred_region
        %p2009 = scmp.lt.s32.totalorder %s24, 1
        %s2010 = scalar_select %p2009, %s24, 1
        %p2011 = scmp.lt.s32.totalorder %s25, 0
        %s2012 = scalar_select %p2011, %s25, 0
        %s2013 = sadd.s32 %s2012, %s2010
        %s2014 = scalar_lea.vmem %s6, %s2013
      $region64: #{double_conv.4} parent=51 // pred_fallthru
        _
    $region52: #{double_conv.4} parent=5 // pred_fallthru
      _
  $region6: #{double_conv.4} parent=0 // loop_footer
    %s17 = sadd.s32 1, %s13
  $region7: #{double_conv.4} parent=0 // loop_footer_branch
    %12 = sbr.rel target = $region3
  $region8: #{double_conv.4} parent=0 // loop_exit
    _

</llo_original>
